<compile_context>
chip_gen: v6e
topology: v6e:2x2x1
jax: 0.10.0
libtpu: 0.0.40
codegen_flags: <defaults>
</compile_context>

<pallas_src>
import functools
import numpy as np
import jax
import jax.numpy as jnp
from jax.experimental import pallas as pl
from jax.experimental.pallas import tpu as pltpu


# --------------------------------- kernel ------------------------------------

def channel_processing_kernel(x_ref, wqh_ref, pool_ref, b1_ref, dww_ref, dwb_ref,
                              w2_ref, b2_ref, gamma_ref, beta_ref, o_ref,
                              *, C, W, eps):
    G, N, Cp = x_ref.shape
    Chp = b1_ref.shape[-1]
    GN = G * N

    x3 = x_ref[...]                                   # (G, N, Cp) f32, pad cols are zero
    x2 = x3.reshape(GN, Cp)                           # free reshape (N % 8 == 0)

    # ---- fused q-linear + fc1: one wide bf16 MXU matmul, f32 accumulate -------
    qh = jnp.dot(x2.astype(jnp.bfloat16), wqh_ref[...],
                 preferred_element_type=jnp.float32)  # (GN, Cp + Chp)
    q3 = qh[:, :Cp].reshape(G, N, Cp)
    h1 = qh[:, Cp:] + b1_ref[...]                     # (GN, Chp)

    # ---- channel-attention branch (f32), softmax over tokens per image --------
    qs = jax.nn.softmax(q3, axis=1)                   # (G, N, Cp)
    ks = jax.nn.softmax(x3, axis=1)
    # per-head mean over head-dim via tiny block-diagonal pool matrix (f32, exact)
    kp = jnp.dot(ks.reshape(GN, Cp), pool_ref[...],
                 preferred_element_type=jnp.float32).reshape(G, N, Cp)
    attn = jax.nn.sigmoid(jnp.sum(qs * kp, axis=1, keepdims=True))   # (G, 1, Cp)

    # ---- depthwise 3x3 conv: 9 masked sublane rolls on the flattened token axis.
    # Masks are built from the within-image position, so a valid tap always sources
    # a token of the SAME image (no cross-image leakage through the roll wraparound).
    m_idx = jax.lax.broadcasted_iota(jnp.int32, (GN, 1), 0)
    n_idx = m_idx % N                                 # token index within its image
    col = m_idx % W                                   # column within its row
    up_ok = n_idx >= W                                # dy = -1 valid
    dn_ok = n_idx < (N - W)                           # dy = +1 valid
    lf_ok = col >= 1                                  # dx = -1 valid
    rt_ok = col < (W - 1)                             # dx = +1 valid
    row_masks = (up_ok, None, dn_ok)
    col_masks = (lf_ok, None, rt_ok)

    dww = dww_ref[...]                                # (9, Chp)
    conv = jnp.broadcast_to(dwb_ref[...], (GN, Chp))  # start with bias (hoisted)
    for iy, dy in enumerate((-1, 0, 1)):
        for ix, dx in enumerate((-1, 0, 1)):
            t = iy * 3 + ix
            ok = row_masks[iy]
            cm = col_masks[ix]
            if ok is None:
                ok = cm
            elif cm is not None:
                ok = ok & cm
            s = dy * W + dx                           # source token offset m + s
            shifted = h1 if s == 0 else pltpu.roll(h1, (-s) % GN, axis=0)
            if ok is not None:
                shifted = jnp.where(ok, shifted, 0.0)
            conv = conv + shifted * dww[t:t + 1, :]

    # tanh-approx GELU (tanh goes to the EUP slot)
    g = jax.nn.gelu(conv, approximate=True)

    # ---- fc2 (bf16 MXU) + LayerNorm over the real C channels ------------------
    v = jnp.dot(g.astype(jnp.bfloat16), w2_ref[...],
                preferred_element_type=jnp.float32) + b2_ref[...]     # (GN, Cp)

    cmask = jax.lax.broadcasted_iota(jnp.int32, (1, Cp), 1) < C       # real channels
    mu = jnp.sum(jnp.where(cmask, v, 0.0), axis=-1, keepdims=True) / C
    cent = jnp.where(cmask, v - mu, 0.0)
    var = jnp.sum(cent * cent, axis=-1, keepdims=True) / C
    ln = (v - mu) * jax.lax.rsqrt(var + eps) * gamma_ref[...] + beta_ref[...]

    # ---- combine: out[g, n, c] = attn[g, c] * ln[g, n, c]  (pad cols stay 0) ---
    o_ref[...] = (attn * ln.reshape(G, N, Cp)).astype(o_ref.dtype)


# ------------------------------ param prep (once) -----------------------------

def _round_up(v, m):
    return ((v + m - 1) // m) * m


def _build_pool(C, num_heads, Cp):
    """Block-diagonal (Cp, Cp) matrix: per-head averaging over head-dim d."""
    d = C // num_heads
    p = np.zeros((Cp, Cp), np.float32)
    for h in range(num_heads):
        p[h * d:(h + 1) * d, h * d:(h + 1) * d] = 1.0 / d
    return jnp.asarray(p)


def prepare_params(params, C, num_heads):
    """One-time: pad to 128 lanes, fuse wq|w1, cast matmul weights to bf16."""
    Ch = params["w1"].shape[1]
    LANES = 128
    Cp = _round_up(C, LANES)
    Chp = _round_up(Ch, LANES)

    def pad2(a, r, c):
        return jnp.pad(a, ((0, r - a.shape[0]), (0, c - a.shape[1])))

    w_qh = jnp.concatenate([pad2(params["wq"], Cp, Cp),
                            pad2(params["w1"], Cp, Chp)], axis=1).astype(jnp.bfloat16)
    prep = (
        w_qh,                                          # (Cp, Cp+Chp) bf16
        _build_pool(C, num_heads, Cp),                 # (Cp, Cp) f32
        pad2(params["b1"], 1, Chp),
        pad2(params["dww"], 9, Chp),
        pad2(params["dwb"], 1, Chp),
        pad2(params["w2"], Chp, Cp).astype(jnp.bfloat16),
        pad2(params["b2"], 1, Cp),
        pad2(params["gamma"], 1, Cp),
        pad2(params["beta"], 1, Cp),
    )
    return prep, Cp


# ------------------------------- jitted forward --------------------------------

@functools.partial(jax.jit, static_argnames=("W", "eps", "group"))
def _forward_stacked(x_all, prep, *, W, eps, group):
    M, N, C = x_all.shape
    w_qh = prep[0]
    Cp = w_qh.shape[0]

    x_p = jnp.pad(x_all, ((0, 0), (0, 0), (0, Cp - C)))       # lane-dense input

    def const_spec(a):
        nd = a.ndim
        return pl.BlockSpec(a.shape, lambda i, _nd=nd: (0,) * _nd)

    out_p = pl.pallas_call(
        functools.partial(channel_processing_kernel, C=C, W=W, eps=eps),
        out_shape=jax.ShapeDtypeStruct((M, N, Cp), x_all.dtype),
        grid=(M // group,),
        in_specs=[pl.BlockSpec((group, N, Cp), lambda i: (i, 0, 0))]
                 + [const_spec(a) for a in prep],
        out_specs=pl.BlockSpec((group, N, Cp), lambda i: (i, 0, 0)),
        compiler_params=pltpu.CompilerParams(
            dimension_semantics=("parallel",),
            vmem_limit_bytes=8 * 1024 * 1024),
    )(x_p, *prep)

    return out_p[..., :C]                                     # slice fused inside jit


def _default_group_target():
    try:
        kind = jax.devices()[0].device_kind.lower()
    except Exception:
        return 4
    # v5e MXU rows saturate at M=128 (G=2); v6e/v7x benefit from M=256 (G=4).
    return 2 if "v5" in kind else 4


def _pick_group(total, target):
    cap = max(1, min(target, total))
    if total >= 2:
        cap = min(cap, max(1, total // 2))   # keep >= 2 grid steps (pipelining / megacore)
    g = cap
    while total % g:
        g -= 1
    return g


def module_parallel(x_parallel, params, H, W, num_heads, eps=1e-5, group=None):
    """ModuleParallel.forward: apply the fused module to every list element with
    ONE pallas_call over the stacked (L*B, N, C) batch."""
    L = len(x_parallel)
    B, N, C = x_parallel[0].shape
    assert N == H * W and C % num_heads == 0
    for xi in x_parallel:
        assert xi.shape == (B, N, C)

    prep, _ = prepare_params(params, C, num_heads)
    x_all = jnp.concatenate(x_parallel, axis=0)               # (L*B, N, C)
    total = L * B
    if group is None:
        group = _pick_group(total, _default_group_target())

    out_all = _forward_stacked(x_all, prep, W=W, eps=eps, group=group)
    return [out_all[i * B:(i + 1) * B] for i in range(L)]


# ---------------------------- pure-JAX reference ------------------------------

def channel_processing_ref(x, params, H, W, num_heads, eps=1e-5):
    B, N, C = x.shape
    d = C // num_heads
    Ch = params["w1"].shape[1]

    def mm(a, w):  # mirror the kernel's bf16-input / f32-accumulate matmuls
        return jnp.dot(a.astype(jnp.bfloat16), w.astype(jnp.bfloat16),
                       preferred_element_type=jnp.float32)

    q = mm(x, params["wq"])
    q4 = q.reshape(B, N, num_heads, d).transpose(0, 2, 1, 3)            # (B,h,N,d)
    k4 = x.reshape(B, N, num_heads, d).transpose(0, 2, 1, 3)            # (B,h,N,d)
    qs = jax.nn.softmax(q4, axis=-2).transpose(0, 1, 3, 2)              # (B,h,d,N)
    ks = jax.nn.softmax(k4, axis=-2)
    kp = ks.mean(axis=-1, keepdims=True)                                # avg_pool2d(k,(1,Ck))
    attn = jax.nn.sigmoid(qs @ kp)                                      # (B,h,d,1)

    h1 = mm(x, params["w1"]) + params["b1"][0]
    img = h1.reshape(B, H, W, Ch)
    w_hwio = params["dww"].reshape(3, 3, Ch)[:, :, None, :]
    conv = jax.lax.conv_general_dilated(
        img, w_hwio, window_strides=(1, 1), padding="SAME",
        dimension_numbers=("NHWC", "HWIO", "NHWC"),
        feature_group_count=Ch,
        precision=jax.lax.Precision.HIGHEST) + params["dwb"][0]
    g = jax.nn.gelu(conv.reshape(B, N, Ch), approximate=False)
    v = mm(g, params["w2"]) + params["b2"][0]

    mu = v.mean(axis=-1, keepdims=True)
    var = ((v - mu) ** 2).mean(axis=-1, keepdims=True)
    ln = (v - mu) * jax.lax.rsqrt(var + eps) * params["gamma"][0] + params["beta"][0]

    v4 = ln.reshape(B, N, num_heads, d).transpose(0, 2, 1, 3)           # (B,h,N,d)
    out = (attn * v4.transpose(0, 1, 3, 2)).transpose(0, 3, 1, 2)       # (B,N,h,d)
    return out.reshape(B, N, C)


# ----------------------------------- main --------------------------------------

if __name__ == "__main__":
    B, H, W = 2, 8, 8
    N = H * W
    C = 32                    # dim
    num_heads = 8
    Ch = 32                   # mlp_hidden_dim

    key = jax.random.PRNGKey(0)
    keys = jax.random.split(key, 11)
    s = 0.1
    params = {
        "wq":    jax.random.normal(keys[0], (C, C), jnp.float32) * s,   # q Linear, bias=False
        "w1":    jax.random.normal(keys[1], (C, Ch), jnp.float32) * s,  # mlp_v.fc1
        "b1":    jax.random.normal(keys[2], (1, Ch), jnp.float32) * s,
        "dww":   jax.random.normal(keys[3], (9, Ch), jnp.float32) * s,  # dwconv [ky*3+kx, c]
        "dwb":   jax.random.normal(keys[4], (1, Ch), jnp.float32) * s,
        "w2":    jax.random.normal(keys[5], (Ch, C), jnp.float32) * s,  # mlp_v.fc2
        "b2":    jax.random.normal(keys[6], (1, C), jnp.float32) * s,
        "gamma": 1.0 + jax.random.normal(keys[7], (1, C), jnp.float32) * s,  # norm_v
        "beta":  jax.random.normal(keys[8], (1, C), jnp.float32) * s,
    }
    # ModuleParallel input: a list of tensors, the wrapped module runs on each.
    x_parallel = [jax.random.normal(keys[9], (B, N, C), jnp.float32),
                  jax.random.normal(keys[10], (B, N, C), jnp.float32)]

    outs = module_parallel(x_parallel, params, H, W, num_heads)
    outs = jax.block_until_ready(outs)

    for xi, oi in zip(x_parallel, outs):
        ref = channel_processing_ref(xi, params, H, W, num_heads)
        if not np.allclose(np.asarray(oi), np.asarray(ref), atol=3e-3, rtol=3e-3):
            raise AssertionError("Pallas kernel mismatch vs reference")

    print("KERNEL_OK")
</pallas_src>

<mosaic_0001>
module attributes {stable_mosaic.version = 11 : i64} {
  func.func @channel_processing_kernel(%arg0: i32, %arg1: memref<2x64x128xf32, #tpu.memory_space<vmem>>, %arg2: memref<128x256xbf16, #tpu.memory_space<vmem>>, %arg3: memref<128x128xf32, #tpu.memory_space<vmem>>, %arg4: memref<1x128xf32, #tpu.memory_space<vmem>>, %arg5: memref<9x128xf32, #tpu.memory_space<vmem>>, %arg6: memref<1x128xf32, #tpu.memory_space<vmem>>, %arg7: memref<128x128xbf16, #tpu.memory_space<vmem>>, %arg8: memref<1x128xf32, #tpu.memory_space<vmem>>, %arg9: memref<1x128xf32, #tpu.memory_space<vmem>>, %arg10: memref<1x128xf32, #tpu.memory_space<vmem>>, %arg11: memref<2x64x128xf32, #tpu.memory_space<vmem>>) attributes {dimension_semantics = [#tpu.dimension_semantics<parallel>], iteration_bounds = array<i64: 2>, scalar_prefetch = 0 : i64, scratch_operands = 0 : i64, tpu.core_type = #tpu.core_type<tc>, window_params = [{transform_indices = @transform_0, window_bounds = array<i64: 2, 64, 128>}, {pipeline_mode = #tpu.pipeline_mode<synchronous>, transform_indices = @transform_1, window_bounds = array<i64: 128, 256>}, {pipeline_mode = #tpu.pipeline_mode<synchronous>, transform_indices = @transform_2, window_bounds = array<i64: 128, 128>}, {pipeline_mode = #tpu.pipeline_mode<synchronous>, transform_indices = @transform_3, window_bounds = array<i64: 1, 128>}, {pipeline_mode = #tpu.pipeline_mode<synchronous>, transform_indices = @transform_4, window_bounds = array<i64: 9, 128>}, {pipeline_mode = #tpu.pipeline_mode<synchronous>, transform_indices = @transform_5, window_bounds = array<i64: 1, 128>}, {pipeline_mode = #tpu.pipeline_mode<synchronous>, transform_indices = @transform_6, window_bounds = array<i64: 128, 128>}, {pipeline_mode = #tpu.pipeline_mode<synchronous>, transform_indices = @transform_7, window_bounds = array<i64: 1, 128>}, {pipeline_mode = #tpu.pipeline_mode<synchronous>, transform_indices = @transform_8, window_bounds = array<i64: 1, 128>}, {pipeline_mode = #tpu.pipeline_mode<synchronous>, transform_indices = @transform_9, window_bounds = array<i64: 1, 128>}, {transform_indices = @transform_10, window_bounds = array<i64: 2, 64, 128>}]} {
    %c0 = arith.constant 0 : index
    %c0_0 = arith.constant 0 : index
    %c0_1 = arith.constant 0 : index
    %0 = vector.load %arg1[%c0, %c0_0, %c0_1] : memref<2x64x128xf32, #tpu.memory_space<vmem>>, vector<2x64x128xf32>
    %1 = vector.shape_cast %0 : vector<2x64x128xf32> to vector<128x128xf32>
    %2 = arith.truncf %1 : vector<128x128xf32> to vector<128x128xbf16>
    %c0_2 = arith.constant 0 : index
    %c0_3 = arith.constant 0 : index
    %3 = vector.load %arg2[%c0_2, %c0_3] : memref<128x256xbf16, #tpu.memory_space<vmem>>, vector<128x256xbf16>
    %cst = arith.constant dense<0.000000e+00> : vector<128x256xf32>
    %4 = tpu.matmul %2, %3, %cst {dimension_numbers = #tpu.dot_dimension_numbers<[1], [0], [0], [1], [0, 0, 1, 1], [], []>} : vector<128x128xbf16>, vector<128x256xbf16>, vector<128x256xf32> -> vector<128x256xf32>
    %5 = vector.extract_strided_slice %4 {offsets = [0, 0], sizes = [128, 128], strides = [1, 1]} : vector<128x256xf32> to vector<128x128xf32>
    %6 = vector.shape_cast %5 : vector<128x128xf32> to vector<2x64x128xf32>
    %7 = vector.extract_strided_slice %4 {offsets = [0, 128], sizes = [128, 128], strides = [1, 1]} : vector<128x256xf32> to vector<128x128xf32>
    %c0_4 = arith.constant 0 : index
    %c0_5 = arith.constant 0 : index
    %8 = vector.load %arg4[%c0_4, %c0_5] : memref<1x128xf32, #tpu.memory_space<vmem>>, vector<1x128xf32>
    %9 = vector.broadcast %8 : vector<1x128xf32> to vector<128x128xf32>
    %10 = arith.addf %7, %9 : vector<128x128xf32>
    %cst_6 = arith.constant dense<0xFF800000> : vector<2x128xf32>
    %11 = vector.multi_reduction <maximumf>, %6, %cst_6 [1] : vector<2x64x128xf32> to vector<2x128xf32>
    %cst_7 = arith.constant 0xFF800000 : f32
    %12 = vector.broadcast %cst_7 : f32 to vector<2x128xf32>
    %13 = arith.maximumf %12, %11 : vector<2x128xf32>
    %14 = vector.shape_cast %13 : vector<2x128xf32> to vector<2x1x128xf32>
    %15 = vector.broadcast %14 : vector<2x1x128xf32> to vector<2x64x128xf32>
    %16 = arith.subf %6, %15 : vector<2x64x128xf32>
    %17 = math.exp %16 : vector<2x64x128xf32>
    %cst_8 = arith.constant dense<0.000000e+00> : vector<2x128xf32>
    %18 = vector.multi_reduction <add>, %17, %cst_8 [1] : vector<2x64x128xf32> to vector<2x128xf32>
    %19 = vector.shape_cast %18 : vector<2x128xf32> to vector<2x1x128xf32>
    %20 = vector.broadcast %19 : vector<2x1x128xf32> to vector<2x64x128xf32>
    %21 = arith.divf %17, %20 : vector<2x64x128xf32>
    %cst_9 = arith.constant dense<0xFF800000> : vector<2x128xf32>
    %22 = vector.multi_reduction <maximumf>, %0, %cst_9 [1] : vector<2x64x128xf32> to vector<2x128xf32>
    %cst_10 = arith.constant 0xFF800000 : f32
    %23 = vector.broadcast %cst_10 : f32 to vector<2x128xf32>
    %24 = arith.maximumf %23, %22 : vector<2x128xf32>
    %25 = vector.shape_cast %24 : vector<2x128xf32> to vector<2x1x128xf32>
    %26 = vector.broadcast %25 : vector<2x1x128xf32> to vector<2x64x128xf32>
    %27 = arith.subf %0, %26 : vector<2x64x128xf32>
    %28 = math.exp %27 : vector<2x64x128xf32>
    %cst_11 = arith.constant dense<0.000000e+00> : vector<2x128xf32>
    %29 = vector.multi_reduction <add>, %28, %cst_11 [1] : vector<2x64x128xf32> to vector<2x128xf32>
    %30 = vector.shape_cast %29 : vector<2x128xf32> to vector<2x1x128xf32>
    %31 = vector.broadcast %30 : vector<2x1x128xf32> to vector<2x64x128xf32>
    %32 = arith.divf %28, %31 : vector<2x64x128xf32>
    %33 = vector.shape_cast %32 : vector<2x64x128xf32> to vector<128x128xf32>
    %c0_12 = arith.constant 0 : index
    %c0_13 = arith.constant 0 : index
    %34 = vector.load %arg3[%c0_12, %c0_13] : memref<128x128xf32, #tpu.memory_space<vmem>>, vector<128x128xf32>
    %cst_14 = arith.constant dense<0.000000e+00> : vector<128x128xf32>
    %35 = tpu.matmul %33, %34, %cst_14 {dimension_numbers = #tpu.dot_dimension_numbers<[1], [0], [0], [1], [0, 0, 1, 1], [], []>} : vector<128x128xf32>, vector<128x128xf32>, vector<128x128xf32> -> vector<128x128xf32>
    %36 = vector.shape_cast %35 : vector<128x128xf32> to vector<2x64x128xf32>
    %37 = arith.mulf %21, %36 : vector<2x64x128xf32>
    %cst_15 = arith.constant dense<0.000000e+00> : vector<2x128xf32>
    %38 = vector.multi_reduction <add>, %37, %cst_15 [1] : vector<2x64x128xf32> to vector<2x128xf32>
    %39 = vector.shape_cast %38 : vector<2x128xf32> to vector<2x1x128xf32>
    %40 = arith.negf %39 : vector<2x1x128xf32>
    %41 = math.exp %40 : vector<2x1x128xf32>
    %cst_16 = arith.constant 1.000000e+00 : f32
    %42 = vector.broadcast %cst_16 : f32 to vector<2x1x128xf32>
    %43 = arith.addf %42, %41 : vector<2x1x128xf32>
    %44 = arith.divf %42, %43 : vector<2x1x128xf32>
    %45 = tpu.iota {dimensions = array<i32: 0>} : vector<128x1xi32>
    %c64_i32 = arith.constant 64 : i32
    %c0_i32 = arith.constant 0 : i32
    %46 = arith.cmpi eq, %c64_i32, %c0_i32 : i32
    %c1_i32 = arith.constant 1 : i32
    %47 = arith.select %46, %c1_i32, %c64_i32 : i32
    %48 = vector.broadcast %47 : i32 to vector<128x1xi32>
    %49 = arith.remsi %45, %48 : vector<128x1xi32>
    %c0_i32_17 = arith.constant 0 : i32
    %50 = vector.broadcast %c0_i32_17 : i32 to vector<128x1xi32>
    %51 = arith.cmpi ne, %49, %50 : vector<128x1xi32>
    %c0_i32_18 = arith.constant 0 : i32
    %52 = vector.broadcast %c0_i32_18 : i32 to vector<128x1xi32>
    %53 = arith.cmpi slt, %49, %52 : vector<128x1xi32>
    %c0_i32_19 = arith.constant 0 : i32
    %54 = arith.cmpi slt, %47, %c0_i32_19 : i32
    %55 = vector.broadcast %54 : i1 to vector<128x1xi1>
    %56 = vector.broadcast %55 : vector<128x1xi1> to vector<128x1xi1>
    %57 = arith.xori %53, %56 : vector<128x1xi1>
    %58 = arith.andi %57, %51 : vector<128x1xi1>
    %59 = vector.broadcast %47 : i32 to vector<128x1xi32>
    %60 = arith.addi %49, %59 : vector<128x1xi32>
    %61 = arith.select %58, %60, %49 : vector<128x1xi1>, vector<128x1xi32>
    %c8_i32 = arith.constant 8 : i32
    %c0_i32_20 = arith.constant 0 : i32
    %62 = arith.cmpi eq, %c8_i32, %c0_i32_20 : i32
    %c1_i32_21 = arith.constant 1 : i32
    %63 = arith.select %62, %c1_i32_21, %c8_i32 : i32
    %64 = vector.broadcast %63 : i32 to vector<128x1xi32>
    %65 = arith.remsi %45, %64 : vector<128x1xi32>
    %c0_i32_22 = arith.constant 0 : i32
    %66 = vector.broadcast %c0_i32_22 : i32 to vector<128x1xi32>
    %67 = arith.cmpi ne, %65, %66 : vector<128x1xi32>
    %c0_i32_23 = arith.constant 0 : i32
    %68 = vector.broadcast %c0_i32_23 : i32 to vector<128x1xi32>
    %69 = arith.cmpi slt, %65, %68 : vector<128x1xi32>
    %c0_i32_24 = arith.constant 0 : i32
    %70 = arith.cmpi slt, %63, %c0_i32_24 : i32
    %71 = vector.broadcast %70 : i1 to vector<128x1xi1>
    %72 = vector.broadcast %71 : vector<128x1xi1> to vector<128x1xi1>
    %73 = arith.xori %69, %72 : vector<128x1xi1>
    %74 = arith.andi %73, %67 : vector<128x1xi1>
    %75 = vector.broadcast %63 : i32 to vector<128x1xi32>
    %76 = arith.addi %65, %75 : vector<128x1xi32>
    %77 = arith.select %74, %76, %65 : vector<128x1xi1>, vector<128x1xi32>
    %c8_i32_25 = arith.constant 8 : i32
    %78 = vector.broadcast %c8_i32_25 : i32 to vector<128x1xi32>
    %79 = arith.cmpi sge, %61, %78 : vector<128x1xi32>
    %c56_i32 = arith.constant 56 : i32
    %80 = vector.broadcast %c56_i32 : i32 to vector<128x1xi32>
    %81 = arith.cmpi slt, %61, %80 : vector<128x1xi32>
    %c1_i32_26 = arith.constant 1 : i32
    %82 = vector.broadcast %c1_i32_26 : i32 to vector<128x1xi32>
    %83 = arith.cmpi sge, %77, %82 : vector<128x1xi32>
    %c7_i32 = arith.constant 7 : i32
    %84 = vector.broadcast %c7_i32 : i32 to vector<128x1xi32>
    %85 = arith.cmpi slt, %77, %84 : vector<128x1xi32>
    %c0_27 = arith.constant 0 : index
    %c0_28 = arith.constant 0 : index
    %86 = vector.load %arg5[%c0_27, %c0_28] : memref<9x128xf32, #tpu.memory_space<vmem>>, vector<9x128xf32>
    %c0_29 = arith.constant 0 : index
    %c0_30 = arith.constant 0 : index
    %87 = vector.load %arg6[%c0_29, %c0_30] : memref<1x128xf32, #tpu.memory_space<vmem>>, vector<1x128xf32>
    %88 = vector.shape_cast %87 : vector<1x128xf32> to vector<1x128xf32>
    %89 = vector.broadcast %88 : vector<1x128xf32> to vector<128x128xf32>
    %90 = arith.andi %79, %83 : vector<128x1xi1>
    %c9_i32 = arith.constant 9 : i32
    %91 = tpu.dynamic_rotate %10 by %c9_i32 dim 0 : vector<128x128xf32>, i32 -> vector<128x128xf32>
    %cst_31 = arith.constant 0.000000e+00 : f32
    %92 = vector.shape_cast %90 : vector<128x1xi1> to vector<128x1xi1>
    %93 = vector.broadcast %92 : vector<128x1xi1> to vector<128x128xi1>
    %94 = vector.broadcast %cst_31 : f32 to vector<128x128xf32>
    %95 = arith.select %93, %91, %94 : vector<128x128xi1>, vector<128x128xf32>
    %96 = vector.extract_strided_slice %86 {offsets = [0, 0], sizes = [1, 128], strides = [1, 1]} : vector<9x128xf32> to vector<1x128xf32>
    %97 = vector.broadcast %96 : vector<1x128xf32> to vector<128x128xf32>
    %98 = arith.mulf %95, %97 : vector<128x128xf32>
    %99 = arith.addf %89, %98 : vector<128x128xf32>
    %c8_i32_32 = arith.constant 8 : i32
    %100 = tpu.dynamic_rotate %10 by %c8_i32_32 dim 0 : vector<128x128xf32>, i32 -> vector<128x128xf32>
    %cst_33 = arith.constant 0.000000e+00 : f32
    %101 = vector.shape_cast %79 : vector<128x1xi1> to vector<128x1xi1>
    %102 = vector.broadcast %101 : vector<128x1xi1> to vector<128x128xi1>
    %103 = vector.broadcast %cst_33 : f32 to vector<128x128xf32>
    %104 = arith.select %102, %100, %103 : vector<128x128xi1>, vector<128x128xf32>
    %105 = vector.extract_strided_slice %86 {offsets = [1, 0], sizes = [1, 128], strides = [1, 1]} : vector<9x128xf32> to vector<1x128xf32>
    %106 = vector.broadcast %105 : vector<1x128xf32> to vector<128x128xf32>
    %107 = arith.mulf %104, %106 : vector<128x128xf32>
    %108 = arith.addf %99, %107 : vector<128x128xf32>
    %109 = arith.andi %79, %85 : vector<128x1xi1>
    %c7_i32_34 = arith.constant 7 : i32
    %110 = tpu.dynamic_rotate %10 by %c7_i32_34 dim 0 : vector<128x128xf32>, i32 -> vector<128x128xf32>
    %cst_35 = arith.constant 0.000000e+00 : f32
    %111 = vector.shape_cast %109 : vector<128x1xi1> to vector<128x1xi1>
    %112 = vector.broadcast %111 : vector<128x1xi1> to vector<128x128xi1>
    %113 = vector.broadcast %cst_35 : f32 to vector<128x128xf32>
    %114 = arith.select %112, %110, %113 : vector<128x128xi1>, vector<128x128xf32>
    %115 = vector.extract_strided_slice %86 {offsets = [2, 0], sizes = [1, 128], strides = [1, 1]} : vector<9x128xf32> to vector<1x128xf32>
    %116 = vector.broadcast %115 : vector<1x128xf32> to vector<128x128xf32>
    %117 = arith.mulf %114, %116 : vector<128x128xf32>
    %118 = arith.addf %108, %117 : vector<128x128xf32>
    %c1_i32_36 = arith.constant 1 : i32
    %119 = tpu.dynamic_rotate %10 by %c1_i32_36 dim 0 : vector<128x128xf32>, i32 -> vector<128x128xf32>
    %cst_37 = arith.constant 0.000000e+00 : f32
    %120 = vector.shape_cast %83 : vector<128x1xi1> to vector<128x1xi1>
    %121 = vector.broadcast %120 : vector<128x1xi1> to vector<128x128xi1>
    %122 = vector.broadcast %cst_37 : f32 to vector<128x128xf32>
    %123 = arith.select %121, %119, %122 : vector<128x128xi1>, vector<128x128xf32>
    %124 = vector.extract_strided_slice %86 {offsets = [3, 0], sizes = [1, 128], strides = [1, 1]} : vector<9x128xf32> to vector<1x128xf32>
    %125 = vector.broadcast %124 : vector<1x128xf32> to vector<128x128xf32>
    %126 = arith.mulf %123, %125 : vector<128x128xf32>
    %127 = arith.addf %118, %126 : vector<128x128xf32>
    %128 = vector.extract_strided_slice %86 {offsets = [4, 0], sizes = [1, 128], strides = [1, 1]} : vector<9x128xf32> to vector<1x128xf32>
    %129 = vector.broadcast %128 : vector<1x128xf32> to vector<128x128xf32>
    %130 = arith.mulf %10, %129 : vector<128x128xf32>
    %131 = arith.addf %127, %130 : vector<128x128xf32>
    %c127_i32 = arith.constant 127 : i32
    %132 = tpu.dynamic_rotate %10 by %c127_i32 dim 0 : vector<128x128xf32>, i32 -> vector<128x128xf32>
    %cst_38 = arith.constant 0.000000e+00 : f32
    %133 = vector.shape_cast %85 : vector<128x1xi1> to vector<128x1xi1>
    %134 = vector.broadcast %133 : vector<128x1xi1> to vector<128x128xi1>
    %135 = vector.broadcast %cst_38 : f32 to vector<128x128xf32>
    %136 = arith.select %134, %132, %135 : vector<128x128xi1>, vector<128x128xf32>
    %137 = vector.extract_strided_slice %86 {offsets = [5, 0], sizes = [1, 128], strides = [1, 1]} : vector<9x128xf32> to vector<1x128xf32>
    %138 = vector.broadcast %137 : vector<1x128xf32> to vector<128x128xf32>
    %139 = arith.mulf %136, %138 : vector<128x128xf32>
    %140 = arith.addf %131, %139 : vector<128x128xf32>
    %141 = arith.andi %81, %83 : vector<128x1xi1>
    %c121_i32 = arith.constant 121 : i32
    %142 = tpu.dynamic_rotate %10 by %c121_i32 dim 0 : vector<128x128xf32>, i32 -> vector<128x128xf32>
    %cst_39 = arith.constant 0.000000e+00 : f32
    %143 = vector.shape_cast %141 : vector<128x1xi1> to vector<128x1xi1>
    %144 = vector.broadcast %143 : vector<128x1xi1> to vector<128x128xi1>
    %145 = vector.broadcast %cst_39 : f32 to vector<128x128xf32>
    %146 = arith.select %144, %142, %145 : vector<128x128xi1>, vector<128x128xf32>
    %147 = vector.extract_strided_slice %86 {offsets = [6, 0], sizes = [1, 128], strides = [1, 1]} : vector<9x128xf32> to vector<1x128xf32>
    %148 = vector.broadcast %147 : vector<1x128xf32> to vector<128x128xf32>
    %149 = arith.mulf %146, %148 : vector<128x128xf32>
    %150 = arith.addf %140, %149 : vector<128x128xf32>
    %c120_i32 = arith.constant 120 : i32
    %151 = tpu.dynamic_rotate %10 by %c120_i32 dim 0 : vector<128x128xf32>, i32 -> vector<128x128xf32>
    %cst_40 = arith.constant 0.000000e+00 : f32
    %152 = vector.shape_cast %81 : vector<128x1xi1> to vector<128x1xi1>
    %153 = vector.broadcast %152 : vector<128x1xi1> to vector<128x128xi1>
    %154 = vector.broadcast %cst_40 : f32 to vector<128x128xf32>
    %155 = arith.select %153, %151, %154 : vector<128x128xi1>, vector<128x128xf32>
    %156 = vector.extract_strided_slice %86 {offsets = [7, 0], sizes = [1, 128], strides = [1, 1]} : vector<9x128xf32> to vector<1x128xf32>
    %157 = vector.broadcast %156 : vector<1x128xf32> to vector<128x128xf32>
    %158 = arith.mulf %155, %157 : vector<128x128xf32>
    %159 = arith.addf %150, %158 : vector<128x128xf32>
    %160 = arith.andi %81, %85 : vector<128x1xi1>
    %c119_i32 = arith.constant 119 : i32
    %161 = tpu.dynamic_rotate %10 by %c119_i32 dim 0 : vector<128x128xf32>, i32 -> vector<128x128xf32>
    %cst_41 = arith.constant 0.000000e+00 : f32
    %162 = vector.shape_cast %160 : vector<128x1xi1> to vector<128x1xi1>
    %163 = vector.broadcast %162 : vector<128x1xi1> to vector<128x128xi1>
    %164 = vector.broadcast %cst_41 : f32 to vector<128x128xf32>
    %165 = arith.select %163, %161, %164 : vector<128x128xi1>, vector<128x128xf32>
    %166 = vector.extract_strided_slice %86 {offsets = [8, 0], sizes = [1, 128], strides = [1, 1]} : vector<9x128xf32> to vector<1x128xf32>
    %167 = vector.broadcast %166 : vector<1x128xf32> to vector<128x128xf32>
    %168 = arith.mulf %165, %167 : vector<128x128xf32>
    %169 = arith.addf %159, %168 : vector<128x128xf32>
    %170 = arith.mulf %169, %169 : vector<128x128xf32>
    %171 = arith.mulf %169, %170 : vector<128x128xf32>
    %cst_42 = arith.constant 4.471500e-02 : f32
    %172 = vector.broadcast %cst_42 : f32 to vector<128x128xf32>
    %173 = arith.mulf %172, %171 : vector<128x128xf32>
    %174 = arith.addf %169, %173 : vector<128x128xf32>
    %cst_43 = arith.constant 0.797884583 : f32
    %175 = vector.broadcast %cst_43 : f32 to vector<128x128xf32>
    %176 = arith.mulf %175, %174 : vector<128x128xf32>
    %177 = math.tanh %176 : vector<128x128xf32>
    %cst_44 = arith.constant 1.000000e+00 : f32
    %178 = vector.broadcast %cst_44 : f32 to vector<128x128xf32>
    %179 = arith.addf %178, %177 : vector<128x128xf32>
    %cst_45 = arith.constant 5.000000e-01 : f32
    %180 = vector.broadcast %cst_45 : f32 to vector<128x128xf32>
    %181 = arith.mulf %180, %179 : vector<128x128xf32>
    %182 = arith.mulf %169, %181 : vector<128x128xf32>
    %183 = arith.truncf %182 : vector<128x128xf32> to vector<128x128xbf16>
    %c0_46 = arith.constant 0 : index
    %c0_47 = arith.constant 0 : index
    %184 = vector.load %arg7[%c0_46, %c0_47] : memref<128x128xbf16, #tpu.memory_space<vmem>>, vector<128x128xbf16>
    %cst_48 = arith.constant dense<0.000000e+00> : vector<128x128xf32>
    %185 = tpu.matmul %183, %184, %cst_48 {dimension_numbers = #tpu.dot_dimension_numbers<[1], [0], [0], [1], [0, 0, 1, 1], [], []>} : vector<128x128xbf16>, vector<128x128xbf16>, vector<128x128xf32> -> vector<128x128xf32>
    %c0_49 = arith.constant 0 : index
    %c0_50 = arith.constant 0 : index
    %186 = vector.load %arg8[%c0_49, %c0_50] : memref<1x128xf32, #tpu.memory_space<vmem>>, vector<1x128xf32>
    %187 = vector.broadcast %186 : vector<1x128xf32> to vector<128x128xf32>
    %188 = arith.addf %185, %187 : vector<128x128xf32>
    %189 = tpu.iota {dimensions = array<i32: 1>} : vector<1x128xi32>
    %c32_i32 = arith.constant 32 : i32
    %190 = vector.broadcast %c32_i32 : i32 to vector<1x128xi32>
    %191 = arith.cmpi slt, %189, %190 : vector<1x128xi32>
    %cst_51 = arith.constant 0.000000e+00 : f32
    %192 = vector.shape_cast %191 : vector<1x128xi1> to vector<1x128xi1>
    %193 = vector.broadcast %192 : vector<1x128xi1> to vector<128x128xi1>
    %194 = vector.broadcast %cst_51 : f32 to vector<128x128xf32>
    %195 = arith.select %193, %188, %194 : vector<128x128xi1>, vector<128x128xf32>
    %cst_52 = arith.constant dense<0.000000e+00> : vector<128xf32>
    %196 = vector.multi_reduction <add>, %195, %cst_52 [1] : vector<128x128xf32> to vector<128xf32>
    %197 = vector.shape_cast %196 : vector<128xf32> to vector<128x1xf32>
    %cst_53 = arith.constant 3.200000e+01 : f32
    %198 = vector.broadcast %cst_53 : f32 to vector<128x1xf32>
    %199 = arith.divf %197, %198 : vector<128x1xf32>
    %200 = vector.broadcast %199 : vector<128x1xf32> to vector<128x128xf32>
    %201 = arith.subf %188, %200 : vector<128x128xf32>
    %cst_54 = arith.constant 0.000000e+00 : f32
    %202 = vector.shape_cast %191 : vector<1x128xi1> to vector<1x128xi1>
    %203 = vector.broadcast %202 : vector<1x128xi1> to vector<128x128xi1>
    %204 = vector.broadcast %cst_54 : f32 to vector<128x128xf32>
    %205 = arith.select %203, %201, %204 : vector<128x128xi1>, vector<128x128xf32>
    %206 = arith.mulf %205, %205 : vector<128x128xf32>
    %cst_55 = arith.constant dense<0.000000e+00> : vector<128xf32>
    %207 = vector.multi_reduction <add>, %206, %cst_55 [1] : vector<128x128xf32> to vector<128xf32>
    %208 = vector.shape_cast %207 : vector<128xf32> to vector<128x1xf32>
    %cst_56 = arith.constant 3.200000e+01 : f32
    %209 = vector.broadcast %cst_56 : f32 to vector<128x1xf32>
    %210 = arith.divf %208, %209 : vector<128x1xf32>
    %211 = vector.broadcast %199 : vector<128x1xf32> to vector<128x128xf32>
    %212 = arith.subf %188, %211 : vector<128x128xf32>
    %cst_57 = arith.constant 9.99999974E-6 : f32
    %213 = vector.broadcast %cst_57 : f32 to vector<128x1xf32>
    %214 = arith.addf %210, %213 : vector<128x1xf32>
    %215 = math.rsqrt %214 : vector<128x1xf32>
    %216 = vector.broadcast %215 : vector<128x1xf32> to vector<128x128xf32>
    %217 = arith.mulf %212, %216 : vector<128x128xf32>
    %c0_58 = arith.constant 0 : index
    %c0_59 = arith.constant 0 : index
    %218 = vector.load %arg9[%c0_58, %c0_59] : memref<1x128xf32, #tpu.memory_space<vmem>>, vector<1x128xf32>
    %219 = vector.broadcast %218 : vector<1x128xf32> to vector<128x128xf32>
    %220 = arith.mulf %217, %219 : vector<128x128xf32>
    %c0_60 = arith.constant 0 : index
    %c0_61 = arith.constant 0 : index
    %221 = vector.load %arg10[%c0_60, %c0_61] : memref<1x128xf32, #tpu.memory_space<vmem>>, vector<1x128xf32>
    %222 = vector.broadcast %221 : vector<1x128xf32> to vector<128x128xf32>
    %223 = arith.addf %220, %222 : vector<128x128xf32>
    %224 = vector.shape_cast %223 : vector<128x128xf32> to vector<2x64x128xf32>
    %225 = vector.broadcast %44 : vector<2x1x128xf32> to vector<2x64x128xf32>
    %226 = arith.mulf %225, %224 : vector<2x64x128xf32>
    %c0_62 = arith.constant 0 : index
    %c0_63 = arith.constant 0 : index
    %c0_64 = arith.constant 0 : index
    %227 = vector.load %arg11[%c0_62, %c0_63, %c0_64] : memref<2x64x128xf32, #tpu.memory_space<vmem>>, vector<2x64x128xf32>
    tpu.vector_store %arg11[%c0_62, %c0_63, %c0_64], %226 {strides = array<i32>} : memref<2x64x128xf32, #tpu.memory_space<vmem>>, vector<2x64x128xf32>,
    return
  }
  func.func @transform_0(%arg0: i32) -> (i32, i32, i32) {
    %c0_i32 = arith.constant 0 : i32
    %c0_i32_0 = arith.constant 0 : i32
    %c0_i32_1 = arith.constant 0 : i32
    return %arg0, %c0_i32, %c0_i32_0 : i32, i32, i32
  }
  func.func @transform_1(%arg0: i32) -> (i32, i32) {
    %c0_i32 = arith.constant 0 : i32
    %c0_i32_0 = arith.constant 0 : i32
    %c0_i32_1 = arith.constant 0 : i32
    return %c0_i32, %c0_i32_0 : i32, i32
  }
  func.func @transform_2(%arg0: i32) -> (i32, i32) {
    %c0_i32 = arith.constant 0 : i32
    %c0_i32_0 = arith.constant 0 : i32
    %c0_i32_1 = arith.constant 0 : i32
    return %c0_i32, %c0_i32_0 : i32, i32
  }
  func.func @transform_3(%arg0: i32) -> (i32, i32) {
    %c0_i32 = arith.constant 0 : i32
    %c0_i32_0 = arith.constant 0 : i32
    %c0_i32_1 = arith.constant 0 : i32
    return %c0_i32, %c0_i32_0 : i32, i32
  }
  func.func @transform_4(%arg0: i32) -> (i32, i32) {
    %c0_i32 = arith.constant 0 : i32
    %c0_i32_0 = arith.constant 0 : i32
    %c0_i32_1 = arith.constant 0 : i32
    return %c0_i32, %c0_i32_0 : i32, i32
  }
  func.func @transform_5(%arg0: i32) -> (i32, i32) {
    %c0_i32 = arith.constant 0 : i32
    %c0_i32_0 = arith.constant 0 : i32
    %c0_i32_1 = arith.constant 0 : i32
    return %c0_i32, %c0_i32_0 : i32, i32
  }
  func.func @transform_6(%arg0: i32) -> (i32, i32) {
    %c0_i32 = arith.constant 0 : i32
    %c0_i32_0 = arith.constant 0 : i32
    %c0_i32_1 = arith.constant 0 : i32
    return %c0_i32, %c0_i32_0 : i32, i32
  }
  func.func @transform_7(%arg0: i32) -> (i32, i32) {
    %c0_i32 = arith.constant 0 : i32
    %c0_i32_0 = arith.constant 0 : i32
    %c0_i32_1 = arith.constant 0 : i32
    return %c0_i32, %c0_i32_0 : i32, i32
  }
  func.func @transform_8(%arg0: i32) -> (i32, i32) {
    %c0_i32 = arith.constant 0 : i32
    %c0_i32_0 = arith.constant 0 : i32
    %c0_i32_1 = arith.constant 0 : i32
    return %c0_i32, %c0_i32_0 : i32, i32
  }
  func.func @transform_9(%arg0: i32) -> (i32, i32) {
    %c0_i32 = arith.constant 0 : i32
    %c0_i32_0 = arith.constant 0 : i32
    %c0_i32_1 = arith.constant 0 : i32
    return %c0_i32, %c0_i32_0 : i32, i32
  }
  func.func @transform_10(%arg0: i32) -> (i32, i32, i32) {
    %c0_i32 = arith.constant 0 : i32
    %c0_i32_0 = arith.constant 0 : i32
    %c0_i32_1 = arith.constant 0 : i32
    return %arg0, %c0_i32, %c0_i32_0 : i32, i32, i32
  }
}

</mosaic_0001>

<llo_original>
// kernel: _forward_stacked.1
$region0: #{_forward_stacked.1}
  #allocation0 [shape = 'u32[]', space=smem, size = 0x4, offset = 0x4, fixed_abs, tag = 'smem constant byte address 0x4 - core index']
  #allocation1 [shape = 'u32[144,128]{1,0:T(1,128)}', space=vmem, size = 0x12000, scoped, tag = 'internal scratch']
  %s0 = inlined_call_operand.vmem [shape: f32[4,64,128], index: 0, kind: input, shape index: {}]
  %s1 = inlined_call_operand.vmem [shape: bf16[128,256], index: 1, kind: input, shape index: {}]
  %s2 = inlined_call_operand.vmem [shape: f32[128,128], index: 2, kind: input, shape index: {}]
  %s3 = inlined_call_operand.vmem [shape: f32[1,128], index: 3, kind: input, shape index: {}]
  %s4 = inlined_call_operand.vmem [shape: f32[9,128], index: 4, kind: input, shape index: {}]
  %s5 = inlined_call_operand.vmem [shape: f32[1,128], index: 5, kind: input, shape index: {}]
  %s6 = inlined_call_operand.vmem [shape: bf16[128,128], index: 6, kind: input, shape index: {}]
  %s7 = inlined_call_operand.vmem [shape: f32[1,128], index: 7, kind: input, shape index: {}]
  %s8 = inlined_call_operand.vmem [shape: f32[1,128], index: 8, kind: input, shape index: {}]
  %s9 = inlined_call_operand.vmem [shape: f32[1,128], index: 9, kind: input, shape index: {}]
  %s10 = inlined_call_operand.vmem [shape: f32[4,64,128], index: 10, kind: output, shape index: {}]
  %s11 = sld [smem:[#allocation0]]
  $region73: #{_forward_stacked.1} parent=0
    _
  %s13 = ssub.s32 1, %s11
  %s14 = scalar_select 0, %s13, %s11
  loop: start=0, step=1, limit=4
  $region2: #{_forward_stacked.1} parent=0 // loop_pre_header
    _
  $region3: #{_forward_stacked.1} parent=0 // loop_header
    %s16 = sphi 0, %s20
    %p17 = scmp.ge.s32.totalorder %s16, 4
    %s26 = sphi 0, %s28
    %s29 = sphi 0, %s26
    %s30 = sphi 0, %s29
    %s46 = sphi 0, %s30
    %s50 = sphi 0, %s50
    %s52 = sphi 0, %s50
    %s53 = sphi 0, %s52
    %s67 = sphi 0, %s53
    %s71 = sphi 0, %s71
    %s73 = sphi 0, %s71
    %s74 = sphi 0, %s73
    %s88 = sphi 0, %s74
    %s92 = sphi 0, %s92
    %s94 = sphi 0, %s92
    %s95 = sphi 0, %s94
    %s109 = sphi 0, %s95
    %s113 = sphi 0, %s113
    %s115 = sphi 0, %s113
    %s116 = sphi 0, %s115
    %s130 = sphi 0, %s116
    %s134 = sphi 0, %s134
    %s136 = sphi 0, %s134
    %s137 = sphi 0, %s136
    %s151 = sphi 0, %s137
    %s155 = sphi 0, %s155
    %s157 = sphi 0, %s155
    %s158 = sphi 0, %s157
    %s172 = sphi 0, %s158
    %s176 = sphi 0, %s176
    %s178 = sphi 0, %s176
    %s179 = sphi 0, %s178
    %s193 = sphi 0, %s179
    %s197 = sphi 0, %s197
    %s199 = sphi 0, %s197
    %s200 = sphi 0, %s199
    %s214 = sphi 0, %s200
    %s218 = sphi 0, %s218
    %s220 = sphi 0, %s218
    %s221 = sphi 0, %s220
    %s235 = sphi 0, %s221
    %s241 = sphi 0, %s243
    %s244 = sphi 0, %s241
    %s245 = sphi 0, %s244
    %s261 = sphi 0, %s245
  $region4: #{_forward_stacked.1} parent=0 // loop_header_branch
    %19 = sbr.rel (%p17) target = $region8
  $region5: #{_forward_stacked.1} parent=0 // loop_body
    %s21 = ssub.s32 %s16, 1
    %s22 = ssub.s32 %s16, 2
    %s23 = sadd.s32 %s16, 1
    %s24 = ssub.s32 %s16, %s23
    %p25 = scmp.eq.s32.totalorder %s24, 0
    %s27 = sadd.s32 %s26, 1
    %s28 = scalar_select %p25, %s26, %s27
    %p31 = pneg %p25
    %p32 = scmp.eq.s32.totalorder %s16, 1
    %p33 = por %p31, %p32
    %p34 = scmp.ne.s32.totalorder %s26, %s29
    %p35 = scmp.eq.s32.totalorder %s16, 0
    %p36 = por %p34, %p35
    %p37 = scmp.ne.s32.totalorder %s26, %s29
    %p38 = scmp.eq.s32.totalorder %s21, 1
    %p39 = por %p37, %p38
    %p40 = scmp.ne.s32.totalorder %s29, %s30
    %p41 = scmp.eq.s32.totalorder %s21, 0
    %p42 = por %p40, %p41
    %p43 = scmp.ne.s32.totalorder %s29, %s30
    %p44 = scmp.eq.s32.totalorder %s22, 1
    %p45 = por %p43, %p44
    %p47 = scmp.ne.s32.totalorder %s30, %s46
    %p48 = scmp.eq.s32.totalorder %s22, 0
    %p49 = por %p47, %p48
    %s51 = sadd.s32 %s50, 1
    %p54 = scmp.eq.s32.totalorder %s16, 1
    %p55 = scmp.ne.s32.totalorder %s50, %s52
    %p56 = scmp.eq.s32.totalorder %s16, 0
    %p57 = por %p55, %p56
    %p58 = scmp.ne.s32.totalorder %s50, %s52
    %p59 = scmp.eq.s32.totalorder %s21, 1
    %p60 = por %p58, %p59
    %p61 = scmp.ne.s32.totalorder %s52, %s53
    %p62 = scmp.eq.s32.totalorder %s21, 0
    %p63 = por %p61, %p62
    %p64 = scmp.ne.s32.totalorder %s52, %s53
    %p65 = scmp.eq.s32.totalorder %s22, 1
    %p66 = por %p64, %p65
    %p68 = scmp.ne.s32.totalorder %s53, %s67
    %p69 = scmp.eq.s32.totalorder %s22, 0
    %p70 = por %p68, %p69
    %s72 = sadd.s32 %s71, 1
    %p75 = scmp.eq.s32.totalorder %s16, 1
    %p76 = scmp.ne.s32.totalorder %s71, %s73
    %p77 = scmp.eq.s32.totalorder %s16, 0
    %p78 = por %p76, %p77
    %p79 = scmp.ne.s32.totalorder %s71, %s73
    %p80 = scmp.eq.s32.totalorder %s21, 1
    %p81 = por %p79, %p80
    %p82 = scmp.ne.s32.totalorder %s73, %s74
    %p83 = scmp.eq.s32.totalorder %s21, 0
    %p84 = por %p82, %p83
    %p85 = scmp.ne.s32.totalorder %s73, %s74
    %p86 = scmp.eq.s32.totalorder %s22, 1
    %p87 = por %p85, %p86
    %p89 = scmp.ne.s32.totalorder %s74, %s88
    %p90 = scmp.eq.s32.totalorder %s22, 0
    %p91 = por %p89, %p90
    %s93 = sadd.s32 %s92, 1
    %p96 = scmp.eq.s32.totalorder %s16, 1
    %p97 = scmp.ne.s32.totalorder %s92, %s94
    %p98 = scmp.eq.s32.totalorder %s16, 0
    %p99 = por %p97, %p98
    %p100 = scmp.ne.s32.totalorder %s92, %s94
    %p101 = scmp.eq.s32.totalorder %s21, 1
    %p102 = por %p100, %p101
    %p103 = scmp.ne.s32.totalorder %s94, %s95
    %p104 = scmp.eq.s32.totalorder %s21, 0
    %p105 = por %p103, %p104
    %p106 = scmp.ne.s32.totalorder %s94, %s95
    %p107 = scmp.eq.s32.totalorder %s22, 1
    %p108 = por %p106, %p107
    %p110 = scmp.ne.s32.totalorder %s95, %s109
    %p111 = scmp.eq.s32.totalorder %s22, 0
    %p112 = por %p110, %p111
    %s114 = sadd.s32 %s113, 1
    %p117 = scmp.eq.s32.totalorder %s16, 1
    %p118 = scmp.ne.s32.totalorder %s113, %s115
    %p119 = scmp.eq.s32.totalorder %s16, 0
    %p120 = por %p118, %p119
    %p121 = scmp.ne.s32.totalorder %s113, %s115
    %p122 = scmp.eq.s32.totalorder %s21, 1
    %p123 = por %p121, %p122
    %p124 = scmp.ne.s32.totalorder %s115, %s116
    %p125 = scmp.eq.s32.totalorder %s21, 0
    %p126 = por %p124, %p125
    %p127 = scmp.ne.s32.totalorder %s115, %s116
    %p128 = scmp.eq.s32.totalorder %s22, 1
    %p129 = por %p127, %p128
    %p131 = scmp.ne.s32.totalorder %s116, %s130
    %p132 = scmp.eq.s32.totalorder %s22, 0
    %p133 = por %p131, %p132
    %s135 = sadd.s32 %s134, 1
    %p138 = scmp.eq.s32.totalorder %s16, 1
    %p139 = scmp.ne.s32.totalorder %s134, %s136
    %p140 = scmp.eq.s32.totalorder %s16, 0
    %p141 = por %p139, %p140
    %p142 = scmp.ne.s32.totalorder %s134, %s136
    %p143 = scmp.eq.s32.totalorder %s21, 1
    %p144 = por %p142, %p143
    %p145 = scmp.ne.s32.totalorder %s136, %s137
    %p146 = scmp.eq.s32.totalorder %s21, 0
    %p147 = por %p145, %p146
    %p148 = scmp.ne.s32.totalorder %s136, %s137
    %p149 = scmp.eq.s32.totalorder %s22, 1
    %p150 = por %p148, %p149
    %p152 = scmp.ne.s32.totalorder %s137, %s151
    %p153 = scmp.eq.s32.totalorder %s22, 0
    %p154 = por %p152, %p153
    %s156 = sadd.s32 %s155, 1
    %p159 = scmp.eq.s32.totalorder %s16, 1
    %p160 = scmp.ne.s32.totalorder %s155, %s157
    %p161 = scmp.eq.s32.totalorder %s16, 0
    %p162 = por %p160, %p161
    %p163 = scmp.ne.s32.totalorder %s155, %s157
    %p164 = scmp.eq.s32.totalorder %s21, 1
    %p165 = por %p163, %p164
    %p166 = scmp.ne.s32.totalorder %s157, %s158
    %p167 = scmp.eq.s32.totalorder %s21, 0
    %p168 = por %p166, %p167
    %p169 = scmp.ne.s32.totalorder %s157, %s158
    %p170 = scmp.eq.s32.totalorder %s22, 1
    %p171 = por %p169, %p170
    %p173 = scmp.ne.s32.totalorder %s158, %s172
    %p174 = scmp.eq.s32.totalorder %s22, 0
    %p175 = por %p173, %p174
    %s177 = sadd.s32 %s176, 1
    %p180 = scmp.eq.s32.totalorder %s16, 1
    %p181 = scmp.ne.s32.totalorder %s176, %s178
    %p182 = scmp.eq.s32.totalorder %s16, 0
    %p183 = por %p181, %p182
    %p184 = scmp.ne.s32.totalorder %s176, %s178
    %p185 = scmp.eq.s32.totalorder %s21, 1
    %p186 = por %p184, %p185
    %p187 = scmp.ne.s32.totalorder %s178, %s179
    %p188 = scmp.eq.s32.totalorder %s21, 0
    %p189 = por %p187, %p188
    %p190 = scmp.ne.s32.totalorder %s178, %s179
    %p191 = scmp.eq.s32.totalorder %s22, 1
    %p192 = por %p190, %p191
    %p194 = scmp.ne.s32.totalorder %s179, %s193
    %p195 = scmp.eq.s32.totalorder %s22, 0
    %p196 = por %p194, %p195
    %s198 = sadd.s32 %s197, 1
    %p201 = scmp.eq.s32.totalorder %s16, 1
    %p202 = scmp.ne.s32.totalorder %s197, %s199
    %p203 = scmp.eq.s32.totalorder %s16, 0
    %p204 = por %p202, %p203
    %p205 = scmp.ne.s32.totalorder %s197, %s199
    %p206 = scmp.eq.s32.totalorder %s21, 1
    %p207 = por %p205, %p206
    %p208 = scmp.ne.s32.totalorder %s199, %s200
    %p209 = scmp.eq.s32.totalorder %s21, 0
    %p210 = por %p208, %p209
    %p211 = scmp.ne.s32.totalorder %s199, %s200
    %p212 = scmp.eq.s32.totalorder %s22, 1
    %p213 = por %p211, %p212
    %p215 = scmp.ne.s32.totalorder %s200, %s214
    %p216 = scmp.eq.s32.totalorder %s22, 0
    %p217 = por %p215, %p216
    %s219 = sadd.s32 %s218, 1
    %p222 = scmp.eq.s32.totalorder %s16, 1
    %p223 = scmp.ne.s32.totalorder %s218, %s220
    %p224 = scmp.eq.s32.totalorder %s16, 0
    %p225 = por %p223, %p224
    %p226 = scmp.ne.s32.totalorder %s218, %s220
    %p227 = scmp.eq.s32.totalorder %s21, 1
    %p228 = por %p226, %p227
    %p229 = scmp.ne.s32.totalorder %s220, %s221
    %p230 = scmp.eq.s32.totalorder %s21, 0
    %p231 = por %p229, %p230
    %p232 = scmp.ne.s32.totalorder %s220, %s221
    %p233 = scmp.eq.s32.totalorder %s22, 1
    %p234 = por %p232, %p233
    %p236 = scmp.ne.s32.totalorder %s221, %s235
    %p237 = scmp.eq.s32.totalorder %s22, 0
    %p238 = por %p236, %p237
    %s239 = ssub.s32 %s16, %s23
    %p240 = scmp.eq.s32.totalorder %s239, 0
    %s242 = sadd.s32 %s241, 1
    %s243 = scalar_select %p240, %s241, %s242
    %p246 = pneg %p240
    %p247 = scmp.eq.s32.totalorder %s16, 1
    %p248 = por %p246, %p247
    %p249 = scmp.ne.s32.totalorder %s241, %s244
    %p250 = scmp.eq.s32.totalorder %s16, 0
    %p251 = por %p249, %p250
    %p252 = scmp.ne.s32.totalorder %s241, %s244
    %p253 = scmp.eq.s32.totalorder %s21, 1
    %p254 = por %p252, %p253
    %p255 = scmp.ne.s32.totalorder %s244, %s245
    %p256 = scmp.eq.s32.totalorder %s21, 0
    %p257 = por %p255, %p256
    %p258 = scmp.ne.s32.totalorder %s244, %s245
    %p259 = scmp.eq.s32.totalorder %s22, 1
    %p260 = por %p258, %p259
    %p262 = scmp.ne.s32.totalorder %s245, %s261
    %p263 = scmp.eq.s32.totalorder %s22, 0
    %p264 = por %p262, %p263
    %p265 = scmp.le.s32.totalorder 1, %s16
    %p266 = scmp.lt.s32.totalorder %s16, 3
    %p267 = pnand %p265, %p266
    %p268 = pneg %p267
    // Predicated region
    $region9: #{_forward_stacked.1} parent=5 // pred_check
      _
    $region10: #{_forward_stacked.1} parent=5 // pred_check_branch
      %270 = sbr.rel (%p267) target = $region12
    $region11: #{_forward_stacked.1} parent=5 // pred_region
      %s271 = ssub.s32 %s16, 1
      // Predicated region
      $region13: #{_forward_stacked.1} parent=11 // pred_check
        %p272 = pneg %p63
      $region14: #{_forward_stacked.1} parent=11 // pred_check_branch
        %274 = sbr.rel (%p272) target = $region16
      $region15: #{_forward_stacked.1} parent=11 // pred_region
        _
      $region16: #{_forward_stacked.1} parent=11 // pred_fallthru
        _
      // Predicated region
      $region17: #{_forward_stacked.1} parent=11 // pred_check
        %p275 = pneg %p84
      $region18: #{_forward_stacked.1} parent=11 // pred_check_branch
        %277 = sbr.rel (%p275) target = $region20
      $region19: #{_forward_stacked.1} parent=11 // pred_region
        _
      $region20: #{_forward_stacked.1} parent=11 // pred_fallthru
        _
      // Predicated region
      $region21: #{_forward_stacked.1} parent=11 // pred_check
        %p278 = pneg %p105
      $region22: #{_forward_stacked.1} parent=11 // pred_check_branch
        %280 = sbr.rel (%p278) target = $region24
      $region23: #{_forward_stacked.1} parent=11 // pred_region
        _
      $region24: #{_forward_stacked.1} parent=11 // pred_fallthru
        _
      // Predicated region
      $region25: #{_forward_stacked.1} parent=11 // pred_check
        %p281 = pneg %p126
      $region26: #{_forward_stacked.1} parent=11 // pred_check_branch
        %283 = sbr.rel (%p281) target = $region28
      $region27: #{_forward_stacked.1} parent=11 // pred_region
        _
      $region28: #{_forward_stacked.1} parent=11 // pred_fallthru
        _
      // Predicated region
      $region29: #{_forward_stacked.1} parent=11 // pred_check
        %p284 = pneg %p147
      $region30: #{_forward_stacked.1} parent=11 // pred_check_branch
        %286 = sbr.rel (%p284) target = $region32
      $region31: #{_forward_stacked.1} parent=11 // pred_region
        _
      $region32: #{_forward_stacked.1} parent=11 // pred_fallthru
        _
      // Predicated region
      $region33: #{_forward_stacked.1} parent=11 // pred_check
        %p287 = pneg %p168
      $region34: #{_forward_stacked.1} parent=11 // pred_check_branch
        %289 = sbr.rel (%p287) target = $region36
      $region35: #{_forward_stacked.1} parent=11 // pred_region
        _
      $region36: #{_forward_stacked.1} parent=11 // pred_fallthru
        _
      // Predicated region
      $region37: #{_forward_stacked.1} parent=11 // pred_check
        %p290 = pneg %p189
      $region38: #{_forward_stacked.1} parent=11 // pred_check_branch
        %292 = sbr.rel (%p290) target = $region40
      $region39: #{_forward_stacked.1} parent=11 // pred_region
        _
      $region40: #{_forward_stacked.1} parent=11 // pred_fallthru
        _
      // Predicated region
      $region41: #{_forward_stacked.1} parent=11 // pred_check
        %p293 = pneg %p210
      $region42: #{_forward_stacked.1} parent=11 // pred_check_branch
        %295 = sbr.rel (%p293) target = $region44
      $region43: #{_forward_stacked.1} parent=11 // pred_region
        _
      $region44: #{_forward_stacked.1} parent=11 // pred_fallthru
        _
      // Predicated region
      $region45: #{_forward_stacked.1} parent=11 // pred_check
        %p296 = pneg %p231
      $region46: #{_forward_stacked.1} parent=11 // pred_check_branch
        %298 = sbr.rel (%p296) target = $region48
      $region47: #{_forward_stacked.1} parent=11 // pred_region
        _
      $region48: #{_forward_stacked.1} parent=11 // pred_fallthru
        _
    $region12: #{_forward_stacked.1} parent=5 // pred_fallthru
      _
    %p299 = scmp.lt.s32.totalorder %s16, 2
    // Predicated region
    $region49: #{_forward_stacked.1} parent=5 // pred_check
      %p300 = pneg %p299
    $region50: #{_forward_stacked.1} parent=5 // pred_check_branch
      %302 = sbr.rel (%p300) target = $region52
    $region51: #{_forward_stacked.1} parent=5 // pred_region
      // Predicated region
      $region53: #{_forward_stacked.1} parent=51 // pred_check
        %p303 = pneg %p36
      $region54: #{_forward_stacked.1} parent=51 // pred_check_branch
        %305 = sbr.rel (%p303) target = $region56
      $region55: #{_forward_stacked.1} parent=51 // pred_region
        %s306 = smul.u32 2, %s16
        %p307 = scmp.lt.s32.totalorder %s306, 3
        %s308 = scalar_select %p307, %s306, 3
        %s309 = smul.addr %s308, 8
        %s310 = smul.addr %s309, 8
        %s311 = scalar_lea.vmem %s0, %s310
        %s312 = smul.u32 2, %s16
      $region56: #{_forward_stacked.1} parent=51 // pred_fallthru
        _
    $region52: #{_forward_stacked.1} parent=5 // pred_fallthru
      _
    %p313 = scmp.le.s32.totalorder 1, %s16
    %p314 = scmp.lt.s32.totalorder %s16, 3
    %p315 = pnand %p313, %p314
    %p316 = pneg %p315
    // Predicated region
    $region57: #{_forward_stacked.1} parent=5 // pred_check
      _
    $region58: #{_forward_stacked.1} parent=5 // pred_check_branch
      %318 = sbr.rel (%p315) target = $region60
    $region59: #{_forward_stacked.1} parent=5 // pred_region
      %s319 = ssub.s32 %s16, 1
      %s320 = smul.u32 2, %s21
      %p321 = scmp.lt.s32.totalorder %s320, 3
      %s322 = scalar_select %p321, %s320, 3
      %s323 = smul.addr %s322, 8
      %s324 = smul.addr %s323, 8
      %s325 = scalar_lea.vmem %s0, %s324
      %p326 = pneg %p42
      %p327 = pneg %p39
      %p328 = pneg %p63
      %p329 = pneg %p60
      %p330 = pneg %p84
      %p331 = pneg %p81
      %p332 = pneg %p105
      %p333 = pneg %p102
      %p334 = pneg %p126
      %p335 = pneg %p123
      %p336 = pneg %p147
      %p337 = pneg %p144
      %p338 = pneg %p168
      %p339 = pneg %p165
      %p340 = pneg %p189
      %p341 = pneg %p186
      %p342 = pneg %p210
      %p343 = pneg %p207
      %p344 = pneg %p231
      %p345 = pneg %p228
      %p346 = pneg %p257
      %p347 = pneg %p254
      %s348 = smul.u32 2, %s21
      %p349 = scmp.lt.s32.totalorder %s348, 3
      %s350 = scalar_select %p349, %s348, 3
      %s351 = smul.addr %s350, 8
      %s352 = smul.addr %s351, 8
      %s353 = scalar_lea.vmem %s10, %s352
      %s354 = smul.u32 2, %s21
      %p355 = scmp.lt.s32.totalorder %s354, 3
      %s356 = scalar_select %p355, %s354, 3
      %s357 = smul.addr %s356, 8
      %s358 = smul.addr %s357, 8
      %s359 = scalar_lea.vmem %s0, %s358
      %s360 = smul.u32 2, %s21
      %s361 = smul.u32 2, %s21
      %p362 = scmp.lt.s32.totalorder %s361, 3
      %s363 = scalar_select %p362, %s361, 3
      %s364 = smul.addr %s363, 8
      %s365 = smul.addr %s364, 8
      %s366 = scalar_lea.vmem %s10, %s365
      %s367 = smul.u32 2, %s21
      %v369 = vld [vmem:[%s359] sm:$0xff]
      %v370 = vld [vmem:[%s359 + $0x8] sm:$0xff]
      %v371 = vld [vmem:[%s359 + $0x10] sm:$0xff]
      %v372 = vld [vmem:[%s359 + $0x18] sm:$0xff]
      %v373 = vld [vmem:[%s359 + $0x20] sm:$0xff]
      %v374 = vld [vmem:[%s359 + $0x28] sm:$0xff]
      %v375 = vld [vmem:[%s359 + $0x30] sm:$0xff]
      %v376 = vld [vmem:[%s359 + $0x38] sm:$0xff]
      %v377 = vld [vmem:[%s359 + $0x40] sm:$0xff]
      %v378 = vld [vmem:[%s359 + $0x48] sm:$0xff]
      %v379 = vld [vmem:[%s359 + $0x50] sm:$0xff]
      %v380 = vld [vmem:[%s359 + $0x58] sm:$0xff]
      %v381 = vld [vmem:[%s359 + $0x60] sm:$0xff]
      %v382 = vld [vmem:[%s359 + $0x68] sm:$0xff]
      %v383 = vld [vmem:[%s359 + $0x70] sm:$0xff]
      %v384 = vld [vmem:[%s359 + $0x78] sm:$0xff]
      %v385 = vpack.c.bf16 %v370, %v369
      %v386 = vpack.c.bf16 %v372, %v371
      %v387 = vpack.c.bf16 %v374, %v373
      %v388 = vpack.c.bf16 %v376, %v375
      %v389 = vpack.c.bf16 %v378, %v377
      %v390 = vpack.c.bf16 %v380, %v379
      %v391 = vpack.c.bf16 %v382, %v381
      %v392 = vpack.c.bf16 %v384, %v383
      %v393 = vld [vmem:[%s1] sm:$0xff]
      %v394 = vld [vmem:[%s1 + $0x8] sm:$0xff]
      %v395 = vld [vmem:[%s1 + $0x10] sm:$0xff]
      %v396 = vld [vmem:[%s1 + $0x18] sm:$0xff]
      %v397 = vld [vmem:[%s1 + $0x20] sm:$0xff]
      %v398 = vld [vmem:[%s1 + $0x28] sm:$0xff]
      %v399 = vld [vmem:[%s1 + $0x30] sm:$0xff]
      %v400 = vld [vmem:[%s1 + $0x38] sm:$0xff]
      %v401 = vld [vmem:[%s1 + $0x40] sm:$0xff]
      %v402 = vld [vmem:[%s1 + $0x48] sm:$0xff]
      %v403 = vld [vmem:[%s1 + $0x50] sm:$0xff]
      %v404 = vld [vmem:[%s1 + $0x58] sm:$0xff]
      %v405 = vld [vmem:[%s1 + $0x60] sm:$0xff]
      %v406 = vld [vmem:[%s1 + $0x68] sm:$0xff]
      %v407 = vld [vmem:[%s1 + $0x70] sm:$0xff]
      %v408 = vld [vmem:[%s1 + $0x78] sm:$0xff]
      %v425 = vunpack.c.l.b16 %v393
      %v426 = vunpack.c.h.b16 %v393
      %v427 = vunpack.c.l.b16 %v394
      %v428 = vunpack.c.h.b16 %v394
      %v429 = vunpack.c.l.b16 %v395
      %v430 = vunpack.c.h.b16 %v395
      %v431 = vunpack.c.l.b16 %v396
      %v432 = vunpack.c.h.b16 %v396
      %v433 = vunpack.c.l.b16 %v397
      %v434 = vunpack.c.h.b16 %v397
      %v435 = vunpack.c.l.b16 %v398
      %v436 = vunpack.c.h.b16 %v398
      %v437 = vunpack.c.l.b16 %v399
      %v438 = vunpack.c.h.b16 %v399
      %v439 = vunpack.c.l.b16 %v400
      %v440 = vunpack.c.h.b16 %v400
      %v441 = vunpack.c.l.b16 %v401
      %v442 = vunpack.c.h.b16 %v401
      %v443 = vunpack.c.l.b16 %v402
      %v444 = vunpack.c.h.b16 %v402
      %v445 = vunpack.c.l.b16 %v403
      %v446 = vunpack.c.h.b16 %v403
      %v447 = vunpack.c.l.b16 %v404
      %v448 = vunpack.c.h.b16 %v404
      %v449 = vunpack.c.l.b16 %v405
      %v450 = vunpack.c.h.b16 %v405
      %v451 = vunpack.c.l.b16 %v406
      %v452 = vunpack.c.h.b16 %v406
      %v453 = vunpack.c.l.b16 %v407
      %v454 = vunpack.c.h.b16 %v407
      %v455 = vunpack.c.l.b16 %v408
      %v456 = vunpack.c.h.b16 %v408
      %v457 = vpack.c.b16 %v427, %v425
      %v458 = vpack.c.b16 %v428, %v426
      %v459 = vpack.c.b16 %v431, %v429
      %v460 = vpack.c.b16 %v432, %v430
      %v461 = vpack.c.b16 %v435, %v433
      %v462 = vpack.c.b16 %v436, %v434
      %v463 = vpack.c.b16 %v439, %v437
      %v464 = vpack.c.b16 %v440, %v438
      %v465 = vpack.c.b16 %v443, %v441
      %v466 = vpack.c.b16 %v444, %v442
      %v467 = vpack.c.b16 %v447, %v445
      %v468 = vpack.c.b16 %v448, %v446
      %v469 = vpack.c.b16 %v451, %v449
      %v470 = vpack.c.b16 %v452, %v450
      %v471 = vpack.c.b16 %v455, %v453
      %v472 = vpack.c.b16 %v456, %v454
      %489 = vmatprep.subr.bf16.mxu0 %v472
      %490 = vmatpush1.bf16.msra.mxu0 %v471
      %491 = vmatprep.subr.bf16.mxu0 %v470
      %492 = vmatpush1.bf16.msra.mxu0 %v469
      %493 = vmatprep.subr.bf16.mxu0 %v468
      %494 = vmatpush1.bf16.msra.mxu0 %v467
      %495 = vmatprep.subr.bf16.mxu0 %v466
      %496 = vmatpush1.bf16.msra.mxu0 %v465
      %497 = vmatprep.subr.bf16.mxu0 %v464
      %498 = vmatpush1.bf16.msra.mxu0 %v463
      %499 = vmatprep.subr.bf16.mxu0 %v462
      %500 = vmatpush1.bf16.msra.mxu0 %v461
      %501 = vmatprep.subr.bf16.mxu0 %v460
      %502 = vmatpush1.bf16.msra.mxu0 %v459
      %503 = vmatprep.subr.bf16.mxu0 %v458
      %504 = vmatpush1.bf16.msra.mxu0 %v457
      %505 = vmatprep.subr.bf16.mxu0 0
      %506 = vmatpush2.bf16.msra.mxu0 0
      %507 = vmatprep.subr.bf16.mxu0 0
      %508 = vmatpush2.bf16.msra.mxu0 0
      %509 = vmatprep.subr.bf16.mxu0 0
      %510 = vmatpush2.bf16.msra.mxu0 0
      %511 = vmatprep.subr.bf16.mxu0 0
      %512 = vmatpush2.bf16.msra.mxu0 0
      %513 = vmatprep.subr.bf16.mxu0 0
      %514 = vmatpush2.bf16.msra.mxu0 0
      %515 = vmatprep.subr.bf16.mxu0 0
      %516 = vmatpush2.bf16.msra.mxu0 0
      %517 = vmatprep.subr.bf16.mxu0 0
      %518 = vmatpush2.bf16.msra.mxu0 0
      %519 = vmatprep.subr.bf16.mxu0 0
      %520 = vmatpush2.bf16.msra.mxu0 0
      %521 = vmatprep.mubr.bf16.mxu0 0
      %522 = vmatmul.mubr.bf16.gmra.mxu0 %v385
      %v523 = vpop.f32.mrf.mxu0
      %v524 = vadd.f32 0.0, %v523
      %v525 = vpop.f32.mrf.mxu0
      %v526 = vadd.f32 0.0, %v525
      %v527 = vpop.f32.mrf.mxu0
      %v528 = vadd.f32 0.0, %v527
      %v529 = vpop.f32.mrf.mxu0
      %v530 = vadd.f32 0.0, %v529
      %531 = vmatprep.mubr.bf16.mxu0 0
      %532 = vmatmul.mubr.bf16.gmra.mxu0 %v386
      %v533 = vpop.f32.mrf.mxu0
      %v534 = vadd.f32 0.0, %v533
      %v535 = vpop.f32.mrf.mxu0
      %v536 = vadd.f32 0.0, %v535
      %v537 = vpop.f32.mrf.mxu0
      %v538 = vadd.f32 0.0, %v537
      %v539 = vpop.f32.mrf.mxu0
      %v540 = vadd.f32 0.0, %v539
      %541 = vmatprep.mubr.bf16.mxu0 0
      %542 = vmatmul.mubr.bf16.gmra.mxu0 %v387
      %v543 = vpop.f32.mrf.mxu0
      %v544 = vadd.f32 0.0, %v543
      %v545 = vpop.f32.mrf.mxu0
      %v546 = vadd.f32 0.0, %v545
      %v547 = vpop.f32.mrf.mxu0
      %v548 = vadd.f32 0.0, %v547
      %v549 = vpop.f32.mrf.mxu0
      %v550 = vadd.f32 0.0, %v549
      %551 = vmatprep.mubr.bf16.mxu0 0
      %552 = vmatmul.mubr.bf16.gmra.mxu0 %v388
      %v553 = vpop.f32.mrf.mxu0
      %v554 = vadd.f32 0.0, %v553
      %v555 = vpop.f32.mrf.mxu0
      %v556 = vadd.f32 0.0, %v555
      %v557 = vpop.f32.mrf.mxu0
      %v558 = vadd.f32 0.0, %v557
      %v559 = vpop.f32.mrf.mxu0
      %v560 = vadd.f32 0.0, %v559
      %561 = vmatprep.mubr.bf16.mxu0 0
      %562 = vmatmul.mubr.bf16.gmra.mxu0 %v389
      %v563 = vpop.f32.mrf.mxu0
      %v564 = vadd.f32 0.0, %v563
      %v565 = vpop.f32.mrf.mxu0
      %v566 = vadd.f32 0.0, %v565
      %v567 = vpop.f32.mrf.mxu0
      %v568 = vadd.f32 0.0, %v567
      %v569 = vpop.f32.mrf.mxu0
      %v570 = vadd.f32 0.0, %v569
      %571 = vmatprep.mubr.bf16.mxu0 0
      %572 = vmatmul.mubr.bf16.gmra.mxu0 %v390
      %v573 = vpop.f32.mrf.mxu0
      %v574 = vadd.f32 0.0, %v573
      %v575 = vpop.f32.mrf.mxu0
      %v576 = vadd.f32 0.0, %v575
      %v577 = vpop.f32.mrf.mxu0
      %v578 = vadd.f32 0.0, %v577
      %v579 = vpop.f32.mrf.mxu0
      %v580 = vadd.f32 0.0, %v579
      %581 = vmatprep.mubr.bf16.mxu0 0
      %582 = vmatmul.mubr.bf16.gmra.mxu0 %v391
      %v583 = vpop.f32.mrf.mxu0
      %v584 = vadd.f32 0.0, %v583
      %v585 = vpop.f32.mrf.mxu0
      %v586 = vadd.f32 0.0, %v585
      %v587 = vpop.f32.mrf.mxu0
      %v588 = vadd.f32 0.0, %v587
      %v589 = vpop.f32.mrf.mxu0
      %v590 = vadd.f32 0.0, %v589
      %591 = vmatprep.mubr.bf16.mxu0 0
      %592 = vmatmul.mubr.bf16.gmra.mxu0 %v392
      %v593 = vpop.f32.mrf.mxu0
      %v594 = vadd.f32 0.0, %v593
      %v595 = vpop.f32.mrf.mxu0
      %v596 = vadd.f32 0.0, %v595
      %v597 = vpop.f32.mrf.mxu0
      %v598 = vadd.f32 0.0, %v597
      %v599 = vpop.f32.mrf.mxu0
      %v600 = vadd.f32 0.0, %v599
      %601 = vdwg.mxu0
      %v602 = vld [vmem:[%s3] sm:$0x1]
      %v604 = vlaneseq
      %v605 = vshrl.u32 %v604, 7
      %v606 = vsub.s32 0, %v605
      %v607 = vrot.slane %v602, %v606
      %v609 = vadd.f32 %v526, %v607
      %v610 = vadd.f32 %v530, %v607
      %v611 = vadd.f32 %v536, %v607
      %v612 = vadd.f32 %v540, %v607
      %v613 = vadd.f32 %v546, %v607
      %v614 = vadd.f32 %v550, %v607
      %v615 = vadd.f32 %v556, %v607
      %v616 = vadd.f32 %v560, %v607
      %v617 = vadd.f32 %v566, %v607
      %v618 = vadd.f32 %v570, %v607
      %v619 = vadd.f32 %v576, %v607
      %v620 = vadd.f32 %v580, %v607
      %v621 = vadd.f32 %v586, %v607
      %v622 = vadd.f32 %v590, %v607
      %v623 = vadd.f32 %v596, %v607
      %v624 = vadd.f32 %v600, %v607
      %v625 = vmax.f32 %v524, %v534
      %v626 = vmax.f32 %v528, %v538
      %v627 = vmax.f32 %v625, %v544
      %v628 = vmax.f32 %v626, %v548
      %v629 = vmax.f32 %v627, %v554
      %v630 = vmax.f32 %v628, %v558
      %v631 = vmax.f32 %v629, %v630
      %v632 = vrot.slane %v631, 4
      %v633 = vmax.f32 %v631, %v632
      %v634 = vrot.slane %v633, 2
      %v635 = vmax.f32 %v633, %v634
      %v636 = vrot.slane %v635, 1
      %v637 = vmax.f32 %v635, %v636
      %v638 = vmax.f32 %v564, %v574
      %v639 = vmax.f32 %v568, %v578
      %v640 = vmax.f32 %v638, %v584
      %v641 = vmax.f32 %v639, %v588
      %v642 = vmax.f32 %v640, %v594
      %v643 = vmax.f32 %v641, %v598
      %v644 = vmax.f32 %v642, %v643
      %v645 = vrot.slane %v644, 4
      %v646 = vmax.f32 %v644, %v645
      %v647 = vrot.slane %v646, 2
      %v648 = vmax.f32 %v646, %v647
      %v649 = vrot.slane %v648, 1
      %v650 = vmax.f32 %v648, %v649
      %v651 = vsub.f32 %v524, %v637
      %v652 = vsub.f32 %v528, %v637
      %v653 = vsub.f32 %v534, %v637
      %v654 = vsub.f32 %v538, %v637
      %v655 = vsub.f32 %v544, %v637
      %v656 = vsub.f32 %v548, %v637
      %v657 = vsub.f32 %v554, %v637
      %v658 = vsub.f32 %v558, %v637
      %v659 = vsub.f32 %v564, %v650
      %v660 = vsub.f32 %v568, %v650
      %v661 = vsub.f32 %v574, %v650
      %v662 = vsub.f32 %v578, %v650
      %v663 = vsub.f32 %v584, %v650
      %v664 = vsub.f32 %v588, %v650
      %v665 = vsub.f32 %v594, %v650
      %v666 = vsub.f32 %v598, %v650
      %v667 = vmul.f32 %v651, 1.442695
      %v668 = vpow.pop %v667
      %v669 = vmul.f32 %v652, 1.442695
      %v670 = vpow.pop %v669
      %v671 = vmul.f32 %v653, 1.442695
      %v672 = vpow.pop %v671
      %v673 = vmul.f32 %v654, 1.442695
      %v674 = vpow.pop %v673
      %v675 = vmul.f32 %v655, 1.442695
      %v676 = vpow.pop %v675
      %v677 = vmul.f32 %v656, 1.442695
      %v678 = vpow.pop %v677
      %v679 = vmul.f32 %v657, 1.442695
      %v680 = vpow.pop %v679
      %v681 = vmul.f32 %v658, 1.442695
      %v682 = vpow.pop %v681
      %v683 = vmul.f32 %v659, 1.442695
      %v684 = vpow.pop %v683
      %v685 = vmul.f32 %v660, 1.442695
      %v686 = vpow.pop %v685
      %v687 = vmul.f32 %v661, 1.442695
      %v688 = vpow.pop %v687
      %v689 = vmul.f32 %v662, 1.442695
      %v690 = vpow.pop %v689
      %v691 = vmul.f32 %v663, 1.442695
      %v692 = vpow.pop %v691
      %v693 = vmul.f32 %v664, 1.442695
      %v694 = vpow.pop %v693
      %v695 = vmul.f32 %v665, 1.442695
      %v696 = vpow.pop %v695
      %v697 = vmul.f32 %v666, 1.442695
      %v698 = vpow.pop %v697
      %v699 = vadd.f32 %v668, %v670
      %v700 = vadd.f32 %v699, %v672
      %v701 = vadd.f32 %v700, %v674
      %v702 = vadd.f32 %v701, %v676
      %v703 = vadd.f32 %v702, %v678
      %v704 = vadd.f32 %v703, %v680
      %v705 = vadd.f32 %v704, %v682
      %v706 = vrot.slane %v705, 4
      %v707 = vadd.f32 %v705, %v706
      %v708 = vrot.slane %v707, 2
      %v709 = vadd.f32 %v707, %v708
      %v710 = vrot.slane %v709, 1
      %v711 = vadd.f32 %v709, %v710
      %v712 = vadd.f32 %v684, %v686
      %v713 = vadd.f32 %v712, %v688
      %v714 = vadd.f32 %v713, %v690
      %v715 = vadd.f32 %v714, %v692
      %v716 = vadd.f32 %v715, %v694
      %v717 = vadd.f32 %v716, %v696
      %v718 = vadd.f32 %v717, %v698
      %v719 = vrot.slane %v718, 4
      %v720 = vadd.f32 %v718, %v719
      %v721 = vrot.slane %v720, 2
      %v722 = vadd.f32 %v720, %v721
      %v723 = vrot.slane %v722, 1
      %v724 = vadd.f32 %v722, %v723
      %v725 = vrcp.pop %v711
      %v726 = vmul.f32 %v668, %v725
      %v727 = vmul.f32 %v670, %v725
      %v728 = vmul.f32 %v672, %v725
      %v729 = vmul.f32 %v674, %v725
      %v730 = vmul.f32 %v676, %v725
      %v731 = vmul.f32 %v678, %v725
      %v732 = vmul.f32 %v680, %v725
      %v733 = vmul.f32 %v682, %v725
      %v734 = vrcp.pop %v724
      %v735 = vmul.f32 %v684, %v734
      %v736 = vmul.f32 %v686, %v734
      %v737 = vmul.f32 %v688, %v734
      %v738 = vmul.f32 %v690, %v734
      %v739 = vmul.f32 %v692, %v734
      %v740 = vmul.f32 %v694, %v734
      %v741 = vmul.f32 %v696, %v734
      %v742 = vmul.f32 %v698, %v734
      %v743 = vmax.f32 %v369, %v371
      %v744 = vmax.f32 %v370, %v372
      %v745 = vmax.f32 %v743, %v373
      %v746 = vmax.f32 %v744, %v374
      %v747 = vmax.f32 %v745, %v375
      %v748 = vmax.f32 %v746, %v376
      %v749 = vmax.f32 %v747, %v748
      %v750 = vrot.slane %v749, 4
      %v751 = vmax.f32 %v749, %v750
      %v752 = vrot.slane %v751, 2
      %v753 = vmax.f32 %v751, %v752
      %v754 = vrot.slane %v753, 1
      %v755 = vmax.f32 %v753, %v754
      %v756 = vmax.f32 %v377, %v379
      %v757 = vmax.f32 %v378, %v380
      %v758 = vmax.f32 %v756, %v381
      %v759 = vmax.f32 %v757, %v382
      %v760 = vmax.f32 %v758, %v383
      %v761 = vmax.f32 %v759, %v384
      %v762 = vmax.f32 %v760, %v761
      %v763 = vrot.slane %v762, 4
      %v764 = vmax.f32 %v762, %v763
      %v765 = vrot.slane %v764, 2
      %v766 = vmax.f32 %v764, %v765
      %v767 = vrot.slane %v766, 1
      %v768 = vmax.f32 %v766, %v767
      %v769 = vsub.f32 %v369, %v755
      %v770 = vsub.f32 %v370, %v755
      %v771 = vsub.f32 %v371, %v755
      %v772 = vsub.f32 %v372, %v755
      %v773 = vsub.f32 %v373, %v755
      %v774 = vsub.f32 %v374, %v755
      %v775 = vsub.f32 %v375, %v755
      %v776 = vsub.f32 %v376, %v755
      %v777 = vsub.f32 %v377, %v768
      %v778 = vsub.f32 %v378, %v768
      %v779 = vsub.f32 %v379, %v768
      %v780 = vsub.f32 %v380, %v768
      %v781 = vsub.f32 %v381, %v768
      %v782 = vsub.f32 %v382, %v768
      %v783 = vsub.f32 %v383, %v768
      %v784 = vsub.f32 %v384, %v768
      %v785 = vmul.f32 %v769, 1.442695
      %v786 = vpow.pop %v785
      %v787 = vmul.f32 %v770, 1.442695
      %v788 = vpow.pop %v787
      %v789 = vmul.f32 %v771, 1.442695
      %v790 = vpow.pop %v789
      %v791 = vmul.f32 %v772, 1.442695
      %v792 = vpow.pop %v791
      %v793 = vmul.f32 %v773, 1.442695
      %v794 = vpow.pop %v793
      %v795 = vmul.f32 %v774, 1.442695
      %v796 = vpow.pop %v795
      %v797 = vmul.f32 %v775, 1.442695
      %v798 = vpow.pop %v797
      %v799 = vmul.f32 %v776, 1.442695
      %v800 = vpow.pop %v799
      %v801 = vmul.f32 %v777, 1.442695
      %v802 = vpow.pop %v801
      %v803 = vmul.f32 %v778, 1.442695
      %v804 = vpow.pop %v803
      %v805 = vmul.f32 %v779, 1.442695
      %v806 = vpow.pop %v805
      %v807 = vmul.f32 %v780, 1.442695
      %v808 = vpow.pop %v807
      %v809 = vmul.f32 %v781, 1.442695
      %v810 = vpow.pop %v809
      %v811 = vmul.f32 %v782, 1.442695
      %v812 = vpow.pop %v811
      %v813 = vmul.f32 %v783, 1.442695
      %v814 = vpow.pop %v813
      %v815 = vmul.f32 %v784, 1.442695
      %v816 = vpow.pop %v815
      %v817 = vadd.f32 %v786, %v788
      %v818 = vadd.f32 %v817, %v790
      %v819 = vadd.f32 %v818, %v792
      %v820 = vadd.f32 %v819, %v794
      %v821 = vadd.f32 %v820, %v796
      %v822 = vadd.f32 %v821, %v798
      %v823 = vadd.f32 %v822, %v800
      %v824 = vrot.slane %v823, 4
      %v825 = vadd.f32 %v823, %v824
      %v826 = vrot.slane %v825, 2
      %v827 = vadd.f32 %v825, %v826
      %v828 = vrot.slane %v827, 1
      %v829 = vadd.f32 %v827, %v828
      %v830 = vadd.f32 %v802, %v804
      %v831 = vadd.f32 %v830, %v806
      %v832 = vadd.f32 %v831, %v808
      %v833 = vadd.f32 %v832, %v810
      %v834 = vadd.f32 %v833, %v812
      %v835 = vadd.f32 %v834, %v814
      %v836 = vadd.f32 %v835, %v816
      %v837 = vrot.slane %v836, 4
      %v838 = vadd.f32 %v836, %v837
      %v839 = vrot.slane %v838, 2
      %v840 = vadd.f32 %v838, %v839
      %v841 = vrot.slane %v840, 1
      %v842 = vadd.f32 %v840, %v841
      %v843 = vrcp.pop %v829
      %v844 = vmul.f32 %v786, %v843
      %v845 = vmul.f32 %v788, %v843
      %v846 = vmul.f32 %v790, %v843
      %v847 = vmul.f32 %v792, %v843
      %v848 = vmul.f32 %v794, %v843
      %v849 = vmul.f32 %v796, %v843
      %v850 = vmul.f32 %v798, %v843
      %v851 = vmul.f32 %v800, %v843
      %v852 = vrcp.pop %v842
      %v853 = vmul.f32 %v802, %v852
      %v854 = vmul.f32 %v804, %v852
      %v855 = vmul.f32 %v806, %v852
      %v856 = vmul.f32 %v808, %v852
      %v857 = vmul.f32 %v810, %v852
      %v858 = vmul.f32 %v812, %v852
      %v859 = vmul.f32 %v814, %v852
      %v860 = vmul.f32 %v816, %v852
      %v861 = vld [vmem:[%s2] sm:$0xff]
      %v862 = vld [vmem:[%s2 + $0x8] sm:$0xff]
      %v863 = vld [vmem:[%s2 + $0x10] sm:$0xff]
      %v864 = vld [vmem:[%s2 + $0x18] sm:$0xff]
      %v865 = vld [vmem:[%s2 + $0x20] sm:$0xff]
      %v866 = vld [vmem:[%s2 + $0x28] sm:$0xff]
      %v867 = vld [vmem:[%s2 + $0x30] sm:$0xff]
      %v868 = vld [vmem:[%s2 + $0x38] sm:$0xff]
      %v869 = vld [vmem:[%s2 + $0x40] sm:$0xff]
      %v870 = vld [vmem:[%s2 + $0x48] sm:$0xff]
      %v871 = vld [vmem:[%s2 + $0x50] sm:$0xff]
      %v872 = vld [vmem:[%s2 + $0x58] sm:$0xff]
      %v873 = vld [vmem:[%s2 + $0x60] sm:$0xff]
      %v874 = vld [vmem:[%s2 + $0x68] sm:$0xff]
      %v875 = vld [vmem:[%s2 + $0x70] sm:$0xff]
      %v876 = vld [vmem:[%s2 + $0x78] sm:$0xff]
      %877 = vmatprep.subr.mxu0 0.0
      %878 = vmatpush1.msra.mxu0 %v876
      %879 = vmatprep.subr.mxu0 0.0
      %880 = vmatpush1.msra.mxu0 %v875
      %881 = vmatprep.subr.mxu0 0.0
      %882 = vmatpush1.msra.mxu0 %v874
      %883 = vmatprep.subr.mxu0 0.0
      %884 = vmatpush1.msra.mxu0 %v873
      %885 = vmatprep.subr.mxu0 0.0
      %886 = vmatpush1.msra.mxu0 %v872
      %887 = vmatprep.subr.mxu0 0.0
      %888 = vmatpush1.msra.mxu0 %v871
      %889 = vmatprep.subr.mxu0 0.0
      %890 = vmatpush1.msra.mxu0 %v870
      %891 = vmatprep.subr.mxu0 0.0
      %892 = vmatpush1.msra.mxu0 %v869
      %893 = vmatprep.subr.mxu0 0.0
      %894 = vmatpush1.msra.mxu0 %v868
      %895 = vmatprep.subr.mxu0 0.0
      %896 = vmatpush1.msra.mxu0 %v867
      %897 = vmatprep.subr.mxu0 0.0
      %898 = vmatpush1.msra.mxu0 %v866
      %899 = vmatprep.subr.mxu0 0.0
      %900 = vmatpush1.msra.mxu0 %v865
      %901 = vmatprep.subr.mxu0 0.0
      %902 = vmatpush1.msra.mxu0 %v864
      %903 = vmatprep.subr.mxu0 0.0
      %904 = vmatpush1.msra.mxu0 %v863
      %905 = vmatprep.subr.mxu0 0.0
      %906 = vmatpush1.msra.mxu0 %v862
      %907 = vmatprep.subr.mxu0 0.0
      %908 = vmatpush1.msra.mxu0 %v861
      %909 = vmatprep.subr.mxu0 0.0
      %910 = vmatpush2.msra.mxu0 0.0
      %911 = vmatprep.subr.mxu0 0.0
      %912 = vmatpush2.msra.mxu0 0.0
      %913 = vmatprep.subr.mxu0 0.0
      %914 = vmatpush2.msra.mxu0 0.0
      %915 = vmatprep.subr.mxu0 0.0
      %916 = vmatpush2.msra.mxu0 0.0
      %917 = vmatprep.subr.mxu0 0.0
      %918 = vmatpush2.msra.mxu0 0.0
      %919 = vmatprep.subr.mxu0 0.0
      %920 = vmatpush2.msra.mxu0 0.0
      %921 = vmatprep.subr.mxu0 0.0
      %922 = vmatpush2.msra.mxu0 0.0
      %923 = vmatprep.subr.mxu0 0.0
      %924 = vmatpush2.msra.mxu0 0.0
      %925 = vmatprep.subr.mxu0 0.0
      %926 = vmatpush2.msra.mxu0 0.0
      %927 = vmatprep.subr.mxu0 0.0
      %928 = vmatpush2.msra.mxu0 0.0
      %929 = vmatprep.subr.mxu0 0.0
      %930 = vmatpush2.msra.mxu0 0.0
      %931 = vmatprep.subr.mxu0 0.0
      %932 = vmatpush2.msra.mxu0 0.0
      %933 = vmatprep.subr.mxu0 0.0
      %934 = vmatpush2.msra.mxu0 0.0
      %935 = vmatprep.subr.mxu0 0.0
      %936 = vmatpush2.msra.mxu0 0.0
      %937 = vmatprep.subr.mxu0 0.0
      %938 = vmatpush2.msra.mxu0 0.0
      %939 = vmatprep.subr.mxu0 0.0
      %940 = vmatpush2.msra.mxu0 0.0
      %941 = vmatprep.mubr.f32.mxu0 0.0
      %942 = vmatmul.mubr.f32.gmra.mxu0 %v844
      %v943 = vpop.f32.mrf.mxu0
      %v944 = vadd.f32 0.0, %v943
      %v945 = vpop.f32.mrf.mxu0
      %946 = vmatprep.mubr.f32.mxu0 0.0
      %947 = vmatmul.mubr.f32.gmra.mxu0 %v845
      %v948 = vpop.f32.mrf.mxu0
      %v949 = vadd.f32 0.0, %v948
      %v950 = vpop.f32.mrf.mxu0
      %951 = vmatprep.mubr.f32.mxu0 0.0
      %952 = vmatmul.mubr.f32.gmra.mxu0 %v846
      %v953 = vpop.f32.mrf.mxu0
      %v954 = vadd.f32 0.0, %v953
      %v955 = vpop.f32.mrf.mxu0
      %956 = vmatprep.mubr.f32.mxu0 0.0
      %957 = vmatmul.mubr.f32.gmra.mxu0 %v847
      %v958 = vpop.f32.mrf.mxu0
      %v959 = vadd.f32 0.0, %v958
      %v960 = vpop.f32.mrf.mxu0
      %961 = vmatprep.mubr.f32.mxu0 0.0
      %962 = vmatmul.mubr.f32.gmra.mxu0 %v848
      %v963 = vpop.f32.mrf.mxu0
      %v964 = vadd.f32 0.0, %v963
      %v965 = vpop.f32.mrf.mxu0
      %966 = vmatprep.mubr.f32.mxu0 0.0
      %967 = vmatmul.mubr.f32.gmra.mxu0 %v849
      %v968 = vpop.f32.mrf.mxu0
      %v969 = vadd.f32 0.0, %v968
      %v970 = vpop.f32.mrf.mxu0
      %971 = vmatprep.mubr.f32.mxu0 0.0
      %972 = vmatmul.mubr.f32.gmra.mxu0 %v850
      %v973 = vpop.f32.mrf.mxu0
      %v974 = vadd.f32 0.0, %v973
      %v975 = vpop.f32.mrf.mxu0
      %976 = vmatprep.mubr.f32.mxu0 0.0
      %977 = vmatmul.mubr.f32.gmra.mxu0 %v851
      %v978 = vpop.f32.mrf.mxu0
      %v979 = vadd.f32 0.0, %v978
      %v980 = vpop.f32.mrf.mxu0
      %981 = vmatprep.mubr.f32.mxu0 0.0
      %982 = vmatmul.mubr.f32.gmra.mxu0 %v853
      %v983 = vpop.f32.mrf.mxu0
      %v984 = vadd.f32 0.0, %v983
      %v985 = vpop.f32.mrf.mxu0
      %986 = vmatprep.mubr.f32.mxu0 0.0
      %987 = vmatmul.mubr.f32.gmra.mxu0 %v854
      %v988 = vpop.f32.mrf.mxu0
      %v989 = vadd.f32 0.0, %v988
      %v990 = vpop.f32.mrf.mxu0
      %991 = vmatprep.mubr.f32.mxu0 0.0
      %992 = vmatmul.mubr.f32.gmra.mxu0 %v855
      %v993 = vpop.f32.mrf.mxu0
      %v994 = vadd.f32 0.0, %v993
      %v995 = vpop.f32.mrf.mxu0
      %996 = vmatprep.mubr.f32.mxu0 0.0
      %997 = vmatmul.mubr.f32.gmra.mxu0 %v856
      %v998 = vpop.f32.mrf.mxu0
      %v999 = vadd.f32 0.0, %v998
      %v1000 = vpop.f32.mrf.mxu0
      %1001 = vmatprep.mubr.f32.mxu0 0.0
      %1002 = vmatmul.mubr.f32.gmra.mxu0 %v857
      %v1003 = vpop.f32.mrf.mxu0
      %v1004 = vadd.f32 0.0, %v1003
      %v1005 = vpop.f32.mrf.mxu0
      %1006 = vmatprep.mubr.f32.mxu0 0.0
      %1007 = vmatmul.mubr.f32.gmra.mxu0 %v858
      %v1008 = vpop.f32.mrf.mxu0
      %v1009 = vadd.f32 0.0, %v1008
      %v1010 = vpop.f32.mrf.mxu0
      %1011 = vmatprep.mubr.f32.mxu0 0.0
      %1012 = vmatmul.mubr.f32.gmra.mxu0 %v859
      %v1013 = vpop.f32.mrf.mxu0
      %v1014 = vadd.f32 0.0, %v1013
      %v1015 = vpop.f32.mrf.mxu0
      %1016 = vmatprep.mubr.f32.mxu0 0.0
      %1017 = vmatmul.mubr.f32.gmra.mxu0 %v860
      %v1018 = vpop.f32.mrf.mxu0
      %v1019 = vadd.f32 0.0, %v1018
      %v1020 = vpop.f32.mrf.mxu0
      %1021 = vdwg.mxu0
      %v1022 = vmul.f32 %v726, %v944
      %v1023 = vmul.f32 %v727, %v949
      %v1024 = vmul.f32 %v728, %v954
      %v1025 = vmul.f32 %v729, %v959
      %v1026 = vmul.f32 %v730, %v964
      %v1027 = vmul.f32 %v731, %v969
      %v1028 = vmul.f32 %v732, %v974
      %v1029 = vmul.f32 %v733, %v979
      %v1030 = vmul.f32 %v735, %v984
      %v1031 = vmul.f32 %v736, %v989
      %v1032 = vmul.f32 %v737, %v994
      %v1033 = vmul.f32 %v738, %v999
      %v1034 = vmul.f32 %v739, %v1004
      %v1035 = vmul.f32 %v740, %v1009
      %v1036 = vmul.f32 %v741, %v1014
      %v1037 = vmul.f32 %v742, %v1019
      %v1038 = vadd.f32 %v1022, %v1023
      %v1039 = vadd.f32 %v1038, %v1024
      %v1040 = vadd.f32 %v1039, %v1025
      %v1041 = vadd.f32 %v1040, %v1026
      %v1042 = vadd.f32 %v1041, %v1027
      %v1043 = vadd.f32 %v1042, %v1028
      %v1044 = vadd.f32 %v1043, %v1029
      %v1045 = vrot.slane %v1044, 4
      %v1046 = vadd.f32 %v1044, %v1045
      %v1047 = vrot.slane %v1046, 2
      %v1048 = vadd.f32 %v1046, %v1047
      %v1049 = vrot.slane %v1048, 1
      %v1050 = vadd.f32 %v1048, %v1049
      %v1051 = vadd.f32 %v1030, %v1031
      %v1052 = vadd.f32 %v1051, %v1032
      %v1053 = vadd.f32 %v1052, %v1033
      %v1054 = vadd.f32 %v1053, %v1034
      %v1055 = vadd.f32 %v1054, %v1035
      %v1056 = vadd.f32 %v1055, %v1036
      %v1057 = vadd.f32 %v1056, %v1037
      %v1058 = vrot.slane %v1057, 4
      %v1059 = vadd.f32 %v1057, %v1058
      %v1060 = vrot.slane %v1059, 2
      %v1061 = vadd.f32 %v1059, %v1060
      %v1062 = vrot.slane %v1061, 1
      %v1063 = vadd.f32 %v1061, %v1062
      %v1064 = vxor.u32 %v1050, 2147483648
      %v1065 = vxor.u32 %v1063, 2147483648
      %v1066 = vmul.f32 %v1064, 1.442695
      %v1067 = vpow.pop %v1066
      %v1068 = vmul.f32 %v1065, 1.442695
      %v1069 = vpow.pop %v1068
      %v1070 = vadd.f32 %v1067, 1.0
      %v1071 = vadd.f32 %v1069, 1.0
      %v1072 = vrcp.pop %v1070
      %v1073 = vmul.f32 1.0, %v1072
      %v1074 = vrcp.pop %v1071
      %v1075 = vmul.f32 1.0, %v1074
      %v1076 = vlaneseq
      %v1077 = vshrl.u32 %v1076, 7
      %v1078 = vadd.s32 %v1077, 8
      %v1079 = vadd.s32 %v1077, 16
      %v1080 = vadd.s32 %v1077, 24
      %v1081 = vadd.s32 %v1077, 32
      %v1082 = vadd.s32 %v1077, 40
      %v1083 = vadd.s32 %v1077, 48
      %v1084 = vadd.s32 %v1077, 56
      %v1085 = vadd.s32 %v1077, 64
      %v1086 = vadd.s32 %v1077, 72
      %v1087 = vadd.s32 %v1077, 80
      %v1088 = vadd.s32 %v1077, 88
      %v1089 = vadd.s32 %v1077, 96
      %v1090 = vadd.s32 %v1077, 104
      %v1091 = vadd.s32 %v1077, 112
      %v1092 = vadd.s32 %v1077, 120
      %vm1093 = vcmp.lt.s32.totalorder %v1077, 0
      %v1094 = vsub.s32 0, %v1077
      %v1095 = vsel %vm1093, %v1094, %v1077
      %v1096 = vshrl.u32 %v1095, 6
      %v1097 = vand.u32 %v1095, 63
      %v1098 = vsub.s32 0, %v1097
      %v1099 = vsel %vm1093, %v1098, %v1097
      %vm1100 = vcmp.lt.s32.totalorder %v1078, 0
      %v1101 = vsub.s32 0, %v1078
      %v1102 = vsel %vm1100, %v1101, %v1078
      %v1103 = vshrl.u32 %v1102, 6
      %v1104 = vand.u32 %v1102, 63
      %v1105 = vsub.s32 0, %v1104
      %v1106 = vsel %vm1100, %v1105, %v1104
      %vm1107 = vcmp.lt.s32.totalorder %v1079, 0
      %v1108 = vsub.s32 0, %v1079
      %v1109 = vsel %vm1107, %v1108, %v1079
      %v1110 = vshrl.u32 %v1109, 6
      %v1111 = vand.u32 %v1109, 63
      %v1112 = vsub.s32 0, %v1111
      %v1113 = vsel %vm1107, %v1112, %v1111
      %vm1114 = vcmp.lt.s32.totalorder %v1080, 0
      %v1115 = vsub.s32 0, %v1080
      %v1116 = vsel %vm1114, %v1115, %v1080
      %v1117 = vshrl.u32 %v1116, 6
      %v1118 = vand.u32 %v1116, 63
      %v1119 = vsub.s32 0, %v1118
      %v1120 = vsel %vm1114, %v1119, %v1118
      %vm1121 = vcmp.lt.s32.totalorder %v1081, 0
      %v1122 = vsub.s32 0, %v1081
      %v1123 = vsel %vm1121, %v1122, %v1081
      %v1124 = vshrl.u32 %v1123, 6
      %v1125 = vand.u32 %v1123, 63
      %v1126 = vsub.s32 0, %v1125
      %v1127 = vsel %vm1121, %v1126, %v1125
      %vm1128 = vcmp.lt.s32.totalorder %v1082, 0
      %v1129 = vsub.s32 0, %v1082
      %v1130 = vsel %vm1128, %v1129, %v1082
      %v1131 = vshrl.u32 %v1130, 6
      %v1132 = vand.u32 %v1130, 63
      %v1133 = vsub.s32 0, %v1132
      %v1134 = vsel %vm1128, %v1133, %v1132
      %vm1135 = vcmp.lt.s32.totalorder %v1083, 0
      %v1136 = vsub.s32 0, %v1083
      %v1137 = vsel %vm1135, %v1136, %v1083
      %v1138 = vshrl.u32 %v1137, 6
      %v1139 = vand.u32 %v1137, 63
      %v1140 = vsub.s32 0, %v1139
      %v1141 = vsel %vm1135, %v1140, %v1139
      %vm1142 = vcmp.lt.s32.totalorder %v1084, 0
      %v1143 = vsub.s32 0, %v1084
      %v1144 = vsel %vm1142, %v1143, %v1084
      %v1145 = vshrl.u32 %v1144, 6
      %v1146 = vand.u32 %v1144, 63
      %v1147 = vsub.s32 0, %v1146
      %v1148 = vsel %vm1142, %v1147, %v1146
      %vm1149 = vcmp.lt.s32.totalorder %v1085, 0
      %v1150 = vsub.s32 0, %v1085
      %v1151 = vsel %vm1149, %v1150, %v1085
      %v1152 = vshrl.u32 %v1151, 6
      %v1153 = vand.u32 %v1151, 63
      %v1154 = vsub.s32 0, %v1153
      %v1155 = vsel %vm1149, %v1154, %v1153
      %vm1156 = vcmp.lt.s32.totalorder %v1086, 0
      %v1157 = vsub.s32 0, %v1086
      %v1158 = vsel %vm1156, %v1157, %v1086
      %v1159 = vshrl.u32 %v1158, 6
      %v1160 = vand.u32 %v1158, 63
      %v1161 = vsub.s32 0, %v1160
      %v1162 = vsel %vm1156, %v1161, %v1160
      %vm1163 = vcmp.lt.s32.totalorder %v1087, 0
      %v1164 = vsub.s32 0, %v1087
      %v1165 = vsel %vm1163, %v1164, %v1087
      %v1166 = vshrl.u32 %v1165, 6
      %v1167 = vand.u32 %v1165, 63
      %v1168 = vsub.s32 0, %v1167
      %v1169 = vsel %vm1163, %v1168, %v1167
      %vm1170 = vcmp.lt.s32.totalorder %v1088, 0
      %v1171 = vsub.s32 0, %v1088
      %v1172 = vsel %vm1170, %v1171, %v1088
      %v1173 = vshrl.u32 %v1172, 6
      %v1174 = vand.u32 %v1172, 63
      %v1175 = vsub.s32 0, %v1174
      %v1176 = vsel %vm1170, %v1175, %v1174
      %vm1177 = vcmp.lt.s32.totalorder %v1089, 0
      %v1178 = vsub.s32 0, %v1089
      %v1179 = vsel %vm1177, %v1178, %v1089
      %v1180 = vshrl.u32 %v1179, 6
      %v1181 = vand.u32 %v1179, 63
      %v1182 = vsub.s32 0, %v1181
      %v1183 = vsel %vm1177, %v1182, %v1181
      %vm1184 = vcmp.lt.s32.totalorder %v1090, 0
      %v1185 = vsub.s32 0, %v1090
      %v1186 = vsel %vm1184, %v1185, %v1090
      %v1187 = vshrl.u32 %v1186, 6
      %v1188 = vand.u32 %v1186, 63
      %v1189 = vsub.s32 0, %v1188
      %v1190 = vsel %vm1184, %v1189, %v1188
      %vm1191 = vcmp.lt.s32.totalorder %v1091, 0
      %v1192 = vsub.s32 0, %v1091
      %v1193 = vsel %vm1191, %v1192, %v1091
      %v1194 = vshrl.u32 %v1193, 6
      %v1195 = vand.u32 %v1193, 63
      %v1196 = vsub.s32 0, %v1195
      %v1197 = vsel %vm1191, %v1196, %v1195
      %vm1198 = vcmp.lt.s32.totalorder %v1092, 0
      %v1199 = vsub.s32 0, %v1092
      %v1200 = vsel %vm1198, %v1199, %v1092
      %v1201 = vshrl.u32 %v1200, 6
      %v1202 = vand.u32 %v1200, 63
      %v1203 = vsub.s32 0, %v1202
      %v1204 = vsel %vm1198, %v1203, %v1202
      %vm1205 = vcmp.ne.s32.totalorder %v1099, 0
      %vm1206 = vcmp.ne.s32.totalorder %v1106, 0
      %vm1207 = vcmp.ne.s32.totalorder %v1113, 0
      %vm1208 = vcmp.ne.s32.totalorder %v1120, 0
      %vm1209 = vcmp.ne.s32.totalorder %v1127, 0
      %vm1210 = vcmp.ne.s32.totalorder %v1134, 0
      %vm1211 = vcmp.ne.s32.totalorder %v1141, 0
      %vm1212 = vcmp.ne.s32.totalorder %v1148, 0
      %vm1213 = vcmp.ne.s32.totalorder %v1155, 0
      %vm1214 = vcmp.ne.s32.totalorder %v1162, 0
      %vm1215 = vcmp.ne.s32.totalorder %v1169, 0
      %vm1216 = vcmp.ne.s32.totalorder %v1176, 0
      %vm1217 = vcmp.ne.s32.totalorder %v1183, 0
      %vm1218 = vcmp.ne.s32.totalorder %v1190, 0
      %vm1219 = vcmp.ne.s32.totalorder %v1197, 0
      %vm1220 = vcmp.ne.s32.totalorder %v1204, 0
      %vm1221 = vcmp.lt.s32.totalorder %v1099, 0
      %vm1222 = vcmp.lt.s32.totalorder %v1106, 0
      %vm1223 = vcmp.lt.s32.totalorder %v1113, 0
      %vm1224 = vcmp.lt.s32.totalorder %v1120, 0
      %vm1225 = vcmp.lt.s32.totalorder %v1127, 0
      %vm1226 = vcmp.lt.s32.totalorder %v1134, 0
      %vm1227 = vcmp.lt.s32.totalorder %v1141, 0
      %vm1228 = vcmp.lt.s32.totalorder %v1148, 0
      %vm1229 = vcmp.lt.s32.totalorder %v1155, 0
      %vm1230 = vcmp.lt.s32.totalorder %v1162, 0
      %vm1231 = vcmp.lt.s32.totalorder %v1169, 0
      %vm1232 = vcmp.lt.s32.totalorder %v1176, 0
      %vm1233 = vcmp.lt.s32.totalorder %v1183, 0
      %vm1234 = vcmp.lt.s32.totalorder %v1190, 0
      %vm1235 = vcmp.lt.s32.totalorder %v1197, 0
      %vm1236 = vcmp.lt.s32.totalorder %v1204, 0
      %vm1237 = vmand %vm1221, %vm1205
      %vm1238 = vmand %vm1222, %vm1206
      %vm1239 = vmand %vm1223, %vm1207
      %vm1240 = vmand %vm1224, %vm1208
      %vm1241 = vmand %vm1225, %vm1209
      %vm1242 = vmand %vm1226, %vm1210
      %vm1243 = vmand %vm1227, %vm1211
      %vm1244 = vmand %vm1228, %vm1212
      %vm1245 = vmand %vm1229, %vm1213
      %vm1246 = vmand %vm1230, %vm1214
      %vm1247 = vmand %vm1231, %vm1215
      %vm1248 = vmand %vm1232, %vm1216
      %vm1249 = vmand %vm1233, %vm1217
      %vm1250 = vmand %vm1234, %vm1218
      %vm1251 = vmand %vm1235, %vm1219
      %vm1252 = vmand %vm1236, %vm1220
      %v1253 = vadd.s32 %v1099, 64
      %v1254 = vadd.s32 %v1106, 64
      %v1255 = vadd.s32 %v1113, 64
      %v1256 = vadd.s32 %v1120, 64
      %v1257 = vadd.s32 %v1127, 64
      %v1258 = vadd.s32 %v1134, 64
      %v1259 = vadd.s32 %v1141, 64
      %v1260 = vadd.s32 %v1148, 64
      %v1261 = vadd.s32 %v1155, 64
      %v1262 = vadd.s32 %v1162, 64
      %v1263 = vadd.s32 %v1169, 64
      %v1264 = vadd.s32 %v1176, 64
      %v1265 = vadd.s32 %v1183, 64
      %v1266 = vadd.s32 %v1190, 64
      %v1267 = vadd.s32 %v1197, 64
      %v1268 = vadd.s32 %v1204, 64
      %v1269 = vsel %vm1237, %v1253, %v1099
      %v1270 = vsel %vm1238, %v1254, %v1106
      %v1271 = vsel %vm1239, %v1255, %v1113
      %v1272 = vsel %vm1240, %v1256, %v1120
      %v1273 = vsel %vm1241, %v1257, %v1127
      %v1274 = vsel %vm1242, %v1258, %v1134
      %v1275 = vsel %vm1243, %v1259, %v1141
      %v1276 = vsel %vm1244, %v1260, %v1148
      %v1277 = vsel %vm1245, %v1261, %v1155
      %v1278 = vsel %vm1246, %v1262, %v1162
      %v1279 = vsel %vm1247, %v1263, %v1169
      %v1280 = vsel %vm1248, %v1264, %v1176
      %v1281 = vsel %vm1249, %v1265, %v1183
      %v1282 = vsel %vm1250, %v1266, %v1190
      %v1283 = vsel %vm1251, %v1267, %v1197
      %v1284 = vsel %vm1252, %v1268, %v1204
      %vm1285 = vcmp.lt.s32.totalorder %v1077, 0
      %v1286 = vsub.s32 0, %v1077
      %v1287 = vsel %vm1285, %v1286, %v1077
      %v1288 = vshrl.u32 %v1287, 3
      %v1289 = vand.u32 %v1287, 7
      %v1290 = vsub.s32 0, %v1289
      %v1291 = vsel %vm1285, %v1290, %v1289
      %vm1292 = vcmp.lt.s32.totalorder %v1078, 0
      %v1293 = vsub.s32 0, %v1078
      %v1294 = vsel %vm1292, %v1293, %v1078
      %v1295 = vshrl.u32 %v1294, 3
      %v1296 = vand.u32 %v1294, 7
      %v1297 = vsub.s32 0, %v1296
      %v1298 = vsel %vm1292, %v1297, %v1296
      %vm1299 = vcmp.lt.s32.totalorder %v1079, 0
      %v1300 = vsub.s32 0, %v1079
      %v1301 = vsel %vm1299, %v1300, %v1079
      %v1302 = vshrl.u32 %v1301, 3
      %v1303 = vand.u32 %v1301, 7
      %v1304 = vsub.s32 0, %v1303
      %v1305 = vsel %vm1299, %v1304, %v1303
      %vm1306 = vcmp.lt.s32.totalorder %v1080, 0
      %v1307 = vsub.s32 0, %v1080
      %v1308 = vsel %vm1306, %v1307, %v1080
      %v1309 = vshrl.u32 %v1308, 3
      %v1310 = vand.u32 %v1308, 7
      %v1311 = vsub.s32 0, %v1310
      %v1312 = vsel %vm1306, %v1311, %v1310
      %vm1313 = vcmp.lt.s32.totalorder %v1081, 0
      %v1314 = vsub.s32 0, %v1081
      %v1315 = vsel %vm1313, %v1314, %v1081
      %v1316 = vshrl.u32 %v1315, 3
      %v1317 = vand.u32 %v1315, 7
      %v1318 = vsub.s32 0, %v1317
      %v1319 = vsel %vm1313, %v1318, %v1317
      %vm1320 = vcmp.lt.s32.totalorder %v1082, 0
      %v1321 = vsub.s32 0, %v1082
      %v1322 = vsel %vm1320, %v1321, %v1082
      %v1323 = vshrl.u32 %v1322, 3
      %v1324 = vand.u32 %v1322, 7
      %v1325 = vsub.s32 0, %v1324
      %v1326 = vsel %vm1320, %v1325, %v1324
      %vm1327 = vcmp.lt.s32.totalorder %v1083, 0
      %v1328 = vsub.s32 0, %v1083
      %v1329 = vsel %vm1327, %v1328, %v1083
      %v1330 = vshrl.u32 %v1329, 3
      %v1331 = vand.u32 %v1329, 7
      %v1332 = vsub.s32 0, %v1331
      %v1333 = vsel %vm1327, %v1332, %v1331
      %vm1334 = vcmp.lt.s32.totalorder %v1084, 0
      %v1335 = vsub.s32 0, %v1084
      %v1336 = vsel %vm1334, %v1335, %v1084
      %v1337 = vshrl.u32 %v1336, 3
      %v1338 = vand.u32 %v1336, 7
      %v1339 = vsub.s32 0, %v1338
      %v1340 = vsel %vm1334, %v1339, %v1338
      %vm1341 = vcmp.lt.s32.totalorder %v1085, 0
      %v1342 = vsub.s32 0, %v1085
      %v1343 = vsel %vm1341, %v1342, %v1085
      %v1344 = vshrl.u32 %v1343, 3
      %v1345 = vand.u32 %v1343, 7
      %v1346 = vsub.s32 0, %v1345
      %v1347 = vsel %vm1341, %v1346, %v1345
      %vm1348 = vcmp.lt.s32.totalorder %v1086, 0
      %v1349 = vsub.s32 0, %v1086
      %v1350 = vsel %vm1348, %v1349, %v1086
      %v1351 = vshrl.u32 %v1350, 3
      %v1352 = vand.u32 %v1350, 7
      %v1353 = vsub.s32 0, %v1352
      %v1354 = vsel %vm1348, %v1353, %v1352
      %vm1355 = vcmp.lt.s32.totalorder %v1087, 0
      %v1356 = vsub.s32 0, %v1087
      %v1357 = vsel %vm1355, %v1356, %v1087
      %v1358 = vshrl.u32 %v1357, 3
      %v1359 = vand.u32 %v1357, 7
      %v1360 = vsub.s32 0, %v1359
      %v1361 = vsel %vm1355, %v1360, %v1359
      %vm1362 = vcmp.lt.s32.totalorder %v1088, 0
      %v1363 = vsub.s32 0, %v1088
      %v1364 = vsel %vm1362, %v1363, %v1088
      %v1365 = vshrl.u32 %v1364, 3
      %v1366 = vand.u32 %v1364, 7
      %v1367 = vsub.s32 0, %v1366
      %v1368 = vsel %vm1362, %v1367, %v1366
      %vm1369 = vcmp.lt.s32.totalorder %v1089, 0
      %v1370 = vsub.s32 0, %v1089
      %v1371 = vsel %vm1369, %v1370, %v1089
      %v1372 = vshrl.u32 %v1371, 3
      %v1373 = vand.u32 %v1371, 7
      %v1374 = vsub.s32 0, %v1373
      %v1375 = vsel %vm1369, %v1374, %v1373
      %vm1376 = vcmp.lt.s32.totalorder %v1090, 0
      %v1377 = vsub.s32 0, %v1090
      %v1378 = vsel %vm1376, %v1377, %v1090
      %v1379 = vshrl.u32 %v1378, 3
      %v1380 = vand.u32 %v1378, 7
      %v1381 = vsub.s32 0, %v1380
      %v1382 = vsel %vm1376, %v1381, %v1380
      %vm1383 = vcmp.lt.s32.totalorder %v1091, 0
      %v1384 = vsub.s32 0, %v1091
      %v1385 = vsel %vm1383, %v1384, %v1091
      %v1386 = vshrl.u32 %v1385, 3
      %v1387 = vand.u32 %v1385, 7
      %v1388 = vsub.s32 0, %v1387
      %v1389 = vsel %vm1383, %v1388, %v1387
      %vm1390 = vcmp.lt.s32.totalorder %v1092, 0
      %v1391 = vsub.s32 0, %v1092
      %v1392 = vsel %vm1390, %v1391, %v1092
      %v1393 = vshrl.u32 %v1392, 3
      %v1394 = vand.u32 %v1392, 7
      %v1395 = vsub.s32 0, %v1394
      %v1396 = vsel %vm1390, %v1395, %v1394
      %vm1397 = vcmp.ne.s32.totalorder %v1291, 0
      %vm1398 = vcmp.ne.s32.totalorder %v1298, 0
      %vm1399 = vcmp.ne.s32.totalorder %v1305, 0
      %vm1400 = vcmp.ne.s32.totalorder %v1312, 0
      %vm1401 = vcmp.ne.s32.totalorder %v1319, 0
      %vm1402 = vcmp.ne.s32.totalorder %v1326, 0
      %vm1403 = vcmp.ne.s32.totalorder %v1333, 0
      %vm1404 = vcmp.ne.s32.totalorder %v1340, 0
      %vm1405 = vcmp.ne.s32.totalorder %v1347, 0
      %vm1406 = vcmp.ne.s32.totalorder %v1354, 0
      %vm1407 = vcmp.ne.s32.totalorder %v1361, 0
      %vm1408 = vcmp.ne.s32.totalorder %v1368, 0
      %vm1409 = vcmp.ne.s32.totalorder %v1375, 0
      %vm1410 = vcmp.ne.s32.totalorder %v1382, 0
      %vm1411 = vcmp.ne.s32.totalorder %v1389, 0
      %vm1412 = vcmp.ne.s32.totalorder %v1396, 0
      %vm1413 = vcmp.lt.s32.totalorder %v1291, 0
      %vm1414 = vcmp.lt.s32.totalorder %v1298, 0
      %vm1415 = vcmp.lt.s32.totalorder %v1305, 0
      %vm1416 = vcmp.lt.s32.totalorder %v1312, 0
      %vm1417 = vcmp.lt.s32.totalorder %v1319, 0
      %vm1418 = vcmp.lt.s32.totalorder %v1326, 0
      %vm1419 = vcmp.lt.s32.totalorder %v1333, 0
      %vm1420 = vcmp.lt.s32.totalorder %v1340, 0
      %vm1421 = vcmp.lt.s32.totalorder %v1347, 0
      %vm1422 = vcmp.lt.s32.totalorder %v1354, 0
      %vm1423 = vcmp.lt.s32.totalorder %v1361, 0
      %vm1424 = vcmp.lt.s32.totalorder %v1368, 0
      %vm1425 = vcmp.lt.s32.totalorder %v1375, 0
      %vm1426 = vcmp.lt.s32.totalorder %v1382, 0
      %vm1427 = vcmp.lt.s32.totalorder %v1389, 0
      %vm1428 = vcmp.lt.s32.totalorder %v1396, 0
      %vm1429 = vmand %vm1413, %vm1397
      %vm1430 = vmand %vm1414, %vm1398
      %vm1431 = vmand %vm1415, %vm1399
      %vm1432 = vmand %vm1416, %vm1400
      %vm1433 = vmand %vm1417, %vm1401
      %vm1434 = vmand %vm1418, %vm1402
      %vm1435 = vmand %vm1419, %vm1403
      %vm1436 = vmand %vm1420, %vm1404
      %vm1437 = vmand %vm1421, %vm1405
      %vm1438 = vmand %vm1422, %vm1406
      %vm1439 = vmand %vm1423, %vm1407
      %vm1440 = vmand %vm1424, %vm1408
      %vm1441 = vmand %vm1425, %vm1409
      %vm1442 = vmand %vm1426, %vm1410
      %vm1443 = vmand %vm1427, %vm1411
      %vm1444 = vmand %vm1428, %vm1412
      %v1445 = vadd.s32 %v1291, 8
      %v1446 = vadd.s32 %v1298, 8
      %v1447 = vadd.s32 %v1305, 8
      %v1448 = vadd.s32 %v1312, 8
      %v1449 = vadd.s32 %v1319, 8
      %v1450 = vadd.s32 %v1326, 8
      %v1451 = vadd.s32 %v1333, 8
      %v1452 = vadd.s32 %v1340, 8
      %v1453 = vadd.s32 %v1347, 8
      %v1454 = vadd.s32 %v1354, 8
      %v1455 = vadd.s32 %v1361, 8
      %v1456 = vadd.s32 %v1368, 8
      %v1457 = vadd.s32 %v1375, 8
      %v1458 = vadd.s32 %v1382, 8
      %v1459 = vadd.s32 %v1389, 8
      %v1460 = vadd.s32 %v1396, 8
      %v1461 = vsel %vm1429, %v1445, %v1291
      %v1462 = vsel %vm1430, %v1446, %v1298
      %v1463 = vsel %vm1431, %v1447, %v1305
      %v1464 = vsel %vm1432, %v1448, %v1312
      %v1465 = vsel %vm1433, %v1449, %v1319
      %v1466 = vsel %vm1434, %v1450, %v1326
      %v1467 = vsel %vm1435, %v1451, %v1333
      %v1468 = vsel %vm1436, %v1452, %v1340
      %v1469 = vsel %vm1437, %v1453, %v1347
      %v1470 = vsel %vm1438, %v1454, %v1354
      %v1471 = vsel %vm1439, %v1455, %v1361
      %v1472 = vsel %vm1440, %v1456, %v1368
      %v1473 = vsel %vm1441, %v1457, %v1375
      %v1474 = vsel %vm1442, %v1458, %v1382
      %v1475 = vsel %vm1443, %v1459, %v1389
      %v1476 = vsel %vm1444, %v1460, %v1396
      %vm1477 = vcmp.ge.s32.totalorder %v1269, 8
      %vm1478 = vcmp.ge.s32.totalorder %v1270, 8
      %vm1479 = vcmp.ge.s32.totalorder %v1271, 8
      %vm1480 = vcmp.ge.s32.totalorder %v1272, 8
      %vm1481 = vcmp.ge.s32.totalorder %v1273, 8
      %vm1482 = vcmp.ge.s32.totalorder %v1274, 8
      %vm1483 = vcmp.ge.s32.totalorder %v1275, 8
      %vm1484 = vcmp.ge.s32.totalorder %v1276, 8
      %vm1485 = vcmp.ge.s32.totalorder %v1277, 8
      %vm1486 = vcmp.ge.s32.totalorder %v1278, 8
      %vm1487 = vcmp.ge.s32.totalorder %v1279, 8
      %vm1488 = vcmp.ge.s32.totalorder %v1280, 8
      %vm1489 = vcmp.ge.s32.totalorder %v1281, 8
      %vm1490 = vcmp.ge.s32.totalorder %v1282, 8
      %vm1491 = vcmp.ge.s32.totalorder %v1283, 8
      %vm1492 = vcmp.ge.s32.totalorder %v1284, 8
      %vm1493 = vcmp.lt.s32.totalorder %v1269, 56
      %vm1494 = vcmp.lt.s32.totalorder %v1270, 56
      %vm1495 = vcmp.lt.s32.totalorder %v1271, 56
      %vm1496 = vcmp.lt.s32.totalorder %v1272, 56
      %vm1497 = vcmp.lt.s32.totalorder %v1273, 56
      %vm1498 = vcmp.lt.s32.totalorder %v1274, 56
      %vm1499 = vcmp.lt.s32.totalorder %v1275, 56
      %vm1500 = vcmp.lt.s32.totalorder %v1276, 56
      %vm1501 = vcmp.lt.s32.totalorder %v1277, 56
      %vm1502 = vcmp.lt.s32.totalorder %v1278, 56
      %vm1503 = vcmp.lt.s32.totalorder %v1279, 56
      %vm1504 = vcmp.lt.s32.totalorder %v1280, 56
      %vm1505 = vcmp.lt.s32.totalorder %v1281, 56
      %vm1506 = vcmp.lt.s32.totalorder %v1282, 56
      %vm1507 = vcmp.lt.s32.totalorder %v1283, 56
      %vm1508 = vcmp.lt.s32.totalorder %v1284, 56
      %vm1509 = vcmp.ge.s32.totalorder %v1461, 1
      %vm1510 = vcmp.ge.s32.totalorder %v1462, 1
      %vm1511 = vcmp.ge.s32.totalorder %v1463, 1
      %vm1512 = vcmp.ge.s32.totalorder %v1464, 1
      %vm1513 = vcmp.ge.s32.totalorder %v1465, 1
      %vm1514 = vcmp.ge.s32.totalorder %v1466, 1
      %vm1515 = vcmp.ge.s32.totalorder %v1467, 1
      %vm1516 = vcmp.ge.s32.totalorder %v1468, 1
      %vm1517 = vcmp.ge.s32.totalorder %v1469, 1
      %vm1518 = vcmp.ge.s32.totalorder %v1470, 1
      %vm1519 = vcmp.ge.s32.totalorder %v1471, 1
      %vm1520 = vcmp.ge.s32.totalorder %v1472, 1
      %vm1521 = vcmp.ge.s32.totalorder %v1473, 1
      %vm1522 = vcmp.ge.s32.totalorder %v1474, 1
      %vm1523 = vcmp.ge.s32.totalorder %v1475, 1
      %vm1524 = vcmp.ge.s32.totalorder %v1476, 1
      %vm1525 = vcmp.lt.s32.totalorder %v1461, 7
      %vm1526 = vcmp.lt.s32.totalorder %v1462, 7
      %vm1527 = vcmp.lt.s32.totalorder %v1463, 7
      %vm1528 = vcmp.lt.s32.totalorder %v1464, 7
      %vm1529 = vcmp.lt.s32.totalorder %v1465, 7
      %vm1530 = vcmp.lt.s32.totalorder %v1466, 7
      %vm1531 = vcmp.lt.s32.totalorder %v1467, 7
      %vm1532 = vcmp.lt.s32.totalorder %v1468, 7
      %vm1533 = vcmp.lt.s32.totalorder %v1469, 7
      %vm1534 = vcmp.lt.s32.totalorder %v1470, 7
      %vm1535 = vcmp.lt.s32.totalorder %v1471, 7
      %vm1536 = vcmp.lt.s32.totalorder %v1472, 7
      %vm1537 = vcmp.lt.s32.totalorder %v1473, 7
      %vm1538 = vcmp.lt.s32.totalorder %v1474, 7
      %vm1539 = vcmp.lt.s32.totalorder %v1475, 7
      %vm1540 = vcmp.lt.s32.totalorder %v1476, 7
      %v1541 = vld [vmem:[%s4] sm:$0xff]
      %v1542 = vld [vmem:[%s4 + $0x8] sm:$0x1]
      %v1543 = vld [vmem:[%s5] sm:$0x1]
      %v1545 = vlaneseq
      %v1546 = vshrl.u32 %v1545, 7
      %v1547 = vsub.s32 0, %v1546
      %v1548 = vrot.slane %v1543, %v1547
      %vm1550 = vmand %vm1477, %vm1509
      %vm1551 = vmand %vm1478, %vm1510
      %vm1552 = vmand %vm1479, %vm1511
      %vm1553 = vmand %vm1480, %vm1512
      %vm1554 = vmand %vm1481, %vm1513
      %vm1555 = vmand %vm1482, %vm1514
      %vm1556 = vmand %vm1483, %vm1515
      %vm1557 = vmand %vm1484, %vm1516
      %vm1558 = vmand %vm1485, %vm1517
      %vm1559 = vmand %vm1486, %vm1518
      %vm1560 = vmand %vm1487, %vm1519
      %vm1561 = vmand %vm1488, %vm1520
      %vm1562 = vmand %vm1489, %vm1521
      %vm1563 = vmand %vm1490, %vm1522
      %vm1564 = vmand %vm1491, %vm1523
      %vm1565 = vmand %vm1492, %vm1524
      %v1566 = vrot.slane %v609, 7
      %v1567 = vrot.slane %v610, 7
      %v1568 = vrot.slane %v611, 7
      %v1569 = vrot.slane %v612, 7
      %v1570 = vrot.slane %v613, 7
      %v1571 = vrot.slane %v614, 7
      %v1572 = vrot.slane %v615, 7
      %v1573 = vrot.slane %v616, 7
      %v1574 = vrot.slane %v617, 7
      %v1575 = vrot.slane %v618, 7
      %v1576 = vrot.slane %v619, 7
      %v1577 = vrot.slane %v620, 7
      %v1578 = vrot.slane %v621, 7
      %v1579 = vrot.slane %v622, 7
      %v1580 = vrot.slane %v623, 7
      %v1581 = vrot.slane %v624, 7
      %vm1582 = vcmp.lt.s32.totalorder %v1077, 1
      %v1583 = vsel %vm1582, %v1580, %v1581
      %v1584 = vsel %vm1582, %v1579, %v1580
      %v1585 = vsel %vm1582, %v1578, %v1579
      %v1586 = vsel %vm1582, %v1577, %v1578
      %v1587 = vsel %vm1582, %v1576, %v1577
      %v1588 = vsel %vm1582, %v1575, %v1576
      %v1589 = vsel %vm1582, %v1574, %v1575
      %v1590 = vsel %vm1582, %v1573, %v1574
      %v1591 = vsel %vm1582, %v1572, %v1573
      %v1592 = vsel %vm1582, %v1571, %v1572
      %v1593 = vsel %vm1582, %v1570, %v1571
      %v1594 = vsel %vm1582, %v1569, %v1570
      %v1595 = vsel %vm1582, %v1568, %v1569
      %v1596 = vsel %vm1582, %v1567, %v1568
      %v1597 = vsel %vm1582, %v1566, %v1567
      %v1598 = vsel %vm1582, %v1581, %v1566
      %v1599 = vsel %vm1550, 1, 0
      %v1600 = vsel %vm1551, 1, 0
      %v1601 = vsel %vm1552, 1, 0
      %v1602 = vsel %vm1553, 1, 0
      %v1603 = vsel %vm1554, 1, 0
      %v1604 = vsel %vm1555, 1, 0
      %v1605 = vsel %vm1556, 1, 0
      %v1606 = vsel %vm1557, 1, 0
      %v1607 = vsel %vm1558, 1, 0
      %v1608 = vsel %vm1559, 1, 0
      %v1609 = vsel %vm1560, 1, 0
      %v1610 = vsel %vm1561, 1, 0
      %v1611 = vsel %vm1562, 1, 0
      %v1612 = vsel %vm1563, 1, 0
      %v1613 = vsel %vm1564, 1, 0
      %v1614 = vsel %vm1565, 1, 0
      %vm1615 = vcmp.eq.s32.totalorder %v1599, 1
      %vm1616 = vcmp.eq.s32.totalorder %v1600, 1
      %vm1617 = vcmp.eq.s32.totalorder %v1601, 1
      %vm1618 = vcmp.eq.s32.totalorder %v1602, 1
      %vm1619 = vcmp.eq.s32.totalorder %v1603, 1
      %vm1620 = vcmp.eq.s32.totalorder %v1604, 1
      %vm1621 = vcmp.eq.s32.totalorder %v1605, 1
      %vm1622 = vcmp.eq.s32.totalorder %v1606, 1
      %vm1623 = vcmp.eq.s32.totalorder %v1607, 1
      %vm1624 = vcmp.eq.s32.totalorder %v1608, 1
      %vm1625 = vcmp.eq.s32.totalorder %v1609, 1
      %vm1626 = vcmp.eq.s32.totalorder %v1610, 1
      %vm1627 = vcmp.eq.s32.totalorder %v1611, 1
      %vm1628 = vcmp.eq.s32.totalorder %v1612, 1
      %vm1629 = vcmp.eq.s32.totalorder %v1613, 1
      %vm1630 = vcmp.eq.s32.totalorder %v1614, 1
      %v1631 = vsel %vm1615, %v1583, 0.0
      %v1632 = vsel %vm1616, %v1598, 0.0
      %v1633 = vsel %vm1617, %v1597, 0.0
      %v1634 = vsel %vm1618, %v1596, 0.0
      %v1635 = vsel %vm1619, %v1595, 0.0
      %v1636 = vsel %vm1620, %v1594, 0.0
      %v1637 = vsel %vm1621, %v1593, 0.0
      %v1638 = vsel %vm1622, %v1592, 0.0
      %v1639 = vsel %vm1623, %v1591, 0.0
      %v1640 = vsel %vm1624, %v1590, 0.0
      %v1641 = vsel %vm1625, %v1589, 0.0
      %v1642 = vsel %vm1626, %v1588, 0.0
      %v1643 = vsel %vm1627, %v1587, 0.0
      %v1644 = vsel %vm1628, %v1586, 0.0
      %v1645 = vsel %vm1629, %v1585, 0.0
      %v1646 = vsel %vm1630, %v1584, 0.0
      %v1647 = vlaneseq
      %v1648 = vshrl.u32 %v1647, 7
      %v1649 = vsub.s32 0, %v1648
      %v1650 = vrot.slane %v1541, %v1649
      %v1651 = vmul.f32 %v1631, %v1650
      %v1652 = vmul.f32 %v1632, %v1650
      %v1653 = vmul.f32 %v1633, %v1650
      %v1654 = vmul.f32 %v1634, %v1650
      %v1655 = vmul.f32 %v1635, %v1650
      %v1656 = vmul.f32 %v1636, %v1650
      %v1657 = vmul.f32 %v1637, %v1650
      %v1658 = vmul.f32 %v1638, %v1650
      %v1659 = vmul.f32 %v1639, %v1650
      %v1660 = vmul.f32 %v1640, %v1650
      %v1661 = vmul.f32 %v1641, %v1650
      %v1662 = vmul.f32 %v1642, %v1650
      %v1663 = vmul.f32 %v1643, %v1650
      %v1664 = vmul.f32 %v1644, %v1650
      %v1665 = vmul.f32 %v1645, %v1650
      %v1666 = vmul.f32 %v1646, %v1650
      %v1667 = vadd.f32 %v1548, %v1651
      %v1668 = vadd.f32 %v1548, %v1652
      %v1669 = vadd.f32 %v1548, %v1653
      %v1670 = vadd.f32 %v1548, %v1654
      %v1671 = vadd.f32 %v1548, %v1655
      %v1672 = vadd.f32 %v1548, %v1656
      %v1673 = vadd.f32 %v1548, %v1657
      %v1674 = vadd.f32 %v1548, %v1658
      %v1675 = vadd.f32 %v1548, %v1659
      %v1676 = vadd.f32 %v1548, %v1660
      %v1677 = vadd.f32 %v1548, %v1661
      %v1678 = vadd.f32 %v1548, %v1662
      %v1679 = vadd.f32 %v1548, %v1663
      %v1680 = vadd.f32 %v1548, %v1664
      %v1681 = vadd.f32 %v1548, %v1665
      %v1682 = vadd.f32 %v1548, %v1666
      %v1683 = vsel %vm1477, 1, 0
      %v1684 = vsel %vm1478, 1, 0
      %v1685 = vsel %vm1479, 1, 0
      %v1686 = vsel %vm1480, 1, 0
      %v1687 = vsel %vm1481, 1, 0
      %v1688 = vsel %vm1482, 1, 0
      %v1689 = vsel %vm1483, 1, 0
      %v1690 = vsel %vm1484, 1, 0
      %v1691 = vsel %vm1485, 1, 0
      %v1692 = vsel %vm1486, 1, 0
      %v1693 = vsel %vm1487, 1, 0
      %v1694 = vsel %vm1488, 1, 0
      %v1695 = vsel %vm1489, 1, 0
      %v1696 = vsel %vm1490, 1, 0
      %v1697 = vsel %vm1491, 1, 0
      %v1698 = vsel %vm1492, 1, 0
      %vm1699 = vcmp.eq.s32.totalorder %v1683, 1
      %vm1700 = vcmp.eq.s32.totalorder %v1684, 1
      %vm1701 = vcmp.eq.s32.totalorder %v1685, 1
      %vm1702 = vcmp.eq.s32.totalorder %v1686, 1
      %vm1703 = vcmp.eq.s32.totalorder %v1687, 1
      %vm1704 = vcmp.eq.s32.totalorder %v1688, 1
      %vm1705 = vcmp.eq.s32.totalorder %v1689, 1
      %vm1706 = vcmp.eq.s32.totalorder %v1690, 1
      %vm1707 = vcmp.eq.s32.totalorder %v1691, 1
      %vm1708 = vcmp.eq.s32.totalorder %v1692, 1
      %vm1709 = vcmp.eq.s32.totalorder %v1693, 1
      %vm1710 = vcmp.eq.s32.totalorder %v1694, 1
      %vm1711 = vcmp.eq.s32.totalorder %v1695, 1
      %vm1712 = vcmp.eq.s32.totalorder %v1696, 1
      %vm1713 = vcmp.eq.s32.totalorder %v1697, 1
      %vm1714 = vcmp.eq.s32.totalorder %v1698, 1
      %v1715 = vsel %vm1699, %v624, 0.0
      %v1716 = vsel %vm1700, %v609, 0.0
      %v1717 = vsel %vm1701, %v610, 0.0
      %v1718 = vsel %vm1702, %v611, 0.0
      %v1719 = vsel %vm1703, %v612, 0.0
      %v1720 = vsel %vm1704, %v613, 0.0
      %v1721 = vsel %vm1705, %v614, 0.0
      %v1722 = vsel %vm1706, %v615, 0.0
      %v1723 = vsel %vm1707, %v616, 0.0
      %v1724 = vsel %vm1708, %v617, 0.0
      %v1725 = vsel %vm1709, %v618, 0.0
      %v1726 = vsel %vm1710, %v619, 0.0
      %v1727 = vsel %vm1711, %v620, 0.0
      %v1728 = vsel %vm1712, %v621, 0.0
      %v1729 = vsel %vm1713, %v622, 0.0
      %v1730 = vsel %vm1714, %v623, 0.0
      %v1731 = vlaneseq
      %v1732 = vshrl.u32 %v1731, 7
      %v1733 = vsub.s32 1, %v1732
      %v1734 = vrot.slane %v1541, %v1733
      %v1735 = vmul.f32 %v1715, %v1734
      %v1736 = vmul.f32 %v1716, %v1734
      %v1737 = vmul.f32 %v1717, %v1734
      %v1738 = vmul.f32 %v1718, %v1734
      %v1739 = vmul.f32 %v1719, %v1734
      %v1740 = vmul.f32 %v1720, %v1734
      %v1741 = vmul.f32 %v1721, %v1734
      %v1742 = vmul.f32 %v1722, %v1734
      %v1743 = vmul.f32 %v1723, %v1734
      %v1744 = vmul.f32 %v1724, %v1734
      %v1745 = vmul.f32 %v1725, %v1734
      %v1746 = vmul.f32 %v1726, %v1734
      %v1747 = vmul.f32 %v1727, %v1734
      %v1748 = vmul.f32 %v1728, %v1734
      %v1749 = vmul.f32 %v1729, %v1734
      %v1750 = vmul.f32 %v1730, %v1734
      %v1751 = vadd.f32 %v1667, %v1735
      %v1752 = vadd.f32 %v1668, %v1736
      %v1753 = vadd.f32 %v1669, %v1737
      %v1754 = vadd.f32 %v1670, %v1738
      %v1755 = vadd.f32 %v1671, %v1739
      %v1756 = vadd.f32 %v1672, %v1740
      %v1757 = vadd.f32 %v1673, %v1741
      %v1758 = vadd.f32 %v1674, %v1742
      %v1759 = vadd.f32 %v1675, %v1743
      %v1760 = vadd.f32 %v1676, %v1744
      %v1761 = vadd.f32 %v1677, %v1745
      %v1762 = vadd.f32 %v1678, %v1746
      %v1763 = vadd.f32 %v1679, %v1747
      %v1764 = vadd.f32 %v1680, %v1748
      %v1765 = vadd.f32 %v1681, %v1749
      %v1766 = vadd.f32 %v1682, %v1750
      %vm1767 = vmand %vm1477, %vm1525
      %vm1768 = vmand %vm1478, %vm1526
      %vm1769 = vmand %vm1479, %vm1527
      %vm1770 = vmand %vm1480, %vm1528
      %vm1771 = vmand %vm1481, %vm1529
      %vm1772 = vmand %vm1482, %vm1530
      %vm1773 = vmand %vm1483, %vm1531
      %vm1774 = vmand %vm1484, %vm1532
      %vm1775 = vmand %vm1485, %vm1533
      %vm1776 = vmand %vm1486, %vm1534
      %vm1777 = vmand %vm1487, %vm1535
      %vm1778 = vmand %vm1488, %vm1536
      %vm1779 = vmand %vm1489, %vm1537
      %vm1780 = vmand %vm1490, %vm1538
      %vm1781 = vmand %vm1491, %vm1539
      %vm1782 = vmand %vm1492, %vm1540
      %v1783 = vrot.slane %v609, 1
      %v1784 = vrot.slane %v610, 1
      %v1785 = vrot.slane %v611, 1
      %v1786 = vrot.slane %v612, 1
      %v1787 = vrot.slane %v613, 1
      %v1788 = vrot.slane %v614, 1
      %v1789 = vrot.slane %v615, 1
      %v1790 = vrot.slane %v616, 1
      %v1791 = vrot.slane %v617, 1
      %v1792 = vrot.slane %v618, 1
      %v1793 = vrot.slane %v619, 1
      %v1794 = vrot.slane %v620, 1
      %v1795 = vrot.slane %v621, 1
      %v1796 = vrot.slane %v622, 1
      %v1797 = vrot.slane %v623, 1
      %v1798 = vrot.slane %v624, 1
      %vm1799 = vcmp.lt.s32.totalorder %v1077, 7
      %v1800 = vsel %vm1799, %v1797, %v1798
      %v1801 = vsel %vm1799, %v1796, %v1797
      %v1802 = vsel %vm1799, %v1795, %v1796
      %v1803 = vsel %vm1799, %v1794, %v1795
      %v1804 = vsel %vm1799, %v1793, %v1794
      %v1805 = vsel %vm1799, %v1792, %v1793
      %v1806 = vsel %vm1799, %v1791, %v1792
      %v1807 = vsel %vm1799, %v1790, %v1791
      %v1808 = vsel %vm1799, %v1789, %v1790
      %v1809 = vsel %vm1799, %v1788, %v1789
      %v1810 = vsel %vm1799, %v1787, %v1788
      %v1811 = vsel %vm1799, %v1786, %v1787
      %v1812 = vsel %vm1799, %v1785, %v1786
      %v1813 = vsel %vm1799, %v1784, %v1785
      %v1814 = vsel %vm1799, %v1783, %v1784
      %v1815 = vsel %vm1799, %v1798, %v1783
      %v1816 = vsel %vm1767, 1, 0
      %v1817 = vsel %vm1768, 1, 0
      %v1818 = vsel %vm1769, 1, 0
      %v1819 = vsel %vm1770, 1, 0
      %v1820 = vsel %vm1771, 1, 0
      %v1821 = vsel %vm1772, 1, 0
      %v1822 = vsel %vm1773, 1, 0
      %v1823 = vsel %vm1774, 1, 0
      %v1824 = vsel %vm1775, 1, 0
      %v1825 = vsel %vm1776, 1, 0
      %v1826 = vsel %vm1777, 1, 0
      %v1827 = vsel %vm1778, 1, 0
      %v1828 = vsel %vm1779, 1, 0
      %v1829 = vsel %vm1780, 1, 0
      %v1830 = vsel %vm1781, 1, 0
      %v1831 = vsel %vm1782, 1, 0
      %vm1832 = vcmp.eq.s32.totalorder %v1816, 1
      %vm1833 = vcmp.eq.s32.totalorder %v1817, 1
      %vm1834 = vcmp.eq.s32.totalorder %v1818, 1
      %vm1835 = vcmp.eq.s32.totalorder %v1819, 1
      %vm1836 = vcmp.eq.s32.totalorder %v1820, 1
      %vm1837 = vcmp.eq.s32.totalorder %v1821, 1
      %vm1838 = vcmp.eq.s32.totalorder %v1822, 1
      %vm1839 = vcmp.eq.s32.totalorder %v1823, 1
      %vm1840 = vcmp.eq.s32.totalorder %v1824, 1
      %vm1841 = vcmp.eq.s32.totalorder %v1825, 1
      %vm1842 = vcmp.eq.s32.totalorder %v1826, 1
      %vm1843 = vcmp.eq.s32.totalorder %v1827, 1
      %vm1844 = vcmp.eq.s32.totalorder %v1828, 1
      %vm1845 = vcmp.eq.s32.totalorder %v1829, 1
      %vm1846 = vcmp.eq.s32.totalorder %v1830, 1
      %vm1847 = vcmp.eq.s32.totalorder %v1831, 1
      %v1848 = vsel %vm1832, %v1815, 0.0
      %v1849 = vsel %vm1833, %v1814, 0.0
      %v1850 = vsel %vm1834, %v1813, 0.0
      %v1851 = vsel %vm1835, %v1812, 0.0
      %v1852 = vsel %vm1836, %v1811, 0.0
      %v1853 = vsel %vm1837, %v1810, 0.0
      %v1854 = vsel %vm1838, %v1809, 0.0
      %v1855 = vsel %vm1839, %v1808, 0.0
      %v1856 = vsel %vm1840, %v1807, 0.0
      %v1857 = vsel %vm1841, %v1806, 0.0
      %v1858 = vsel %vm1842, %v1805, 0.0
      %v1859 = vsel %vm1843, %v1804, 0.0
      %v1860 = vsel %vm1844, %v1803, 0.0
      %v1861 = vsel %vm1845, %v1802, 0.0
      %v1862 = vsel %vm1846, %v1801, 0.0
      %v1863 = vsel %vm1847, %v1800, 0.0
      %v1864 = vlaneseq
      %v1865 = vshrl.u32 %v1864, 7
      %v1866 = vsub.s32 2, %v1865
      %v1867 = vrot.slane %v1541, %v1866
      %v1868 = vmul.f32 %v1848, %v1867
      %v1869 = vmul.f32 %v1849, %v1867
      %v1870 = vmul.f32 %v1850, %v1867
      %v1871 = vmul.f32 %v1851, %v1867
      %v1872 = vmul.f32 %v1852, %v1867
      %v1873 = vmul.f32 %v1853, %v1867
      %v1874 = vmul.f32 %v1854, %v1867
      %v1875 = vmul.f32 %v1855, %v1867
      %v1876 = vmul.f32 %v1856, %v1867
      %v1877 = vmul.f32 %v1857, %v1867
      %v1878 = vmul.f32 %v1858, %v1867
      %v1879 = vmul.f32 %v1859, %v1867
      %v1880 = vmul.f32 %v1860, %v1867
      %v1881 = vmul.f32 %v1861, %v1867
      %v1882 = vmul.f32 %v1862, %v1867
      %v1883 = vmul.f32 %v1863, %v1867
      %v1884 = vadd.f32 %v1751, %v1868
      %v1885 = vadd.f32 %v1752, %v1869
      %v1886 = vadd.f32 %v1753, %v1870
      %v1887 = vadd.f32 %v1754, %v1871
      %v1888 = vadd.f32 %v1755, %v1872
      %v1889 = vadd.f32 %v1756, %v1873
      %v1890 = vadd.f32 %v1757, %v1874
      %v1891 = vadd.f32 %v1758, %v1875
      %v1892 = vadd.f32 %v1759, %v1876
      %v1893 = vadd.f32 %v1760, %v1877
      %v1894 = vadd.f32 %v1761, %v1878
      %v1895 = vadd.f32 %v1762, %v1879
      %v1896 = vadd.f32 %v1763, %v1880
      %v1897 = vadd.f32 %v1764, %v1881
      %v1898 = vadd.f32 %v1765, %v1882
      %v1899 = vadd.f32 %v1766, %v1883
      %v1900 = vsel %vm1509, 1, 0
      %v1901 = vsel %vm1510, 1, 0
      %v1902 = vsel %vm1511, 1, 0
      %v1903 = vsel %vm1512, 1, 0
      %v1904 = vsel %vm1513, 1, 0
      %v1905 = vsel %vm1514, 1, 0
      %v1906 = vsel %vm1515, 1, 0
      %v1907 = vsel %vm1516, 1, 0
      %v1908 = vsel %vm1517, 1, 0
      %v1909 = vsel %vm1518, 1, 0
      %v1910 = vsel %vm1519, 1, 0
      %v1911 = vsel %vm1520, 1, 0
      %v1912 = vsel %vm1521, 1, 0
      %v1913 = vsel %vm1522, 1, 0
      %v1914 = vsel %vm1523, 1, 0
      %v1915 = vsel %vm1524, 1, 0
      %vm1916 = vcmp.eq.s32.totalorder %v1900, 1
      %vm1917 = vcmp.eq.s32.totalorder %v1901, 1
      %vm1918 = vcmp.eq.s32.totalorder %v1902, 1
      %vm1919 = vcmp.eq.s32.totalorder %v1903, 1
      %vm1920 = vcmp.eq.s32.totalorder %v1904, 1
      %vm1921 = vcmp.eq.s32.totalorder %v1905, 1
      %vm1922 = vcmp.eq.s32.totalorder %v1906, 1
      %vm1923 = vcmp.eq.s32.totalorder %v1907, 1
      %vm1924 = vcmp.eq.s32.totalorder %v1908, 1
      %vm1925 = vcmp.eq.s32.totalorder %v1909, 1
      %vm1926 = vcmp.eq.s32.totalorder %v1910, 1
      %vm1927 = vcmp.eq.s32.totalorder %v1911, 1
      %vm1928 = vcmp.eq.s32.totalorder %v1912, 1
      %vm1929 = vcmp.eq.s32.totalorder %v1913, 1
      %vm1930 = vcmp.eq.s32.totalorder %v1914, 1
      %vm1931 = vcmp.eq.s32.totalorder %v1915, 1
      %v1932 = vsel %vm1916, %v1598, 0.0
      %v1933 = vsel %vm1917, %v1597, 0.0
      %v1934 = vsel %vm1918, %v1596, 0.0
      %v1935 = vsel %vm1919, %v1595, 0.0
      %v1936 = vsel %vm1920, %v1594, 0.0
      %v1937 = vsel %vm1921, %v1593, 0.0
      %v1938 = vsel %vm1922, %v1592, 0.0
      %v1939 = vsel %vm1923, %v1591, 0.0
      %v1940 = vsel %vm1924, %v1590, 0.0
      %v1941 = vsel %vm1925, %v1589, 0.0
      %v1942 = vsel %vm1926, %v1588, 0.0
      %v1943 = vsel %vm1927, %v1587, 0.0
      %v1944 = vsel %vm1928, %v1586, 0.0
      %v1945 = vsel %vm1929, %v1585, 0.0
      %v1946 = vsel %vm1930, %v1584, 0.0
      %v1947 = vsel %vm1931, %v1583, 0.0
      %v1948 = vlaneseq
      %v1949 = vshrl.u32 %v1948, 7
      %v1950 = vsub.s32 3, %v1949
      %v1951 = vrot.slane %v1541, %v1950
      %v1952 = vmul.f32 %v1932, %v1951
      %v1953 = vmul.f32 %v1933, %v1951
      %v1954 = vmul.f32 %v1934, %v1951
      %v1955 = vmul.f32 %v1935, %v1951
      %v1956 = vmul.f32 %v1936, %v1951
      %v1957 = vmul.f32 %v1937, %v1951
      %v1958 = vmul.f32 %v1938, %v1951
      %v1959 = vmul.f32 %v1939, %v1951
      %v1960 = vmul.f32 %v1940, %v1951
      %v1961 = vmul.f32 %v1941, %v1951
      %v1962 = vmul.f32 %v1942, %v1951
      %v1963 = vmul.f32 %v1943, %v1951
      %v1964 = vmul.f32 %v1944, %v1951
      %v1965 = vmul.f32 %v1945, %v1951
      %v1966 = vmul.f32 %v1946, %v1951
      %v1967 = vmul.f32 %v1947, %v1951
      %v1968 = vadd.f32 %v1884, %v1952
      %v1969 = vadd.f32 %v1885, %v1953
      %v1970 = vadd.f32 %v1886, %v1954
      %v1971 = vadd.f32 %v1887, %v1955
      %v1972 = vadd.f32 %v1888, %v1956
      %v1973 = vadd.f32 %v1889, %v1957
      %v1974 = vadd.f32 %v1890, %v1958
      %v1975 = vadd.f32 %v1891, %v1959
      %v1976 = vadd.f32 %v1892, %v1960
      %v1977 = vadd.f32 %v1893, %v1961
      %v1978 = vadd.f32 %v1894, %v1962
      %v1979 = vadd.f32 %v1895, %v1963
      %v1980 = vadd.f32 %v1896, %v1964
      %v1981 = vadd.f32 %v1897, %v1965
      %v1982 = vadd.f32 %v1898, %v1966
      %v1983 = vadd.f32 %v1899, %v1967
      %v1984 = vlaneseq
      %v1985 = vshrl.u32 %v1984, 7
      %v1986 = vsub.s32 4, %v1985
      %v1987 = vrot.slane %v1541, %v1986
      %v1988 = vmul.f32 %v609, %v1987
      %v1989 = vmul.f32 %v610, %v1987
      %v1990 = vmul.f32 %v611, %v1987
      %v1991 = vmul.f32 %v612, %v1987
      %v1992 = vmul.f32 %v613, %v1987
      %v1993 = vmul.f32 %v614, %v1987
      %v1994 = vmul.f32 %v615, %v1987
      %v1995 = vmul.f32 %v616, %v1987
      %v1996 = vmul.f32 %v617, %v1987
      %v1997 = vmul.f32 %v618, %v1987
      %v1998 = vmul.f32 %v619, %v1987
      %v1999 = vmul.f32 %v620, %v1987
      %v2000 = vmul.f32 %v621, %v1987
      %v2001 = vmul.f32 %v622, %v1987
      %v2002 = vmul.f32 %v623, %v1987
      %v2003 = vmul.f32 %v624, %v1987
      %v2004 = vadd.f32 %v1968, %v1988
      %v2005 = vadd.f32 %v1969, %v1989
      %v2006 = vadd.f32 %v1970, %v1990
      %v2007 = vadd.f32 %v1971, %v1991
      %v2008 = vadd.f32 %v1972, %v1992
      %v2009 = vadd.f32 %v1973, %v1993
      %v2010 = vadd.f32 %v1974, %v1994
      %v2011 = vadd.f32 %v1975, %v1995
      %v2012 = vadd.f32 %v1976, %v1996
      %v2013 = vadd.f32 %v1977, %v1997
      %v2014 = vadd.f32 %v1978, %v1998
      %v2015 = vadd.f32 %v1979, %v1999
      %v2016 = vadd.f32 %v1980, %v2000
      %v2017 = vadd.f32 %v1981, %v2001
      %v2018 = vadd.f32 %v1982, %v2002
      %v2019 = vadd.f32 %v1983, %v2003
      %v2020 = vsel %vm1525, 1, 0
      %v2021 = vsel %vm1526, 1, 0
      %v2022 = vsel %vm1527, 1, 0
      %v2023 = vsel %vm1528, 1, 0
      %v2024 = vsel %vm1529, 1, 0
      %v2025 = vsel %vm1530, 1, 0
      %v2026 = vsel %vm1531, 1, 0
      %v2027 = vsel %vm1532, 1, 0
      %v2028 = vsel %vm1533, 1, 0
      %v2029 = vsel %vm1534, 1, 0
      %v2030 = vsel %vm1535, 1, 0
      %v2031 = vsel %vm1536, 1, 0
      %v2032 = vsel %vm1537, 1, 0
      %v2033 = vsel %vm1538, 1, 0
      %v2034 = vsel %vm1539, 1, 0
      %v2035 = vsel %vm1540, 1, 0
      %vm2036 = vcmp.eq.s32.totalorder %v2020, 1
      %vm2037 = vcmp.eq.s32.totalorder %v2021, 1
      %vm2038 = vcmp.eq.s32.totalorder %v2022, 1
      %vm2039 = vcmp.eq.s32.totalorder %v2023, 1
      %vm2040 = vcmp.eq.s32.totalorder %v2024, 1
      %vm2041 = vcmp.eq.s32.totalorder %v2025, 1
      %vm2042 = vcmp.eq.s32.totalorder %v2026, 1
      %vm2043 = vcmp.eq.s32.totalorder %v2027, 1
      %vm2044 = vcmp.eq.s32.totalorder %v2028, 1
      %vm2045 = vcmp.eq.s32.totalorder %v2029, 1
      %vm2046 = vcmp.eq.s32.totalorder %v2030, 1
      %vm2047 = vcmp.eq.s32.totalorder %v2031, 1
      %vm2048 = vcmp.eq.s32.totalorder %v2032, 1
      %vm2049 = vcmp.eq.s32.totalorder %v2033, 1
      %vm2050 = vcmp.eq.s32.totalorder %v2034, 1
      %vm2051 = vcmp.eq.s32.totalorder %v2035, 1
      %v2052 = vsel %vm2036, %v1814, 0.0
      %v2053 = vsel %vm2037, %v1813, 0.0
      %v2054 = vsel %vm2038, %v1812, 0.0
      %v2055 = vsel %vm2039, %v1811, 0.0
      %v2056 = vsel %vm2040, %v1810, 0.0
      %v2057 = vsel %vm2041, %v1809, 0.0
      %v2058 = vsel %vm2042, %v1808, 0.0
      %v2059 = vsel %vm2043, %v1807, 0.0
      %v2060 = vsel %vm2044, %v1806, 0.0
      %v2061 = vsel %vm2045, %v1805, 0.0
      %v2062 = vsel %vm2046, %v1804, 0.0
      %v2063 = vsel %vm2047, %v1803, 0.0
      %v2064 = vsel %vm2048, %v1802, 0.0
      %v2065 = vsel %vm2049, %v1801, 0.0
      %v2066 = vsel %vm2050, %v1800, 0.0
      %v2067 = vsel %vm2051, %v1815, 0.0
      %v2068 = vlaneseq
      %v2069 = vshrl.u32 %v2068, 7
      %v2070 = vsub.s32 5, %v2069
      %v2071 = vrot.slane %v1541, %v2070
      %v2072 = vmul.f32 %v2052, %v2071
      %v2073 = vmul.f32 %v2053, %v2071
      %v2074 = vmul.f32 %v2054, %v2071
      %v2075 = vmul.f32 %v2055, %v2071
      %v2076 = vmul.f32 %v2056, %v2071
      %v2077 = vmul.f32 %v2057, %v2071
      %v2078 = vmul.f32 %v2058, %v2071
      %v2079 = vmul.f32 %v2059, %v2071
      %v2080 = vmul.f32 %v2060, %v2071
      %v2081 = vmul.f32 %v2061, %v2071
      %v2082 = vmul.f32 %v2062, %v2071
      %v2083 = vmul.f32 %v2063, %v2071
      %v2084 = vmul.f32 %v2064, %v2071
      %v2085 = vmul.f32 %v2065, %v2071
      %v2086 = vmul.f32 %v2066, %v2071
      %v2087 = vmul.f32 %v2067, %v2071
      %v2088 = vadd.f32 %v2004, %v2072
      %v2089 = vadd.f32 %v2005, %v2073
      %v2090 = vadd.f32 %v2006, %v2074
      %v2091 = vadd.f32 %v2007, %v2075
      %v2092 = vadd.f32 %v2008, %v2076
      %v2093 = vadd.f32 %v2009, %v2077
      %v2094 = vadd.f32 %v2010, %v2078
      %v2095 = vadd.f32 %v2011, %v2079
      %v2096 = vadd.f32 %v2012, %v2080
      %v2097 = vadd.f32 %v2013, %v2081
      %v2098 = vadd.f32 %v2014, %v2082
      %v2099 = vadd.f32 %v2015, %v2083
      %v2100 = vadd.f32 %v2016, %v2084
      %v2101 = vadd.f32 %v2017, %v2085
      %v2102 = vadd.f32 %v2018, %v2086
      %v2103 = vadd.f32 %v2019, %v2087
      %vm2104 = vmand %vm1493, %vm1509
      %vm2105 = vmand %vm1494, %vm1510
      %vm2106 = vmand %vm1495, %vm1511
      %vm2107 = vmand %vm1496, %vm1512
      %vm2108 = vmand %vm1497, %vm1513
      %vm2109 = vmand %vm1498, %vm1514
      %vm2110 = vmand %vm1499, %vm1515
      %vm2111 = vmand %vm1500, %vm1516
      %vm2112 = vmand %vm1501, %vm1517
      %vm2113 = vmand %vm1502, %vm1518
      %vm2114 = vmand %vm1503, %vm1519
      %vm2115 = vmand %vm1504, %vm1520
      %vm2116 = vmand %vm1505, %vm1521
      %vm2117 = vmand %vm1506, %vm1522
      %vm2118 = vmand %vm1507, %vm1523
      %vm2119 = vmand %vm1508, %vm1524
      %v2120 = vsel %vm2104, 1, 0
      %v2121 = vsel %vm2105, 1, 0
      %v2122 = vsel %vm2106, 1, 0
      %v2123 = vsel %vm2107, 1, 0
      %v2124 = vsel %vm2108, 1, 0
      %v2125 = vsel %vm2109, 1, 0
      %v2126 = vsel %vm2110, 1, 0
      %v2127 = vsel %vm2111, 1, 0
      %v2128 = vsel %vm2112, 1, 0
      %v2129 = vsel %vm2113, 1, 0
      %v2130 = vsel %vm2114, 1, 0
      %v2131 = vsel %vm2115, 1, 0
      %v2132 = vsel %vm2116, 1, 0
      %v2133 = vsel %vm2117, 1, 0
      %v2134 = vsel %vm2118, 1, 0
      %v2135 = vsel %vm2119, 1, 0
      %vm2136 = vcmp.eq.s32.totalorder %v2120, 1
      %vm2137 = vcmp.eq.s32.totalorder %v2121, 1
      %vm2138 = vcmp.eq.s32.totalorder %v2122, 1
      %vm2139 = vcmp.eq.s32.totalorder %v2123, 1
      %vm2140 = vcmp.eq.s32.totalorder %v2124, 1
      %vm2141 = vcmp.eq.s32.totalorder %v2125, 1
      %vm2142 = vcmp.eq.s32.totalorder %v2126, 1
      %vm2143 = vcmp.eq.s32.totalorder %v2127, 1
      %vm2144 = vcmp.eq.s32.totalorder %v2128, 1
      %vm2145 = vcmp.eq.s32.totalorder %v2129, 1
      %vm2146 = vcmp.eq.s32.totalorder %v2130, 1
      %vm2147 = vcmp.eq.s32.totalorder %v2131, 1
      %vm2148 = vcmp.eq.s32.totalorder %v2132, 1
      %vm2149 = vcmp.eq.s32.totalorder %v2133, 1
      %vm2150 = vcmp.eq.s32.totalorder %v2134, 1
      %vm2151 = vcmp.eq.s32.totalorder %v2135, 1
      %v2152 = vsel %vm2136, %v1597, 0.0
      %v2153 = vsel %vm2137, %v1596, 0.0
      %v2154 = vsel %vm2138, %v1595, 0.0
      %v2155 = vsel %vm2139, %v1594, 0.0
      %v2156 = vsel %vm2140, %v1593, 0.0
      %v2157 = vsel %vm2141, %v1592, 0.0
      %v2158 = vsel %vm2142, %v1591, 0.0
      %v2159 = vsel %vm2143, %v1590, 0.0
      %v2160 = vsel %vm2144, %v1589, 0.0
      %v2161 = vsel %vm2145, %v1588, 0.0
      %v2162 = vsel %vm2146, %v1587, 0.0
      %v2163 = vsel %vm2147, %v1586, 0.0
      %v2164 = vsel %vm2148, %v1585, 0.0
      %v2165 = vsel %vm2149, %v1584, 0.0
      %v2166 = vsel %vm2150, %v1583, 0.0
      %v2167 = vsel %vm2151, %v1598, 0.0
      %v2168 = vlaneseq
      %v2169 = vshrl.u32 %v2168, 7
      %v2170 = vsub.s32 6, %v2169
      %v2171 = vrot.slane %v1541, %v2170
      %v2172 = vmul.f32 %v2152, %v2171
      %v2173 = vmul.f32 %v2153, %v2171
      %v2174 = vmul.f32 %v2154, %v2171
      %v2175 = vmul.f32 %v2155, %v2171
      %v2176 = vmul.f32 %v2156, %v2171
      %v2177 = vmul.f32 %v2157, %v2171
      %v2178 = vmul.f32 %v2158, %v2171
      %v2179 = vmul.f32 %v2159, %v2171
      %v2180 = vmul.f32 %v2160, %v2171
      %v2181 = vmul.f32 %v2161, %v2171
      %v2182 = vmul.f32 %v2162, %v2171
      %v2183 = vmul.f32 %v2163, %v2171
      %v2184 = vmul.f32 %v2164, %v2171
      %v2185 = vmul.f32 %v2165, %v2171
      %v2186 = vmul.f32 %v2166, %v2171
      %v2187 = vmul.f32 %v2167, %v2171
      %v2188 = vadd.f32 %v2088, %v2172
      %v2189 = vadd.f32 %v2089, %v2173
      %v2190 = vadd.f32 %v2090, %v2174
      %v2191 = vadd.f32 %v2091, %v2175
      %v2192 = vadd.f32 %v2092, %v2176
      %v2193 = vadd.f32 %v2093, %v2177
      %v2194 = vadd.f32 %v2094, %v2178
      %v2195 = vadd.f32 %v2095, %v2179
      %v2196 = vadd.f32 %v2096, %v2180
      %v2197 = vadd.f32 %v2097, %v2181
      %v2198 = vadd.f32 %v2098, %v2182
      %v2199 = vadd.f32 %v2099, %v2183
      %v2200 = vadd.f32 %v2100, %v2184
      %v2201 = vadd.f32 %v2101, %v2185
      %v2202 = vadd.f32 %v2102, %v2186
      %v2203 = vadd.f32 %v2103, %v2187
      %v2204 = vsel %vm1493, 1, 0
      %v2205 = vsel %vm1494, 1, 0
      %v2206 = vsel %vm1495, 1, 0
      %v2207 = vsel %vm1496, 1, 0
      %v2208 = vsel %vm1497, 1, 0
      %v2209 = vsel %vm1498, 1, 0
      %v2210 = vsel %vm1499, 1, 0
      %v2211 = vsel %vm1500, 1, 0
      %v2212 = vsel %vm1501, 1, 0
      %v2213 = vsel %vm1502, 1, 0
      %v2214 = vsel %vm1503, 1, 0
      %v2215 = vsel %vm1504, 1, 0
      %v2216 = vsel %vm1505, 1, 0
      %v2217 = vsel %vm1506, 1, 0
      %v2218 = vsel %vm1507, 1, 0
      %v2219 = vsel %vm1508, 1, 0
      %vm2220 = vcmp.eq.s32.totalorder %v2204, 1
      %vm2221 = vcmp.eq.s32.totalorder %v2205, 1
      %vm2222 = vcmp.eq.s32.totalorder %v2206, 1
      %vm2223 = vcmp.eq.s32.totalorder %v2207, 1
      %vm2224 = vcmp.eq.s32.totalorder %v2208, 1
      %vm2225 = vcmp.eq.s32.totalorder %v2209, 1
      %vm2226 = vcmp.eq.s32.totalorder %v2210, 1
      %vm2227 = vcmp.eq.s32.totalorder %v2211, 1
      %vm2228 = vcmp.eq.s32.totalorder %v2212, 1
      %vm2229 = vcmp.eq.s32.totalorder %v2213, 1
      %vm2230 = vcmp.eq.s32.totalorder %v2214, 1
      %vm2231 = vcmp.eq.s32.totalorder %v2215, 1
      %vm2232 = vcmp.eq.s32.totalorder %v2216, 1
      %vm2233 = vcmp.eq.s32.totalorder %v2217, 1
      %vm2234 = vcmp.eq.s32.totalorder %v2218, 1
      %vm2235 = vcmp.eq.s32.totalorder %v2219, 1
      %v2236 = vsel %vm2220, %v610, 0.0
      %v2237 = vsel %vm2221, %v611, 0.0
      %v2238 = vsel %vm2222, %v612, 0.0
      %v2239 = vsel %vm2223, %v613, 0.0
      %v2240 = vsel %vm2224, %v614, 0.0
      %v2241 = vsel %vm2225, %v615, 0.0
      %v2242 = vsel %vm2226, %v616, 0.0
      %v2243 = vsel %vm2227, %v617, 0.0
      %v2244 = vsel %vm2228, %v618, 0.0
      %v2245 = vsel %vm2229, %v619, 0.0
      %v2246 = vsel %vm2230, %v620, 0.0
      %v2247 = vsel %vm2231, %v621, 0.0
      %v2248 = vsel %vm2232, %v622, 0.0
      %v2249 = vsel %vm2233, %v623, 0.0
      %v2250 = vsel %vm2234, %v624, 0.0
      %v2251 = vsel %vm2235, %v609, 0.0
      %v2252 = vlaneseq
      %v2253 = vshrl.u32 %v2252, 7
      %v2254 = vsub.s32 7, %v2253
      %v2255 = vrot.slane %v1541, %v2254
      %v2256 = vmul.f32 %v2236, %v2255
      %v2257 = vmul.f32 %v2237, %v2255
      %v2258 = vmul.f32 %v2238, %v2255
      %v2259 = vmul.f32 %v2239, %v2255
      %v2260 = vmul.f32 %v2240, %v2255
      %v2261 = vmul.f32 %v2241, %v2255
      %v2262 = vmul.f32 %v2242, %v2255
      %v2263 = vmul.f32 %v2243, %v2255
      %v2264 = vmul.f32 %v2244, %v2255
      %v2265 = vmul.f32 %v2245, %v2255
      %v2266 = vmul.f32 %v2246, %v2255
      %v2267 = vmul.f32 %v2247, %v2255
      %v2268 = vmul.f32 %v2248, %v2255
      %v2269 = vmul.f32 %v2249, %v2255
      %v2270 = vmul.f32 %v2250, %v2255
      %v2271 = vmul.f32 %v2251, %v2255
      %v2272 = vadd.f32 %v2188, %v2256
      %v2273 = vadd.f32 %v2189, %v2257
      %v2274 = vadd.f32 %v2190, %v2258
      %v2275 = vadd.f32 %v2191, %v2259
      %v2276 = vadd.f32 %v2192, %v2260
      %v2277 = vadd.f32 %v2193, %v2261
      %v2278 = vadd.f32 %v2194, %v2262
      %v2279 = vadd.f32 %v2195, %v2263
      %v2280 = vadd.f32 %v2196, %v2264
      %v2281 = vadd.f32 %v2197, %v2265
      %v2282 = vadd.f32 %v2198, %v2266
      %v2283 = vadd.f32 %v2199, %v2267
      %v2284 = vadd.f32 %v2200, %v2268
      %v2285 = vadd.f32 %v2201, %v2269
      %v2286 = vadd.f32 %v2202, %v2270
      %v2287 = vadd.f32 %v2203, %v2271
      %vm2288 = vmand %vm1493, %vm1525
      %vm2289 = vmand %vm1494, %vm1526
      %vm2290 = vmand %vm1495, %vm1527
      %vm2291 = vmand %vm1496, %vm1528
      %vm2292 = vmand %vm1497, %vm1529
      %vm2293 = vmand %vm1498, %vm1530
      %vm2294 = vmand %vm1499, %vm1531
      %vm2295 = vmand %vm1500, %vm1532
      %vm2296 = vmand %vm1501, %vm1533
      %vm2297 = vmand %vm1502, %vm1534
      %vm2298 = vmand %vm1503, %vm1535
      %vm2299 = vmand %vm1504, %vm1536
      %vm2300 = vmand %vm1505, %vm1537
      %vm2301 = vmand %vm1506, %vm1538
      %vm2302 = vmand %vm1507, %vm1539
      %vm2303 = vmand %vm1508, %vm1540
      %v2304 = vsel %vm2288, 1, 0
      %v2305 = vsel %vm2289, 1, 0
      %v2306 = vsel %vm2290, 1, 0
      %v2307 = vsel %vm2291, 1, 0
      %v2308 = vsel %vm2292, 1, 0
      %v2309 = vsel %vm2293, 1, 0
      %v2310 = vsel %vm2294, 1, 0
      %v2311 = vsel %vm2295, 1, 0
      %v2312 = vsel %vm2296, 1, 0
      %v2313 = vsel %vm2297, 1, 0
      %v2314 = vsel %vm2298, 1, 0
      %v2315 = vsel %vm2299, 1, 0
      %v2316 = vsel %vm2300, 1, 0
      %v2317 = vsel %vm2301, 1, 0
      %v2318 = vsel %vm2302, 1, 0
      %v2319 = vsel %vm2303, 1, 0
      %vm2320 = vcmp.eq.s32.totalorder %v2304, 1
      %vm2321 = vcmp.eq.s32.totalorder %v2305, 1
      %vm2322 = vcmp.eq.s32.totalorder %v2306, 1
      %vm2323 = vcmp.eq.s32.totalorder %v2307, 1
      %vm2324 = vcmp.eq.s32.totalorder %v2308, 1
      %vm2325 = vcmp.eq.s32.totalorder %v2309, 1
      %vm2326 = vcmp.eq.s32.totalorder %v2310, 1
      %vm2327 = vcmp.eq.s32.totalorder %v2311, 1
      %vm2328 = vcmp.eq.s32.totalorder %v2312, 1
      %vm2329 = vcmp.eq.s32.totalorder %v2313, 1
      %vm2330 = vcmp.eq.s32.totalorder %v2314, 1
      %vm2331 = vcmp.eq.s32.totalorder %v2315, 1
      %vm2332 = vcmp.eq.s32.totalorder %v2316, 1
      %vm2333 = vcmp.eq.s32.totalorder %v2317, 1
      %vm2334 = vcmp.eq.s32.totalorder %v2318, 1
      %vm2335 = vcmp.eq.s32.totalorder %v2319, 1
      %v2336 = vsel %vm2320, %v1813, 0.0
      %v2337 = vsel %vm2321, %v1812, 0.0
      %v2338 = vsel %vm2322, %v1811, 0.0
      %v2339 = vsel %vm2323, %v1810, 0.0
      %v2340 = vsel %vm2324, %v1809, 0.0
      %v2341 = vsel %vm2325, %v1808, 0.0
      %v2342 = vsel %vm2326, %v1807, 0.0
      %v2343 = vsel %vm2327, %v1806, 0.0
      %v2344 = vsel %vm2328, %v1805, 0.0
      %v2345 = vsel %vm2329, %v1804, 0.0
      %v2346 = vsel %vm2330, %v1803, 0.0
      %v2347 = vsel %vm2331, %v1802, 0.0
      %v2348 = vsel %vm2332, %v1801, 0.0
      %v2349 = vsel %vm2333, %v1800, 0.0
      %v2350 = vsel %vm2334, %v1815, 0.0
      %v2351 = vsel %vm2335, %v1814, 0.0
      %v2352 = vlaneseq
      %v2353 = vshrl.u32 %v2352, 7
      %v2354 = vsub.s32 0, %v2353
      %v2355 = vrot.slane %v1542, %v2354
      %v2356 = vmul.f32 %v2336, %v2355
      %v2357 = vmul.f32 %v2337, %v2355
      %v2358 = vmul.f32 %v2338, %v2355
      %v2359 = vmul.f32 %v2339, %v2355
      %v2360 = vmul.f32 %v2340, %v2355
      %v2361 = vmul.f32 %v2341, %v2355
      %v2362 = vmul.f32 %v2342, %v2355
      %v2363 = vmul.f32 %v2343, %v2355
      %v2364 = vmul.f32 %v2344, %v2355
      %v2365 = vmul.f32 %v2345, %v2355
      %v2366 = vmul.f32 %v2346, %v2355
      %v2367 = vmul.f32 %v2347, %v2355
      %v2368 = vmul.f32 %v2348, %v2355
      %v2369 = vmul.f32 %v2349, %v2355
      %v2370 = vmul.f32 %v2350, %v2355
      %v2371 = vmul.f32 %v2351, %v2355
      %v2372 = vadd.f32 %v2272, %v2356
      %v2373 = vadd.f32 %v2273, %v2357
      %v2374 = vadd.f32 %v2274, %v2358
      %v2375 = vadd.f32 %v2275, %v2359
      %v2376 = vadd.f32 %v2276, %v2360
      %v2377 = vadd.f32 %v2277, %v2361
      %v2378 = vadd.f32 %v2278, %v2362
      %v2379 = vadd.f32 %v2279, %v2363
      %v2380 = vadd.f32 %v2280, %v2364
      %v2381 = vadd.f32 %v2281, %v2365
      %v2382 = vadd.f32 %v2282, %v2366
      %v2383 = vadd.f32 %v2283, %v2367
      %v2384 = vadd.f32 %v2284, %v2368
      %v2385 = vadd.f32 %v2285, %v2369
      %v2386 = vadd.f32 %v2286, %v2370
      %v2387 = vadd.f32 %v2287, %v2371
      %v2388 = vmul.f32 %v2372, %v2372
      %v2389 = vmul.f32 %v2373, %v2373
      %v2390 = vmul.f32 %v2374, %v2374
      %v2391 = vmul.f32 %v2375, %v2375
      %v2392 = vmul.f32 %v2376, %v2376
      %v2393 = vmul.f32 %v2377, %v2377
      %v2394 = vmul.f32 %v2378, %v2378
      %v2395 = vmul.f32 %v2379, %v2379
      %v2396 = vmul.f32 %v2380, %v2380
      %v2397 = vmul.f32 %v2381, %v2381
      %v2398 = vmul.f32 %v2382, %v2382
      %v2399 = vmul.f32 %v2383, %v2383
      %v2400 = vmul.f32 %v2384, %v2384
      %v2401 = vmul.f32 %v2385, %v2385
      %v2402 = vmul.f32 %v2386, %v2386
      %v2403 = vmul.f32 %v2387, %v2387
      %v2404 = vmul.f32 %v2372, %v2388
      %v2405 = vmul.f32 %v2373, %v2389
      %v2406 = vmul.f32 %v2374, %v2390
      %v2407 = vmul.f32 %v2375, %v2391
      %v2408 = vmul.f32 %v2376, %v2392
      %v2409 = vmul.f32 %v2377, %v2393
      %v2410 = vmul.f32 %v2378, %v2394
      %v2411 = vmul.f32 %v2379, %v2395
      %v2412 = vmul.f32 %v2380, %v2396
      %v2413 = vmul.f32 %v2381, %v2397
      %v2414 = vmul.f32 %v2382, %v2398
      %v2415 = vmul.f32 %v2383, %v2399
      %v2416 = vmul.f32 %v2384, %v2400
      %v2417 = vmul.f32 %v2385, %v2401
      %v2418 = vmul.f32 %v2386, %v2402
      %v2419 = vmul.f32 %v2387, %v2403
      %v2420 = vmul.f32 %v2404, 0.044715
      %v2421 = vmul.f32 %v2405, 0.044715
      %v2422 = vmul.f32 %v2406, 0.044715
      %v2423 = vmul.f32 %v2407, 0.044715
      %v2424 = vmul.f32 %v2408, 0.044715
      %v2425 = vmul.f32 %v2409, 0.044715
      %v2426 = vmul.f32 %v2410, 0.044715
      %v2427 = vmul.f32 %v2411, 0.044715
      %v2428 = vmul.f32 %v2412, 0.044715
      %v2429 = vmul.f32 %v2413, 0.044715
      %v2430 = vmul.f32 %v2414, 0.044715
      %v2431 = vmul.f32 %v2415, 0.044715
      %v2432 = vmul.f32 %v2416, 0.044715
      %v2433 = vmul.f32 %v2417, 0.044715
      %v2434 = vmul.f32 %v2418, 0.044715
      %v2435 = vmul.f32 %v2419, 0.044715
      %v2436 = vadd.f32 %v2372, %v2420
      %v2437 = vadd.f32 %v2373, %v2421
      %v2438 = vadd.f32 %v2374, %v2422
      %v2439 = vadd.f32 %v2375, %v2423
      %v2440 = vadd.f32 %v2376, %v2424
      %v2441 = vadd.f32 %v2377, %v2425
      %v2442 = vadd.f32 %v2378, %v2426
      %v2443 = vadd.f32 %v2379, %v2427
      %v2444 = vadd.f32 %v2380, %v2428
      %v2445 = vadd.f32 %v2381, %v2429
      %v2446 = vadd.f32 %v2382, %v2430
      %v2447 = vadd.f32 %v2383, %v2431
      %v2448 = vadd.f32 %v2384, %v2432
      %v2449 = vadd.f32 %v2385, %v2433
      %v2450 = vadd.f32 %v2386, %v2434
      %v2451 = vadd.f32 %v2387, %v2435
      %v2452 = vmul.f32 %v2436, 0.7978846
      %v2453 = vmul.f32 %v2437, 0.7978846
      %v2454 = vmul.f32 %v2438, 0.7978846
      %v2455 = vmul.f32 %v2439, 0.7978846
      %v2456 = vmul.f32 %v2440, 0.7978846
      %v2457 = vmul.f32 %v2441, 0.7978846
      %v2458 = vmul.f32 %v2442, 0.7978846
      %v2459 = vmul.f32 %v2443, 0.7978846
      %v2460 = vmul.f32 %v2444, 0.7978846
      %v2461 = vmul.f32 %v2445, 0.7978846
      %v2462 = vmul.f32 %v2446, 0.7978846
      %v2463 = vmul.f32 %v2447, 0.7978846
      %v2464 = vmul.f32 %v2448, 0.7978846
      %v2465 = vmul.f32 %v2449, 0.7978846
      %v2466 = vmul.f32 %v2450, 0.7978846
      %v2467 = vmul.f32 %v2451, 0.7978846
      %v2468 = vtanh.pop %v2452
      %v2469 = vtanh.pop %v2453
      %v2470 = vtanh.pop %v2454
      %v2471 = vtanh.pop %v2455
      %v2472 = vtanh.pop %v2456
      %v2473 = vtanh.pop %v2457
      %v2474 = vtanh.pop %v2458
      %v2475 = vtanh.pop %v2459
      %v2476 = vtanh.pop %v2460
      %v2477 = vtanh.pop %v2461
      %v2478 = vtanh.pop %v2462
      %v2479 = vtanh.pop %v2463
      %v2480 = vtanh.pop %v2464
      %v2481 = vtanh.pop %v2465
      %v2482 = vtanh.pop %v2466
      %v2483 = vtanh.pop %v2467
      %v2484 = vadd.f32 %v2468, 1.0
      %v2485 = vadd.f32 %v2469, 1.0
      %v2486 = vadd.f32 %v2470, 1.0
      %v2487 = vadd.f32 %v2471, 1.0
      %v2488 = vadd.f32 %v2472, 1.0
      %v2489 = vadd.f32 %v2473, 1.0
      %v2490 = vadd.f32 %v2474, 1.0
      %v2491 = vadd.f32 %v2475, 1.0
      %v2492 = vadd.f32 %v2476, 1.0
      %v2493 = vadd.f32 %v2477, 1.0
      %v2494 = vadd.f32 %v2478, 1.0
      %v2495 = vadd.f32 %v2479, 1.0
      %v2496 = vadd.f32 %v2480, 1.0
      %v2497 = vadd.f32 %v2481, 1.0
      %v2498 = vadd.f32 %v2482, 1.0
      %v2499 = vadd.f32 %v2483, 1.0
      %v2500 = vmul.f32 %v2484, 0.5
      %v2501 = vmul.f32 %v2485, 0.5
      %v2502 = vmul.f32 %v2486, 0.5
      %v2503 = vmul.f32 %v2487, 0.5
      %v2504 = vmul.f32 %v2488, 0.5
      %v2505 = vmul.f32 %v2489, 0.5
      %v2506 = vmul.f32 %v2490, 0.5
      %v2507 = vmul.f32 %v2491, 0.5
      %v2508 = vmul.f32 %v2492, 0.5
      %v2509 = vmul.f32 %v2493, 0.5
      %v2510 = vmul.f32 %v2494, 0.5
      %v2511 = vmul.f32 %v2495, 0.5
      %v2512 = vmul.f32 %v2496, 0.5
      %v2513 = vmul.f32 %v2497, 0.5
      %v2514 = vmul.f32 %v2498, 0.5
      %v2515 = vmul.f32 %v2499, 0.5
      %v2516 = vmul.f32 %v2372, %v2500
      %v2517 = vmul.f32 %v2373, %v2501
      %v2518 = vmul.f32 %v2374, %v2502
      %v2519 = vmul.f32 %v2375, %v2503
      %v2520 = vmul.f32 %v2376, %v2504
      %v2521 = vmul.f32 %v2377, %v2505
      %v2522 = vmul.f32 %v2378, %v2506
      %v2523 = vmul.f32 %v2379, %v2507
      %v2524 = vmul.f32 %v2380, %v2508
      %v2525 = vmul.f32 %v2381, %v2509
      %v2526 = vmul.f32 %v2382, %v2510
      %v2527 = vmul.f32 %v2383, %v2511
      %v2528 = vmul.f32 %v2384, %v2512
      %v2529 = vmul.f32 %v2385, %v2513
      %v2530 = vmul.f32 %v2386, %v2514
      %v2531 = vmul.f32 %v2387, %v2515
      %v2532 = vpack.c.bf16 %v2517, %v2516
      %v2533 = vpack.c.bf16 %v2519, %v2518
      %v2534 = vpack.c.bf16 %v2521, %v2520
      %v2535 = vpack.c.bf16 %v2523, %v2522
      %v2536 = vpack.c.bf16 %v2525, %v2524
      %v2537 = vpack.c.bf16 %v2527, %v2526
      %v2538 = vpack.c.bf16 %v2529, %v2528
      %v2539 = vpack.c.bf16 %v2531, %v2530
      %v2540 = vld [vmem:[%s6] sm:$0xf]
      %v2541 = vld [vmem:[%s6 + $0x4] sm:$0xf]
      %v2542 = vld [vmem:[%s6 + $0x8] sm:$0xf]
      %v2543 = vld [vmem:[%s6 + $0xc] sm:$0xf]
      %v2544 = vld [vmem:[%s6 + $0x10] sm:$0xf]
      %v2545 = vld [vmem:[%s6 + $0x14] sm:$0xf]
      %v2546 = vld [vmem:[%s6 + $0x18] sm:$0xf]
      %v2547 = vld [vmem:[%s6 + $0x1c] sm:$0xf]
      %v2548 = vld [vmem:[%s6 + $0x20] sm:$0xf]
      %v2549 = vld [vmem:[%s6 + $0x24] sm:$0xf]
      %v2550 = vld [vmem:[%s6 + $0x28] sm:$0xf]
      %v2551 = vld [vmem:[%s6 + $0x2c] sm:$0xf]
      %v2552 = vld [vmem:[%s6 + $0x30] sm:$0xf]
      %v2553 = vld [vmem:[%s6 + $0x34] sm:$0xf]
      %v2554 = vld [vmem:[%s6 + $0x38] sm:$0xf]
      %v2555 = vld [vmem:[%s6 + $0x3c] sm:$0xf]
      %v2556 = vld [vmem:[%s7] sm:$0x1]
      %v2558 = vlaneseq
      %v2559 = vshrl.u32 %v2558, 7
      %v2560 = vsub.s32 0, %v2559
      %v2561 = vrot.slane %v2556, %v2560
      %v2579 = vunpack.c.l.b16 %v2540
      %v2580 = vunpack.c.l.b16 %v2541
      %v2581 = vunpack.c.l.b16 %v2542
      %v2582 = vunpack.c.l.b16 %v2543
      %v2583 = vunpack.c.l.b16 %v2544
      %v2584 = vunpack.c.l.b16 %v2545
      %v2585 = vunpack.c.l.b16 %v2546
      %v2586 = vunpack.c.l.b16 %v2547
      %v2587 = vunpack.c.l.b16 %v2548
      %v2588 = vunpack.c.l.b16 %v2549
      %v2589 = vunpack.c.l.b16 %v2550
      %v2590 = vunpack.c.l.b16 %v2551
      %v2591 = vunpack.c.l.b16 %v2552
      %v2592 = vunpack.c.l.b16 %v2553
      %v2593 = vunpack.c.l.b16 %v2554
      %v2594 = vunpack.c.l.b16 %v2555
      %v2595 = vpack.c.b16 %v2580, %v2579
      %v2596 = vpack.c.b16 %v2582, %v2581
      %v2597 = vpack.c.b16 %v2584, %v2583
      %v2598 = vpack.c.b16 %v2586, %v2585
      %v2599 = vpack.c.b16 %v2588, %v2587
      %v2600 = vpack.c.b16 %v2590, %v2589
      %v2601 = vpack.c.b16 %v2592, %v2591
      %v2602 = vpack.c.b16 %v2594, %v2593
      %2611 = vmatprep.subr.bf16.mxu0 0
      %2612 = vmatpush1.bf16.msra.mxu0 %v2602
      %2613 = vmatprep.subr.bf16.mxu0 0
      %2614 = vmatpush1.bf16.msra.mxu0 %v2601
      %2615 = vmatprep.subr.bf16.mxu0 0
      %2616 = vmatpush1.bf16.msra.mxu0 %v2600
      %2617 = vmatprep.subr.bf16.mxu0 0
      %2618 = vmatpush1.bf16.msra.mxu0 %v2599
      %2619 = vmatprep.subr.bf16.mxu0 0
      %2620 = vmatpush1.bf16.msra.mxu0 %v2598
      %2621 = vmatprep.subr.bf16.mxu0 0
      %2622 = vmatpush1.bf16.msra.mxu0 %v2597
      %2623 = vmatprep.subr.bf16.mxu0 0
      %2624 = vmatpush1.bf16.msra.mxu0 %v2596
      %2625 = vmatprep.subr.bf16.mxu0 0
      %2626 = vmatpush1.bf16.msra.mxu0 %v2595
      %2627 = vmatprep.subr.bf16.mxu0 0
      %2628 = vmatpush2.bf16.msra.mxu0 0
      %2629 = vmatprep.subr.bf16.mxu0 0
      %2630 = vmatpush2.bf16.msra.mxu0 0
      %2631 = vmatprep.subr.bf16.mxu0 0
      %2632 = vmatpush2.bf16.msra.mxu0 0
      %2633 = vmatprep.subr.bf16.mxu0 0
      %2634 = vmatpush2.bf16.msra.mxu0 0
      %2635 = vmatprep.subr.bf16.mxu0 0
      %2636 = vmatpush2.bf16.msra.mxu0 0
      %2637 = vmatprep.subr.bf16.mxu0 0
      %2638 = vmatpush2.bf16.msra.mxu0 0
      %2639 = vmatprep.subr.bf16.mxu0 0
      %2640 = vmatpush2.bf16.msra.mxu0 0
      %2641 = vmatprep.subr.bf16.mxu0 0
      %2642 = vmatpush2.bf16.msra.mxu0 0
      %2643 = vmatprep.mubr.bf16.mxu0 0
      %2644 = vmatmul.mubr.bf16.gmra.mxu0 %v2532
      %v2645 = vpop.f32.mrf.mxu0
      %v2646 = vadd.f32 %v2561, %v2645
      %v2647 = vpop.f32.mrf.mxu0
      %v2648 = vpop.f32.mrf.mxu0
      %v2649 = vadd.f32 %v2561, %v2648
      %v2650 = vpop.f32.mrf.mxu0
      %2651 = vmatprep.mubr.bf16.mxu0 0
      %2652 = vmatmul.mubr.bf16.gmra.mxu0 %v2533
      %v2653 = vpop.f32.mrf.mxu0
      %v2654 = vadd.f32 %v2561, %v2653
      %v2655 = vpop.f32.mrf.mxu0
      %v2656 = vpop.f32.mrf.mxu0
      %v2657 = vadd.f32 %v2561, %v2656
      %v2658 = vpop.f32.mrf.mxu0
      %2659 = vmatprep.mubr.bf16.mxu0 0
      %2660 = vmatmul.mubr.bf16.gmra.mxu0 %v2534
      %v2661 = vpop.f32.mrf.mxu0
      %v2662 = vadd.f32 %v2561, %v2661
      %v2663 = vpop.f32.mrf.mxu0
      %v2664 = vpop.f32.mrf.mxu0
      %v2665 = vadd.f32 %v2561, %v2664
      %v2666 = vpop.f32.mrf.mxu0
      %2667 = vmatprep.mubr.bf16.mxu0 0
      %2668 = vmatmul.mubr.bf16.gmra.mxu0 %v2535
      %v2669 = vpop.f32.mrf.mxu0
      %v2670 = vadd.f32 %v2561, %v2669
      %v2671 = vpop.f32.mrf.mxu0
      %v2672 = vpop.f32.mrf.mxu0
      %v2673 = vadd.f32 %v2561, %v2672
      %v2674 = vpop.f32.mrf.mxu0
      %2675 = vmatprep.mubr.bf16.mxu0 0
      %2676 = vmatmul.mubr.bf16.gmra.mxu0 %v2536
      %v2677 = vpop.f32.mrf.mxu0
      %v2678 = vadd.f32 %v2561, %v2677
      %v2679 = vpop.f32.mrf.mxu0
      %v2680 = vpop.f32.mrf.mxu0
      %v2681 = vadd.f32 %v2561, %v2680
      %v2682 = vpop.f32.mrf.mxu0
      %2683 = vmatprep.mubr.bf16.mxu0 0
      %2684 = vmatmul.mubr.bf16.gmra.mxu0 %v2537
      %v2685 = vpop.f32.mrf.mxu0
      %v2686 = vadd.f32 %v2561, %v2685
      %v2687 = vpop.f32.mrf.mxu0
      %v2688 = vpop.f32.mrf.mxu0
      %v2689 = vadd.f32 %v2561, %v2688
      %v2690 = vpop.f32.mrf.mxu0
      %2691 = vmatprep.mubr.bf16.mxu0 0
      %2692 = vmatmul.mubr.bf16.gmra.mxu0 %v2538
      %v2693 = vpop.f32.mrf.mxu0
      %v2694 = vadd.f32 %v2561, %v2693
      %v2695 = vpop.f32.mrf.mxu0
      %v2696 = vpop.f32.mrf.mxu0
      %v2697 = vadd.f32 %v2561, %v2696
      %v2698 = vpop.f32.mrf.mxu0
      %2699 = vmatprep.mubr.bf16.mxu0 0
      %2700 = vmatmul.mubr.bf16.gmra.mxu0 %v2539
      %v2701 = vpop.f32.mrf.mxu0
      %v2702 = vadd.f32 %v2561, %v2701
      %v2703 = vpop.f32.mrf.mxu0
      %v2704 = vpop.f32.mrf.mxu0
      %v2705 = vadd.f32 %v2561, %v2704
      %v2706 = vpop.f32.mrf.mxu0
      %2707 = vdwg.mxu0
      %v2708 = vlaneseq
      %v2709 = vand.u32 %v2708, 127
      %vm2710 = vcmp.lt.s32.totalorder %v2709, 32
      %v2711 = vsel %vm2710, 1, 0
      %vm2712 = vcmp.eq.s32.totalorder %v2711, 1
      %v2713 = vsel %vm2712, %v2646, 0.0
      %v2714 = vsel %vm2712, %v2649, 0.0
      %v2715 = vsel %vm2712, %v2654, 0.0
      %v2716 = vsel %vm2712, %v2657, 0.0
      %v2717 = vsel %vm2712, %v2662, 0.0
      %v2718 = vsel %vm2712, %v2665, 0.0
      %v2719 = vsel %vm2712, %v2670, 0.0
      %v2720 = vsel %vm2712, %v2673, 0.0
      %v2721 = vsel %vm2712, %v2678, 0.0
      %v2722 = vsel %vm2712, %v2681, 0.0
      %v2723 = vsel %vm2712, %v2686, 0.0
      %v2724 = vsel %vm2712, %v2689, 0.0
      %v2725 = vsel %vm2712, %v2694, 0.0
      %v2726 = vsel %vm2712, %v2697, 0.0
      %v2727 = vsel %vm2712, %v2702, 0.0
      %v2728 = vsel %vm2712, %v2705, 0.0
      %2729 = vadd.xlane.f32.xlu0 %v2713
      %v2730 = vpop.xlane.xlu0 %2729
      %2731 = vadd.xlane.f32.xlu0 %v2714
      %v2732 = vpop.xlane.xlu0 %2731
      %2733 = vadd.xlane.f32.xlu0 %v2715
      %v2734 = vpop.xlane.xlu0 %2733
      %2735 = vadd.xlane.f32.xlu0 %v2716
      %v2736 = vpop.xlane.xlu0 %2735
      %2737 = vadd.xlane.f32.xlu0 %v2717
      %v2738 = vpop.xlane.xlu0 %2737
      %2739 = vadd.xlane.f32.xlu0 %v2718
      %v2740 = vpop.xlane.xlu0 %2739
      %2741 = vadd.xlane.f32.xlu0 %v2719
      %v2742 = vpop.xlane.xlu0 %2741
      %2743 = vadd.xlane.f32.xlu0 %v2720
      %v2744 = vpop.xlane.xlu0 %2743
      %2745 = vadd.xlane.f32.xlu0 %v2721
      %v2746 = vpop.xlane.xlu0 %2745
      %2747 = vadd.xlane.f32.xlu0 %v2722
      %v2748 = vpop.xlane.xlu0 %2747
      %2749 = vadd.xlane.f32.xlu0 %v2723
      %v2750 = vpop.xlane.xlu0 %2749
      %2751 = vadd.xlane.f32.xlu0 %v2724
      %v2752 = vpop.xlane.xlu0 %2751
      %2753 = vadd.xlane.f32.xlu0 %v2725
      %v2754 = vpop.xlane.xlu0 %2753
      %2755 = vadd.xlane.f32.xlu0 %v2726
      %v2756 = vpop.xlane.xlu0 %2755
      %2757 = vadd.xlane.f32.xlu0 %v2727
      %v2758 = vpop.xlane.xlu0 %2757
      %2759 = vadd.xlane.f32.xlu0 %v2728
      %v2760 = vpop.xlane.xlu0 %2759
      %v2761 = vrcp.pop 32.0
      %v2762 = vmul.f32 %v2730, %v2761
      %v2763 = vmul.f32 %v2732, %v2761
      %v2764 = vmul.f32 %v2734, %v2761
      %v2765 = vmul.f32 %v2736, %v2761
      %v2766 = vmul.f32 %v2738, %v2761
      %v2767 = vmul.f32 %v2740, %v2761
      %v2768 = vmul.f32 %v2742, %v2761
      %v2769 = vmul.f32 %v2744, %v2761
      %v2770 = vmul.f32 %v2746, %v2761
      %v2771 = vmul.f32 %v2748, %v2761
      %v2772 = vmul.f32 %v2750, %v2761
      %v2773 = vmul.f32 %v2752, %v2761
      %v2774 = vmul.f32 %v2754, %v2761
      %v2775 = vmul.f32 %v2756, %v2761
      %v2776 = vmul.f32 %v2758, %v2761
      %v2777 = vmul.f32 %v2760, %v2761
      %v2778 = vsub.f32 %v2646, %v2762
      %v2779 = vsub.f32 %v2649, %v2763
      %v2780 = vsub.f32 %v2654, %v2764
      %v2781 = vsub.f32 %v2657, %v2765
      %v2782 = vsub.f32 %v2662, %v2766
      %v2783 = vsub.f32 %v2665, %v2767
      %v2784 = vsub.f32 %v2670, %v2768
      %v2785 = vsub.f32 %v2673, %v2769
      %v2786 = vsub.f32 %v2678, %v2770
      %v2787 = vsub.f32 %v2681, %v2771
      %v2788 = vsub.f32 %v2686, %v2772
      %v2789 = vsub.f32 %v2689, %v2773
      %v2790 = vsub.f32 %v2694, %v2774
      %v2791 = vsub.f32 %v2697, %v2775
      %v2792 = vsub.f32 %v2702, %v2776
      %v2793 = vsub.f32 %v2705, %v2777
      %v2794 = vsel %vm2712, %v2778, 0.0
      %v2795 = vsel %vm2712, %v2779, 0.0
      %v2796 = vsel %vm2712, %v2780, 0.0
      %v2797 = vsel %vm2712, %v2781, 0.0
      %v2798 = vsel %vm2712, %v2782, 0.0
      %v2799 = vsel %vm2712, %v2783, 0.0
      %v2800 = vsel %vm2712, %v2784, 0.0
      %v2801 = vsel %vm2712, %v2785, 0.0
      %v2802 = vsel %vm2712, %v2786, 0.0
      %v2803 = vsel %vm2712, %v2787, 0.0
      %v2804 = vsel %vm2712, %v2788, 0.0
      %v2805 = vsel %vm2712, %v2789, 0.0
      %v2806 = vsel %vm2712, %v2790, 0.0
      %v2807 = vsel %vm2712, %v2791, 0.0
      %v2808 = vsel %vm2712, %v2792, 0.0
      %v2809 = vsel %vm2712, %v2793, 0.0
      %v2810 = vmul.f32 %v2794, %v2794
      %v2811 = vmul.f32 %v2795, %v2795
      %v2812 = vmul.f32 %v2796, %v2796
      %v2813 = vmul.f32 %v2797, %v2797
      %v2814 = vmul.f32 %v2798, %v2798
      %v2815 = vmul.f32 %v2799, %v2799
      %v2816 = vmul.f32 %v2800, %v2800
      %v2817 = vmul.f32 %v2801, %v2801
      %v2818 = vmul.f32 %v2802, %v2802
      %v2819 = vmul.f32 %v2803, %v2803
      %v2820 = vmul.f32 %v2804, %v2804
      %v2821 = vmul.f32 %v2805, %v2805
      %v2822 = vmul.f32 %v2806, %v2806
      %v2823 = vmul.f32 %v2807, %v2807
      %v2824 = vmul.f32 %v2808, %v2808
      %v2825 = vmul.f32 %v2809, %v2809
      %2826 = vadd.xlane.f32.xlu0 %v2810
      %v2827 = vpop.xlane.xlu0 %2826
      %2828 = vadd.xlane.f32.xlu0 %v2811
      %v2829 = vpop.xlane.xlu0 %2828
      %2830 = vadd.xlane.f32.xlu0 %v2812
      %v2831 = vpop.xlane.xlu0 %2830
      %2832 = vadd.xlane.f32.xlu0 %v2813
      %v2833 = vpop.xlane.xlu0 %2832
      %2834 = vadd.xlane.f32.xlu0 %v2814
      %v2835 = vpop.xlane.xlu0 %2834
      %2836 = vadd.xlane.f32.xlu0 %v2815
      %v2837 = vpop.xlane.xlu0 %2836
      %2838 = vadd.xlane.f32.xlu0 %v2816
      %v2839 = vpop.xlane.xlu0 %2838
      %2840 = vadd.xlane.f32.xlu0 %v2817
      %v2841 = vpop.xlane.xlu0 %2840
      %2842 = vadd.xlane.f32.xlu0 %v2818
      %v2843 = vpop.xlane.xlu0 %2842
      %2844 = vadd.xlane.f32.xlu0 %v2819
      %v2845 = vpop.xlane.xlu0 %2844
      %2846 = vadd.xlane.f32.xlu0 %v2820
      %v2847 = vpop.xlane.xlu0 %2846
      %2848 = vadd.xlane.f32.xlu0 %v2821
      %v2849 = vpop.xlane.xlu0 %2848
      %2850 = vadd.xlane.f32.xlu0 %v2822
      %v2851 = vpop.xlane.xlu0 %2850
      %2852 = vadd.xlane.f32.xlu0 %v2823
      %v2853 = vpop.xlane.xlu0 %2852
      %2854 = vadd.xlane.f32.xlu0 %v2824
      %v2855 = vpop.xlane.xlu0 %2854
      %2856 = vadd.xlane.f32.xlu0 %v2825
      %v2857 = vpop.xlane.xlu0 %2856
      %v2858 = vmul.f32 %v2827, %v2761
      %v2859 = vmul.f32 %v2829, %v2761
      %v2860 = vmul.f32 %v2831, %v2761
      %v2861 = vmul.f32 %v2833, %v2761
      %v2862 = vmul.f32 %v2835, %v2761
      %v2863 = vmul.f32 %v2837, %v2761
      %v2864 = vmul.f32 %v2839, %v2761
      %v2865 = vmul.f32 %v2841, %v2761
      %v2866 = vmul.f32 %v2843, %v2761
      %v2867 = vmul.f32 %v2845, %v2761
      %v2868 = vmul.f32 %v2847, %v2761
      %v2869 = vmul.f32 %v2849, %v2761
      %v2870 = vmul.f32 %v2851, %v2761
      %v2871 = vmul.f32 %v2853, %v2761
      %v2872 = vmul.f32 %v2855, %v2761
      %v2873 = vmul.f32 %v2857, %v2761
      %v2874 = vadd.f32 %v2858, 1e-05
      %v2875 = vadd.f32 %v2859, 1e-05
      %v2876 = vadd.f32 %v2860, 1e-05
      %v2877 = vadd.f32 %v2861, 1e-05
      %v2878 = vadd.f32 %v2862, 1e-05
      %v2879 = vadd.f32 %v2863, 1e-05
      %v2880 = vadd.f32 %v2864, 1e-05
      %v2881 = vadd.f32 %v2865, 1e-05
      %v2882 = vadd.f32 %v2866, 1e-05
      %v2883 = vadd.f32 %v2867, 1e-05
      %v2884 = vadd.f32 %v2868, 1e-05
      %v2885 = vadd.f32 %v2869, 1e-05
      %v2886 = vadd.f32 %v2870, 1e-05
      %v2887 = vadd.f32 %v2871, 1e-05
      %v2888 = vadd.f32 %v2872, 1e-05
      %v2889 = vadd.f32 %v2873, 1e-05
      %v2890 = vrsqrt.pop %v2874
      %v2891 = vrsqrt.pop %v2875
      %v2892 = vrsqrt.pop %v2876
      %v2893 = vrsqrt.pop %v2877
      %v2894 = vrsqrt.pop %v2878
      %v2895 = vrsqrt.pop %v2879
      %v2896 = vrsqrt.pop %v2880
      %v2897 = vrsqrt.pop %v2881
      %v2898 = vrsqrt.pop %v2882
      %v2899 = vrsqrt.pop %v2883
      %v2900 = vrsqrt.pop %v2884
      %v2901 = vrsqrt.pop %v2885
      %v2902 = vrsqrt.pop %v2886
      %v2903 = vrsqrt.pop %v2887
      %v2904 = vrsqrt.pop %v2888
      %v2905 = vrsqrt.pop %v2889
      %v2906 = vmul.f32 %v2778, %v2890
      %v2907 = vmul.f32 %v2779, %v2891
      %v2908 = vmul.f32 %v2780, %v2892
      %v2909 = vmul.f32 %v2781, %v2893
      %v2910 = vmul.f32 %v2782, %v2894
      %v2911 = vmul.f32 %v2783, %v2895
      %v2912 = vmul.f32 %v2784, %v2896
      %v2913 = vmul.f32 %v2785, %v2897
      %v2914 = vmul.f32 %v2786, %v2898
      %v2915 = vmul.f32 %v2787, %v2899
      %v2916 = vmul.f32 %v2788, %v2900
      %v2917 = vmul.f32 %v2789, %v2901
      %v2918 = vmul.f32 %v2790, %v2902
      %v2919 = vmul.f32 %v2791, %v2903
      %v2920 = vmul.f32 %v2792, %v2904
      %v2921 = vmul.f32 %v2793, %v2905
      %v2922 = vld [vmem:[%s8] sm:$0x1]
      %v2924 = vlaneseq
      %v2925 = vshrl.u32 %v2924, 7
      %v2926 = vsub.s32 0, %v2925
      %v2927 = vrot.slane %v2922, %v2926
      %v2929 = vmul.f32 %v2906, %v2927
      %v2930 = vmul.f32 %v2907, %v2927
      %v2931 = vmul.f32 %v2908, %v2927
      %v2932 = vmul.f32 %v2909, %v2927
      %v2933 = vmul.f32 %v2910, %v2927
      %v2934 = vmul.f32 %v2911, %v2927
      %v2935 = vmul.f32 %v2912, %v2927
      %v2936 = vmul.f32 %v2913, %v2927
      %v2937 = vmul.f32 %v2914, %v2927
      %v2938 = vmul.f32 %v2915, %v2927
      %v2939 = vmul.f32 %v2916, %v2927
      %v2940 = vmul.f32 %v2917, %v2927
      %v2941 = vmul.f32 %v2918, %v2927
      %v2942 = vmul.f32 %v2919, %v2927
      %v2943 = vmul.f32 %v2920, %v2927
      %v2944 = vmul.f32 %v2921, %v2927
      %v2945 = vld [vmem:[%s9] sm:$0x1]
      %v2947 = vlaneseq
      %v2948 = vshrl.u32 %v2947, 7
      %v2949 = vsub.s32 0, %v2948
      %v2950 = vrot.slane %v2945, %v2949
      %v2952 = vadd.f32 %v2929, %v2950
      %v2953 = vadd.f32 %v2930, %v2950
      %v2954 = vadd.f32 %v2931, %v2950
      %v2955 = vadd.f32 %v2932, %v2950
      %v2956 = vadd.f32 %v2933, %v2950
      %v2957 = vadd.f32 %v2934, %v2950
      %v2958 = vadd.f32 %v2935, %v2950
      %v2959 = vadd.f32 %v2936, %v2950
      %v2960 = vadd.f32 %v2937, %v2950
      %v2961 = vadd.f32 %v2938, %v2950
      %v2962 = vadd.f32 %v2939, %v2950
      %v2963 = vadd.f32 %v2940, %v2950
      %v2964 = vadd.f32 %v2941, %v2950
      %v2965 = vadd.f32 %v2942, %v2950
      %v2966 = vadd.f32 %v2943, %v2950
      %v2967 = vadd.f32 %v2944, %v2950
      %v2968 = vmul.f32 %v1073, %v2952
      %v2969 = vmul.f32 %v1073, %v2953
      %v2970 = vmul.f32 %v1073, %v2954
      %v2971 = vmul.f32 %v1073, %v2955
      %v2972 = vmul.f32 %v1073, %v2956
      %v2973 = vmul.f32 %v1073, %v2957
      %v2974 = vmul.f32 %v1073, %v2958
      %v2975 = vmul.f32 %v1073, %v2959
      %v2976 = vmul.f32 %v1075, %v2960
      %v2977 = vmul.f32 %v1075, %v2961
      %v2978 = vmul.f32 %v1075, %v2962
      %v2979 = vmul.f32 %v1075, %v2963
      %v2980 = vmul.f32 %v1075, %v2964
      %v2981 = vmul.f32 %v1075, %v2965
      %v2982 = vmul.f32 %v1075, %v2966
      %v2983 = vmul.f32 %v1075, %v2967
      %2984 = vst [vmem:[%s366] sm:$0xff] %v2968
      %2985 = vst [vmem:[%s366 + $0x8] sm:$0xff] %v2969
      %2986 = vst [vmem:[%s366 + $0x10] sm:$0xff] %v2970
      %2987 = vst [vmem:[%s366 + $0x18] sm:$0xff] %v2971
      %2988 = vst [vmem:[%s366 + $0x20] sm:$0xff] %v2972
      %2989 = vst [vmem:[%s366 + $0x28] sm:$0xff] %v2973
      %2990 = vst [vmem:[%s366 + $0x30] sm:$0xff] %v2974
      %2991 = vst [vmem:[%s366 + $0x38] sm:$0xff] %v2975
      %2992 = vst [vmem:[%s366 + $0x40] sm:$0xff] %v2976
      %2993 = vst [vmem:[%s366 + $0x48] sm:$0xff] %v2977
      %2994 = vst [vmem:[%s366 + $0x50] sm:$0xff] %v2978
      %2995 = vst [vmem:[%s366 + $0x58] sm:$0xff] %v2979
      %2996 = vst [vmem:[%s366 + $0x60] sm:$0xff] %v2980
      %2997 = vst [vmem:[%s366 + $0x68] sm:$0xff] %v2981
      %2998 = vst [vmem:[%s366 + $0x70] sm:$0xff] %v2982
      %2999 = vst [vmem:[%s366 + $0x78] sm:$0xff] %v2983
      %s3000 = smul.u32 2, %s21
      %p3001 = scmp.lt.s32.totalorder %s3000, 3
      %s3002 = scalar_select %p3001, %s3000, 3
      %s3003 = smul.addr %s3002, 8
      %s3004 = smul.addr %s3003, 8
      %s3005 = scalar_lea.vmem %s10, %s3004
      // Predicated region
      $region61: #{_forward_stacked.1} parent=59 // pred_check
        %p3006 = pneg %p254
      $region62: #{_forward_stacked.1} parent=59 // pred_check_branch
        %3008 = sbr.rel (%p3006) target = $region64
      $region63: #{_forward_stacked.1} parent=59 // pred_region
        %s3009 = smul.u32 2, %s21
      $region64: #{_forward_stacked.1} parent=59 // pred_fallthru
        _
    $region60: #{_forward_stacked.1} parent=5 // pred_fallthru
      _
    %p3010 = scmp.le.s32.totalorder 2, %s16
    // Predicated region
    $region65: #{_forward_stacked.1} parent=5 // pred_check
      %p3011 = pneg %p3010
    $region66: #{_forward_stacked.1} parent=5 // pred_check_branch
      %3013 = sbr.rel (%p3011) target = $region68
    $region67: #{_forward_stacked.1} parent=5 // pred_region
      %s3014 = ssub.s32 %s16, 2
      // Predicated region
      $region69: #{_forward_stacked.1} parent=67 // pred_check
        %p3015 = pneg %p260
      $region70: #{_forward_stacked.1} parent=67 // pred_check_branch
        %3017 = sbr.rel (%p3015) target = $region72
      $region71: #{_forward_stacked.1} parent=67 // pred_region
        %s3018 = smul.u32 2, %s22
        %p3019 = scmp.lt.s32.totalorder %s3018, 3
        %s3020 = scalar_select %p3019, %s3018, 3
        %s3021 = smul.addr %s3020, 8
        %s3022 = smul.addr %s3021, 8
        %s3023 = scalar_lea.vmem %s10, %s3022
      $region72: #{_forward_stacked.1} parent=67 // pred_fallthru
        _
    $region68: #{_forward_stacked.1} parent=5 // pred_fallthru
      _
  $region6: #{_forward_stacked.1} parent=0 // loop_footer
    %s20 = sadd.s32 1, %s16
  $region7: #{_forward_stacked.1} parent=0 // loop_footer_branch
    %15 = sbr.rel target = $region3
  $region8: #{_forward_stacked.1} parent=0 // loop_exit
    _

</llo_original>
